<compile_context>
chip_gen: v7x
topology: tpu7x:2x2x1
jax: 0.10.0
libtpu: 0.0.40
codegen_flags: <defaults>
</compile_context>

<pallas_src>
import jax
import jax.numpy as jnp
from jax.experimental import pallas as pl
from jax.experimental.pallas import tpu as pltpu

IMAGE_DIMENSION = 784
LATENT_VARIABLE_DIMENSION = 2
NEURAL_NETWORK_DIMENSION = 512

LATENT_PAD = 128              # latent dim zero-padded to one lane tile
IMAGE_PAD = 896               # 784 -> 7*128 for lane-dense loads/stores
HEAD_PAD = 2 * LATENT_PAD     # fused [mean | std] head width
MAX_BLOCK_ROWS = 256          # batch rows processed per grid step


def _round_up(a, b):
    return (a + b - 1) // b * b


def vae_fwd_kernel(x_ref, eps_ref,
                   w1_ref, w2_ref, wh_ref, wd1_ref, wd2_ref, bias_ref,
                   std_ref, mean_ref, dec_ref):
    nn = NEURAL_NETWORK_DIMENSION

    # Packed f32 biases, one row each (static slices of the VMEM slab).
    b1 = bias_ref[0:1, :nn]
    b2 = bias_ref[1:2, :nn]
    bh = bias_ref[2:3, :HEAD_PAD]
    bd1 = bias_ref[3:4, :nn]
    bd2 = bias_ref[4:5, :]

    x = x_ref[...].astype(jnp.bfloat16)

    # encoder: Linear(784,512) + ReLU + Linear(512,512)
    h1 = jnp.maximum(
        jnp.dot(x, w1_ref[...], preferred_element_type=jnp.float32) + b1, 0.0)
    enc = jnp.dot(h1.astype(jnp.bfloat16), w2_ref[...],
                  preferred_element_type=jnp.float32) + b2

    # fused latent heads: single matmul producing [mean | std], each padded to 128
    heads = jnp.dot(enc.astype(jnp.bfloat16), wh_ref[...],
                    preferred_element_type=jnp.float32) + bh
    mean = heads[:, :LATENT_PAD]
    std = heads[:, LATENT_PAD:]

    # reparameterization: mean + eps * exp(0.5 * std)
    # (eps, mean, std are all exactly 0 in the padded latent columns)
    latent = mean + eps_ref[...] * jnp.exp(std * 0.5)

    # decoder: Linear(2,512) + ReLU + Linear(512,784) + Sigmoid
    d1 = jnp.maximum(
        jnp.dot(latent.astype(jnp.bfloat16), wd1_ref[...],
                preferred_element_type=jnp.float32) + bd1, 0.0)
    dec = jax.nn.sigmoid(
        jnp.dot(d1.astype(jnp.bfloat16), wd2_ref[...],
                preferred_element_type=jnp.float32) + bd2)

    std_ref[...] = std
    mean_ref[...] = mean
    dec_ref[...] = dec


def _linear_params(key, fan_in, fan_out):
    """torch.nn.Linear default init (uniform +/- 1/sqrt(fan_in)).
    W returned as [in, out] (transpose of torch's weight)."""
    k = 1.0 / jnp.sqrt(jnp.float32(fan_in))
    kw, kb = jax.random.split(key)
    w = jax.random.uniform(kw, (fan_in, fan_out), jnp.float32, minval=-k, maxval=k)
    b = jax.random.uniform(kb, (fan_out,), jnp.float32, minval=-k, maxval=k)
    return w, b


def init_params(key):
    keys = jax.random.split(key, 6)
    w1, b1 = _linear_params(keys[0], IMAGE_DIMENSION, NEURAL_NETWORK_DIMENSION)
    w2, b2 = _linear_params(keys[1], NEURAL_NETWORK_DIMENSION, NEURAL_NETWORK_DIMENSION)
    wm, bm = _linear_params(keys[2], NEURAL_NETWORK_DIMENSION, LATENT_VARIABLE_DIMENSION)
    ws, bs = _linear_params(keys[3], NEURAL_NETWORK_DIMENSION, LATENT_VARIABLE_DIMENSION)
    wd1, bd1 = _linear_params(keys[4], LATENT_VARIABLE_DIMENSION, NEURAL_NETWORK_DIMENSION)
    wd2, bd2 = _linear_params(keys[5], NEURAL_NETWORK_DIMENSION, IMAGE_DIMENSION)
    return dict(w1=w1, b1=b1, w2=w2, b2=b2, wm=wm, bm=bm, ws=ws, bs=bs,
                wd1=wd1, bd1=bd1, wd2=wd2, bd2=bd2)


def prepare_params(p):
    """Pad to lane-dense shapes, fuse the latent heads, cast weights to bf16,
    and pack all biases into one [8, IMAGE_PAD] f32 slab."""
    nn = NEURAL_NETWORK_DIMENSION
    lat_pad = LATENT_PAD - LATENT_VARIABLE_DIMENSION
    img_pad = IMAGE_PAD - IMAGE_DIMENSION

    w1 = jnp.pad(p["w1"], ((0, img_pad), (0, 0))).astype(jnp.bfloat16)
    w2 = p["w2"].astype(jnp.bfloat16)
    wm_p = jnp.pad(p["wm"], ((0, 0), (0, lat_pad)))
    ws_p = jnp.pad(p["ws"], ((0, 0), (0, lat_pad)))
    wh = jnp.concatenate([wm_p, ws_p], axis=1).astype(jnp.bfloat16)   # [512, 256]
    wd1 = jnp.pad(p["wd1"], ((0, lat_pad), (0, 0))).astype(jnp.bfloat16)
    wd2 = jnp.pad(p["wd2"], ((0, 0), (0, img_pad))).astype(jnp.bfloat16)

    bh = jnp.concatenate([jnp.pad(p["bm"], (0, lat_pad)),
                          jnp.pad(p["bs"], (0, lat_pad))])
    bias = jnp.zeros((8, IMAGE_PAD), jnp.float32)
    bias = bias.at[0, :nn].set(p["b1"])
    bias = bias.at[1, :nn].set(p["b2"])
    bias = bias.at[2, :HEAD_PAD].set(bh)
    bias = bias.at[3, :nn].set(p["bd1"])
    bias = bias.at[4, :IMAGE_DIMENSION].set(p["bd2"])

    return dict(w1=w1, w2=w2, wh=wh, wd1=wd1, wd2=wd2, bias=bias)


def vae_forward(prepared, x, eps):
    """x: [B, 784] f32, eps: [B, 2] f32.
    Returns (std_layer [B,2], mean_layer [B,2], dec [B,784]) like Net.forward."""
    B = x.shape[0]
    nn = NEURAL_NETWORK_DIMENSION

    B_sub = _round_up(B, 8)                       # f32 sublane tile
    block_b = min(MAX_BLOCK_ROWS, B_sub)
    B_pad = _round_up(B_sub, block_b)
    grid = (B_pad // block_b,)

    x_p = jnp.pad(x, ((0, B_pad - B), (0, IMAGE_PAD - IMAGE_DIMENSION)))
    eps_p = jnp.pad(eps, ((0, B_pad - B), (0, LATENT_PAD - LATENT_VARIABLE_DIMENSION)))

    def row_spec(width):   # batch-tiled activations / outputs
        return pl.BlockSpec((block_b, width), lambda i: (i, 0))

    def resident(r, c):    # weights / biases: constant block -> stay in VMEM
        return pl.BlockSpec((r, c), lambda i: (0, 0))

    mac = (IMAGE_PAD * nn + nn * nn + nn * HEAD_PAD
           + LATENT_PAD * nn + nn * IMAGE_PAD)
    weight_bytes = 2 * mac + 8 * IMAGE_PAD * 4            # bf16 weights + f32 bias slab
    io_bytes = B_pad * 4 * (IMAGE_PAD + LATENT_PAD        # x, eps in
                            + 2 * LATENT_PAD + IMAGE_PAD)  # std, mean, dec out
    cost = pl.CostEstimate(flops=2 * B_pad * mac,
                           transcendentals=B_pad * (LATENT_PAD + IMAGE_PAD),
                           bytes_accessed=weight_bytes + io_bytes)

    std_p, mean_p, dec_p = pl.pallas_call(
        vae_fwd_kernel,
        grid=grid,
        in_specs=[
            row_spec(IMAGE_PAD),               # x
            row_spec(LATENT_PAD),              # eps
            resident(IMAGE_PAD, nn),           # w1
            resident(nn, nn),                  # w2
            resident(nn, HEAD_PAD),            # fused [mean|std] head weight
            resident(LATENT_PAD, nn),          # wd1
            resident(nn, IMAGE_PAD),           # wd2
            resident(8, IMAGE_PAD),            # packed biases
        ],
        out_specs=(
            row_spec(LATENT_PAD),              # std
            row_spec(LATENT_PAD),              # mean
            row_spec(IMAGE_PAD),               # dec
        ),
        out_shape=(
            jax.ShapeDtypeStruct((B_pad, LATENT_PAD), jnp.float32),
            jax.ShapeDtypeStruct((B_pad, LATENT_PAD), jnp.float32),
            jax.ShapeDtypeStruct((B_pad, IMAGE_PAD), jnp.float32),
        ),
        compiler_params=pltpu.CompilerParams(
            dimension_semantics=("parallel",),
            vmem_limit_bytes=32 << 20),
        cost_estimate=cost,
    )(x_p, eps_p,
      prepared["w1"], prepared["w2"], prepared["wh"],
      prepared["wd1"], prepared["wd2"], prepared["bias"])

    return (std_p[:B, :LATENT_VARIABLE_DIMENSION],
            mean_p[:B, :LATENT_VARIABLE_DIMENSION],
            dec_p[:B, :IMAGE_DIMENSION])


def vae_reference(p, x, eps):
    """Pure-JAX f32 reference matching Net.forward (eps supplied externally)."""
    h1 = jnp.maximum(x @ p["w1"] + p["b1"], 0.0)
    enc = h1 @ p["w2"] + p["b2"]
    std = enc @ p["ws"] + p["bs"]
    mean = enc @ p["wm"] + p["bm"]
    latent = mean + eps * jnp.exp(std * 0.5)
    d1 = jnp.maximum(latent @ p["wd1"] + p["bd1"], 0.0)
    dec = jax.nn.sigmoid(d1 @ p["wd2"] + p["bd2"])
    return std, mean, dec


if __name__ == "__main__":
    key = jax.random.PRNGKey(0)
    kp, kx, ke = jax.random.split(key, 3)

    params = init_params(kp)
    prepared = prepare_params(params)

    B = 8
    x = jax.random.uniform(kx, (B, IMAGE_DIMENSION), jnp.float32)  # "image" batch
    # TODO(synk): torch.randn(eps) is generated inside Net.forward; here eps is
    # drawn host-side and passed in (same distribution, explicit RNG).
    eps = jax.random.normal(ke, (B, LATENT_VARIABLE_DIMENSION), jnp.float32)

    std_layer, mean_layer, dec = vae_forward(prepared, x, eps)
    jax.block_until_ready((std_layer, mean_layer, dec))

    assert std_layer.shape == (B, LATENT_VARIABLE_DIMENSION)
    assert mean_layer.shape == (B, LATENT_VARIABLE_DIMENSION)
    assert dec.shape == (B, IMAGE_DIMENSION)

    # Loose correctness check vs. an f32 reference (kernel uses bf16 weights).
    std_r, mean_r, dec_r = vae_reference(params, x, eps)
    assert float(jnp.max(jnp.abs(std_layer - std_r))) < 5e-2
    assert float(jnp.max(jnp.abs(mean_layer - mean_r))) < 5e-2
    assert float(jnp.max(jnp.abs(dec - dec_r))) < 5e-2

    print("KERNEL_OK")
</pallas_src>

<mosaic_0001>
module attributes {stable_mosaic.version = 11 : i64} {
  func.func @vae_fwd_kernel(%arg0: i32, %arg1: memref<8x896xf32, #tpu.memory_space<vmem>>, %arg2: memref<8x128xf32, #tpu.memory_space<vmem>>, %arg3: memref<896x512xbf16, #tpu.memory_space<vmem>>, %arg4: memref<512x512xbf16, #tpu.memory_space<vmem>>, %arg5: memref<512x256xbf16, #tpu.memory_space<vmem>>, %arg6: memref<128x512xbf16, #tpu.memory_space<vmem>>, %arg7: memref<512x896xbf16, #tpu.memory_space<vmem>>, %arg8: memref<8x896xf32, #tpu.memory_space<vmem>>, %arg9: memref<8x128xf32, #tpu.memory_space<vmem>>, %arg10: memref<8x128xf32, #tpu.memory_space<vmem>>, %arg11: memref<8x896xf32, #tpu.memory_space<vmem>>) attributes {dimension_semantics = [#tpu.dimension_semantics<parallel>], iteration_bounds = array<i64: 1>, scalar_prefetch = 0 : i64, scratch_operands = 0 : i64, tpu.core_type = #tpu.core_type<tc>, window_params = [{transform_indices = @transform_0, window_bounds = array<i64: 8, 896>}, {transform_indices = @transform_1, window_bounds = array<i64: 8, 128>}, {pipeline_mode = #tpu.pipeline_mode<synchronous>, transform_indices = @transform_2, window_bounds = array<i64: 896, 512>}, {pipeline_mode = #tpu.pipeline_mode<synchronous>, transform_indices = @transform_3, window_bounds = array<i64: 512, 512>}, {pipeline_mode = #tpu.pipeline_mode<synchronous>, transform_indices = @transform_4, window_bounds = array<i64: 512, 256>}, {pipeline_mode = #tpu.pipeline_mode<synchronous>, transform_indices = @transform_5, window_bounds = array<i64: 128, 512>}, {pipeline_mode = #tpu.pipeline_mode<synchronous>, transform_indices = @transform_6, window_bounds = array<i64: 512, 896>}, {pipeline_mode = #tpu.pipeline_mode<synchronous>, transform_indices = @transform_7, window_bounds = array<i64: 8, 896>}, {transform_indices = @transform_8, window_bounds = array<i64: 8, 128>}, {transform_indices = @transform_9, window_bounds = array<i64: 8, 128>}, {transform_indices = @transform_10, window_bounds = array<i64: 8, 896>}]} {
    %c0 = arith.constant 0 : index
    %c0_0 = arith.constant 0 : index
    %0 = vector.load %arg8[%c0, %c0_0] : memref<8x896xf32, #tpu.memory_space<vmem>>, vector<1x512xf32>
    %c1 = arith.constant 1 : index
    %c0_1 = arith.constant 0 : index
    %1 = vector.load %arg8[%c1, %c0_1] : memref<8x896xf32, #tpu.memory_space<vmem>>, vector<1x512xf32>
    %c2 = arith.constant 2 : index
    %c0_2 = arith.constant 0 : index
    %2 = vector.load %arg8[%c2, %c0_2] : memref<8x896xf32, #tpu.memory_space<vmem>>, vector<1x256xf32>
    %c3 = arith.constant 3 : index
    %c0_3 = arith.constant 0 : index
    %3 = vector.load %arg8[%c3, %c0_3] : memref<8x896xf32, #tpu.memory_space<vmem>>, vector<1x512xf32>
    %c4 = arith.constant 4 : index
    %c0_4 = arith.constant 0 : index
    %4 = vector.load %arg8[%c4, %c0_4] : memref<8x896xf32, #tpu.memory_space<vmem>>, vector<1x896xf32>
    %c0_5 = arith.constant 0 : index
    %c0_6 = arith.constant 0 : index
    %5 = vector.load %arg1[%c0_5, %c0_6] : memref<8x896xf32, #tpu.memory_space<vmem>>, vector<8x896xf32>
    %6 = arith.truncf %5 : vector<8x896xf32> to vector<8x896xbf16>
    %c0_7 = arith.constant 0 : index
    %c0_8 = arith.constant 0 : index
    %7 = vector.load %arg3[%c0_7, %c0_8] : memref<896x512xbf16, #tpu.memory_space<vmem>>, vector<896x512xbf16>
    %cst = arith.constant dense<0.000000e+00> : vector<8x512xf32>
    %8 = tpu.matmul %6, %7, %cst {dimension_numbers = #tpu.dot_dimension_numbers<[1], [0], [0], [1], [0, 0, 1, 1], [], []>} : vector<8x896xbf16>, vector<896x512xbf16>, vector<8x512xf32> -> vector<8x512xf32>
    %9 = vector.broadcast %0 : vector<1x512xf32> to vector<8x512xf32>
    %10 = arith.addf %8, %9 : vector<8x512xf32>
    %cst_9 = arith.constant 0.000000e+00 : f32
    %11 = vector.broadcast %cst_9 : f32 to vector<8x512xf32>
    %12 = arith.maximumf %10, %11 : vector<8x512xf32>
    %13 = arith.truncf %12 : vector<8x512xf32> to vector<8x512xbf16>
    %c0_10 = arith.constant 0 : index
    %c0_11 = arith.constant 0 : index
    %14 = vector.load %arg4[%c0_10, %c0_11] : memref<512x512xbf16, #tpu.memory_space<vmem>>, vector<512x512xbf16>
    %cst_12 = arith.constant dense<0.000000e+00> : vector<8x512xf32>
    %15 = tpu.matmul %13, %14, %cst_12 {dimension_numbers = #tpu.dot_dimension_numbers<[1], [0], [0], [1], [0, 0, 1, 1], [], []>} : vector<8x512xbf16>, vector<512x512xbf16>, vector<8x512xf32> -> vector<8x512xf32>
    %16 = vector.broadcast %1 : vector<1x512xf32> to vector<8x512xf32>
    %17 = arith.addf %15, %16 : vector<8x512xf32>
    %18 = arith.truncf %17 : vector<8x512xf32> to vector<8x512xbf16>
    %c0_13 = arith.constant 0 : index
    %c0_14 = arith.constant 0 : index
    %19 = vector.load %arg5[%c0_13, %c0_14] : memref<512x256xbf16, #tpu.memory_space<vmem>>, vector<512x256xbf16>
    %cst_15 = arith.constant dense<0.000000e+00> : vector<8x256xf32>
    %20 = tpu.matmul %18, %19, %cst_15 {dimension_numbers = #tpu.dot_dimension_numbers<[1], [0], [0], [1], [0, 0, 1, 1], [], []>} : vector<8x512xbf16>, vector<512x256xbf16>, vector<8x256xf32> -> vector<8x256xf32>
    %21 = vector.broadcast %2 : vector<1x256xf32> to vector<8x256xf32>
    %22 = arith.addf %20, %21 : vector<8x256xf32>
    %23 = vector.extract_strided_slice %22 {offsets = [0, 0], sizes = [8, 128], strides = [1, 1]} : vector<8x256xf32> to vector<8x128xf32>
    %24 = vector.extract_strided_slice %22 {offsets = [0, 128], sizes = [8, 128], strides = [1, 1]} : vector<8x256xf32> to vector<8x128xf32>
    %c0_16 = arith.constant 0 : index
    %c0_17 = arith.constant 0 : index
    %25 = vector.load %arg2[%c0_16, %c0_17] : memref<8x128xf32, #tpu.memory_space<vmem>>, vector<8x128xf32>
    %cst_18 = arith.constant 5.000000e-01 : f32
    %26 = vector.broadcast %cst_18 : f32 to vector<8x128xf32>
    %27 = arith.mulf %24, %26 : vector<8x128xf32>
    %28 = math.exp %27 : vector<8x128xf32>
    %29 = arith.mulf %25, %28 : vector<8x128xf32>
    %30 = arith.addf %23, %29 : vector<8x128xf32>
    %31 = arith.truncf %30 : vector<8x128xf32> to vector<8x128xbf16>
    %c0_19 = arith.constant 0 : index
    %c0_20 = arith.constant 0 : index
    %32 = vector.load %arg6[%c0_19, %c0_20] : memref<128x512xbf16, #tpu.memory_space<vmem>>, vector<128x512xbf16>
    %cst_21 = arith.constant dense<0.000000e+00> : vector<8x512xf32>
    %33 = tpu.matmul %31, %32, %cst_21 {dimension_numbers = #tpu.dot_dimension_numbers<[1], [0], [0], [1], [0, 0, 1, 1], [], []>} : vector<8x128xbf16>, vector<128x512xbf16>, vector<8x512xf32> -> vector<8x512xf32>
    %34 = vector.broadcast %3 : vector<1x512xf32> to vector<8x512xf32>
    %35 = arith.addf %33, %34 : vector<8x512xf32>
    %cst_22 = arith.constant 0.000000e+00 : f32
    %36 = vector.broadcast %cst_22 : f32 to vector<8x512xf32>
    %37 = arith.maximumf %35, %36 : vector<8x512xf32>
    %38 = arith.truncf %37 : vector<8x512xf32> to vector<8x512xbf16>
    %c0_23 = arith.constant 0 : index
    %c0_24 = arith.constant 0 : index
    %39 = vector.load %arg7[%c0_23, %c0_24] : memref<512x896xbf16, #tpu.memory_space<vmem>>, vector<512x896xbf16>
    %cst_25 = arith.constant dense<0.000000e+00> : vector<8x896xf32>
    %40 = tpu.matmul %38, %39, %cst_25 {dimension_numbers = #tpu.dot_dimension_numbers<[1], [0], [0], [1], [0, 0, 1, 1], [], []>} : vector<8x512xbf16>, vector<512x896xbf16>, vector<8x896xf32> -> vector<8x896xf32>
    %41 = vector.broadcast %4 : vector<1x896xf32> to vector<8x896xf32>
    %42 = arith.addf %40, %41 : vector<8x896xf32>
    %43 = arith.negf %42 : vector<8x896xf32>
    %44 = math.exp %43 : vector<8x896xf32>
    %cst_26 = arith.constant 1.000000e+00 : f32
    %45 = vector.broadcast %cst_26 : f32 to vector<8x896xf32>
    %46 = arith.addf %45, %44 : vector<8x896xf32>
    %47 = arith.divf %45, %46 : vector<8x896xf32>
    %c0_27 = arith.constant 0 : index
    %c0_28 = arith.constant 0 : index
    %48 = vector.load %arg9[%c0_27, %c0_28] : memref<8x128xf32, #tpu.memory_space<vmem>>, vector<8x128xf32>
    tpu.vector_store %arg9[%c0_27, %c0_28], %24 {strides = array<i32>} : memref<8x128xf32, #tpu.memory_space<vmem>>, vector<8x128xf32>,
    %c0_29 = arith.constant 0 : index
    %c0_30 = arith.constant 0 : index
    %49 = vector.load %arg10[%c0_29, %c0_30] : memref<8x128xf32, #tpu.memory_space<vmem>>, vector<8x128xf32>
    tpu.vector_store %arg10[%c0_29, %c0_30], %23 {strides = array<i32>} : memref<8x128xf32, #tpu.memory_space<vmem>>, vector<8x128xf32>,
    %c0_31 = arith.constant 0 : index
    %c0_32 = arith.constant 0 : index
    %50 = vector.load %arg11[%c0_31, %c0_32] : memref<8x896xf32, #tpu.memory_space<vmem>>, vector<8x896xf32>
    tpu.vector_store %arg11[%c0_31, %c0_32], %47 {strides = array<i32>} : memref<8x896xf32, #tpu.memory_space<vmem>>, vector<8x896xf32>,
    return
  }
  func.func @transform_0(%arg0: i32) -> (i32, i32) {
    %c0_i32 = arith.constant 0 : i32
    %c0_i32_0 = arith.constant 0 : i32
    return %arg0, %c0_i32 : i32, i32
  }
  func.func @transform_1(%arg0: i32) -> (i32, i32) {
    %c0_i32 = arith.constant 0 : i32
    %c0_i32_0 = arith.constant 0 : i32
    return %arg0, %c0_i32 : i32, i32
  }
  func.func @transform_2(%arg0: i32) -> (i32, i32) {
    %c0_i32 = arith.constant 0 : i32
    %c0_i32_0 = arith.constant 0 : i32
    %c0_i32_1 = arith.constant 0 : i32
    return %c0_i32, %c0_i32_0 : i32, i32
  }
  func.func @transform_3(%arg0: i32) -> (i32, i32) {
    %c0_i32 = arith.constant 0 : i32
    %c0_i32_0 = arith.constant 0 : i32
    %c0_i32_1 = arith.constant 0 : i32
    return %c0_i32, %c0_i32_0 : i32, i32
  }
  func.func @transform_4(%arg0: i32) -> (i32, i32) {
    %c0_i32 = arith.constant 0 : i32
    %c0_i32_0 = arith.constant 0 : i32
    %c0_i32_1 = arith.constant 0 : i32
    return %c0_i32, %c0_i32_0 : i32, i32
  }
  func.func @transform_5(%arg0: i32) -> (i32, i32) {
    %c0_i32 = arith.constant 0 : i32
    %c0_i32_0 = arith.constant 0 : i32
    %c0_i32_1 = arith.constant 0 : i32
    return %c0_i32, %c0_i32_0 : i32, i32
  }
  func.func @transform_6(%arg0: i32) -> (i32, i32) {
    %c0_i32 = arith.constant 0 : i32
    %c0_i32_0 = arith.constant 0 : i32
    %c0_i32_1 = arith.constant 0 : i32
    return %c0_i32, %c0_i32_0 : i32, i32
  }
  func.func @transform_7(%arg0: i32) -> (i32, i32) {
    %c0_i32 = arith.constant 0 : i32
    %c0_i32_0 = arith.constant 0 : i32
    %c0_i32_1 = arith.constant 0 : i32
    return %c0_i32, %c0_i32_0 : i32, i32
  }
  func.func @transform_8(%arg0: i32) -> (i32, i32) {
    %c0_i32 = arith.constant 0 : i32
    %c0_i32_0 = arith.constant 0 : i32
    return %arg0, %c0_i32 : i32, i32
  }
  func.func @transform_9(%arg0: i32) -> (i32, i32) {
    %c0_i32 = arith.constant 0 : i32
    %c0_i32_0 = arith.constant 0 : i32
    return %arg0, %c0_i32 : i32, i32
  }
  func.func @transform_10(%arg0: i32) -> (i32, i32) {
    %c0_i32 = arith.constant 0 : i32
    %c0_i32_0 = arith.constant 0 : i32
    return %arg0, %c0_i32 : i32, i32
  }
}

</mosaic_0001>

<llo_original>
// kernel: tpu_custom_call.1
$region0: #{tpu_custom_call.1}
  #allocation0 [shape = 'u32[]', space=smem, size = 0x4, offset = 0x4, fixed_abs, tag = 'smem constant byte address 0x4 - core index']
  #allocation1 [shape = 'u32[144,128]{1,0:T(1,128)}', space=vmem, size = 0x12000, scoped, tag = 'internal scratch']
  %s0 = inlined_call_operand.hbm [shape: f32[8,896], index: 0, kind: input, shape index: {}]
  %s1 = inlined_call_operand.hbm [shape: f32[8,128], index: 1, kind: input, shape index: {}]
  %s2 = inlined_call_operand.hbm [shape: bf16[896,512], index: 2, kind: input, shape index: {}]
  %s3 = inlined_call_operand.hbm [shape: bf16[512,512], index: 3, kind: input, shape index: {}]
  %s4 = inlined_call_operand.hbm [shape: bf16[512,256], index: 4, kind: input, shape index: {}]
  %s5 = inlined_call_operand.hbm [shape: bf16[128,512], index: 5, kind: input, shape index: {}]
  %s6 = inlined_call_operand.hbm [shape: bf16[512,896], index: 6, kind: input, shape index: {}]
  %s7 = inlined_call_operand.hbm [shape: f32[8,896], index: 7, kind: input, shape index: {}]
  %s8 = inlined_call_operand.hbm [shape: f32[8,128], index: 8, kind: output, shape index: {0}]
  %s9 = inlined_call_operand.hbm [shape: f32[8,128], index: 9, kind: output, shape index: {1}]
  %s10 = inlined_call_operand.hbm [shape: f32[8,896], index: 10, kind: output, shape index: {2}]
  %11 = xla_tuple %s8, %s9, %s10
  %s12 = sld [smem:[#allocation0]]
  $region90: #{tpu_custom_call.1} parent=0
    _
  %s14 = ssub.s32 1, %s12
  %s15 = scalar_select 0, %s14, %s12
  $region1: #{tpu_custom_call.1} parent=0
    #allocation2 [shape = 'u8[28672]{0}', space=vmem, size = 0x7000, scoped, tag = 'input window, operand 0, single buffered']
    #allocation3 [shape = 's32[1]{0}', space=sflag, size = 0x4, scoped, tag = 'scoped memory for tpu_custom_call.1']
    #allocation4 [shape = 's32[1]{0}', space=sflag, size = 0x4, scoped, tag = 'scoped memory for tpu_custom_call.1']
    #allocation5 [shape = 'u8[4096]{0}', space=vmem, size = 0x1000, scoped, tag = 'input window, operand 1, single buffered']
    #allocation6 [shape = 's32[1]{0}', space=sflag, size = 0x4, scoped, tag = 'scoped memory for tpu_custom_call.1']
    #allocation7 [shape = 'u8[917504]{0}', space=vmem, size = 0xe0000, scoped, tag = 'input window, operand 2, single buffered']
    #allocation8 [shape = 'u8[524288]{0}', space=vmem, size = 0x80000, scoped, tag = 'input window, operand 3, single buffered']
    #allocation9 [shape = 's32[1]{0}', space=sflag, size = 0x4, scoped, tag = 'scoped memory for tpu_custom_call.1']
    #allocation10 [shape = 'u8[262144]{0}', space=vmem, size = 0x40000, scoped, tag = 'input window, operand 4, single buffered']
    #allocation11 [shape = 'u8[131072]{0}', space=vmem, size = 0x20000, scoped, tag = 'input window, operand 5, single buffered']
    #allocation12 [shape = 's32[1]{0}', space=sflag, size = 0x4, scoped, tag = 'scoped memory for tpu_custom_call.1']
    #allocation13 [shape = 'u8[917504]{0}', space=vmem, size = 0xe0000, scoped, tag = 'input window, operand 6, single buffered']
    #allocation14 [shape = 'u8[28672]{0}', space=vmem, size = 0x7000, scoped, tag = 'input window, operand 7, single buffered']
    #allocation15 [shape = 's32[1]{0}', space=sflag, size = 0x4, scoped, tag = 'scoped memory for tpu_custom_call.1']
    #allocation16 [shape = 'u8[4096]{0}', space=vmem, size = 0x1000, scoped, tag = 'output window, operand 0, single buffered']
    #allocation17 [shape = 'u8[4096]{0}', space=vmem, size = 0x1000, scoped, tag = 'output window, operand 1, single buffered']
    #allocation18 [shape = 's32[1]{0}', space=sflag, size = 0x4, scoped, tag = 'scoped memory for tpu_custom_call.1']
    #allocation19 [shape = 'u8[28672]{0}', space=vmem, size = 0x7000, scoped, tag = 'output window, operand 2, single buffered']
    %16 = vsyncpa [#allocation3], 0
    %17 = vsyncpa [#allocation6], 0
    %18 = vsyncpa [#allocation9], 0
    %19 = vsyncpa [#allocation12], 0
    %20 = vsyncpa [#allocation15], 0
    %21 = vsyncpa [#allocation4], 0
    %22 = vsyncpa [#allocation18], 0
    // Predicated region
    $region2: #{tpu_custom_call.1} parent=1 // pred_check
      _
    $region3: #{tpu_custom_call.1} parent=1 // pred_check_branch
      %24 = sbr.rel (0) target = $region5
    $region4: #{tpu_custom_call.1} parent=1 // pred_region
      %s26 = ssub.s32 896, 896
      %27 = vsyncadd [#allocation3], %s26
      %s29 = sshll.u32 [#allocation2], 4
      %s30 = int_to_ptr.vmem [resolvable:$true] %s29
      %32 = dma.hbm_to_vmem [thread:$0]  %s0, 896, %s30, [#allocation3]
    $region5: #{tpu_custom_call.1} parent=1 // pred_fallthru
      _
    // Predicated region
    $region6: #{tpu_custom_call.1} parent=1 // pred_check
      _
    $region7: #{tpu_custom_call.1} parent=1 // pred_check_branch
      %34 = sbr.rel (0) target = $region9
    $region8: #{tpu_custom_call.1} parent=1 // pred_region
      %s36 = ssub.s32 128, 128
      %37 = vsyncadd [#allocation6], %s36
      %s39 = sshll.u32 [#allocation5], 4
      %s40 = int_to_ptr.vmem [resolvable:$true] %s39
      %42 = dma.hbm_to_vmem [thread:$0]  %s1, 128, %s40, [#allocation6]
    $region9: #{tpu_custom_call.1} parent=1 // pred_fallthru
      _
    // Predicated region
    $region10: #{tpu_custom_call.1} parent=1 // pred_check
      _
    $region11: #{tpu_custom_call.1} parent=1 // pred_check_branch
      %44 = sbr.rel (0) target = $region13
    $region12: #{tpu_custom_call.1} parent=1 // pred_region
      %s46 = ssub.s32 28672, 28672
      %47 = vsyncadd [#allocation6], %s46
      %s48 = sshll.u32 [#allocation7], 4
      %s49 = int_to_ptr.vmem [resolvable:$true] %s48
      %54 = dma.hbm_to_vmem [thread:$0]  %s2, 28672, %s49, [#allocation6], 256, 256, 16
    $region13: #{tpu_custom_call.1} parent=1 // pred_fallthru
      _
    // Predicated region
    $region14: #{tpu_custom_call.1} parent=1 // pred_check
      _
    $region15: #{tpu_custom_call.1} parent=1 // pred_check_branch
      %56 = sbr.rel (0) target = $region17
    $region16: #{tpu_custom_call.1} parent=1 // pred_region
      %s58 = ssub.s32 16384, 16384
      %59 = vsyncadd [#allocation9], %s58
      %s60 = sshll.u32 [#allocation8], 4
      %s61 = int_to_ptr.vmem [resolvable:$true] %s60
      %66 = dma.hbm_to_vmem [thread:$0]  %s3, 16384, %s61, [#allocation9], 256, 256, 16
    $region17: #{tpu_custom_call.1} parent=1 // pred_fallthru
      _
    // Predicated region
    $region18: #{tpu_custom_call.1} parent=1 // pred_check
      _
    $region19: #{tpu_custom_call.1} parent=1 // pred_check_branch
      %68 = sbr.rel (0) target = $region21
    $region20: #{tpu_custom_call.1} parent=1 // pred_region
      %s70 = ssub.s32 8192, 8192
      %71 = vsyncadd [#allocation9], %s70
      %s72 = sshll.u32 [#allocation10], 4
      %s73 = int_to_ptr.vmem [resolvable:$true] %s72
      %78 = dma.hbm_to_vmem [thread:$0]  %s4, 8192, %s73, [#allocation9], 128, 128, 8
    $region21: #{tpu_custom_call.1} parent=1 // pred_fallthru
      _
    // Predicated region
    $region22: #{tpu_custom_call.1} parent=1 // pred_check
      _
    $region23: #{tpu_custom_call.1} parent=1 // pred_check_branch
      %80 = sbr.rel (0) target = $region25
    $region24: #{tpu_custom_call.1} parent=1 // pred_region
      %s82 = ssub.s32 4096, 4096
      %83 = vsyncadd [#allocation12], %s82
      %s84 = sshll.u32 [#allocation11], 4
      %s85 = int_to_ptr.vmem [resolvable:$true] %s84
      %90 = dma.hbm_to_vmem [thread:$0]  %s5, 4096, %s85, [#allocation12], 256, 256, 16
    $region25: #{tpu_custom_call.1} parent=1 // pred_fallthru
      _
    // Predicated region
    $region26: #{tpu_custom_call.1} parent=1 // pred_check
      _
    $region27: #{tpu_custom_call.1} parent=1 // pred_check_branch
      %92 = sbr.rel (0) target = $region29
    $region28: #{tpu_custom_call.1} parent=1 // pred_region
      %s94 = ssub.s32 28672, 28672
      %95 = vsyncadd [#allocation12], %s94
      %s96 = sshll.u32 [#allocation13], 4
      %s97 = int_to_ptr.vmem [resolvable:$true] %s96
      %102 = dma.hbm_to_vmem [thread:$0]  %s6, 28672, %s97, [#allocation12], 448, 448, 28
    $region29: #{tpu_custom_call.1} parent=1 // pred_fallthru
      _
    // Predicated region
    $region30: #{tpu_custom_call.1} parent=1 // pred_check
      _
    $region31: #{tpu_custom_call.1} parent=1 // pred_check_branch
      %104 = sbr.rel (0) target = $region33
    $region32: #{tpu_custom_call.1} parent=1 // pred_region
      %s106 = ssub.s32 896, 896
      %107 = vsyncadd [#allocation15], %s106
      %s109 = sshll.u32 [#allocation14], 4
      %s110 = int_to_ptr.vmem [resolvable:$true] %s109
      %112 = dma.hbm_to_vmem [thread:$0]  %s7, 896, %s110, [#allocation15]
    $region33: #{tpu_custom_call.1} parent=1 // pred_fallthru
      _
    // Predicated region
    $region34: #{tpu_custom_call.1} parent=1 // pred_check
      _
    $region35: #{tpu_custom_call.1} parent=1 // pred_check_branch
      %114 = sbr.rel (0) target = $region37
    $region36: #{tpu_custom_call.1} parent=1 // pred_region
      %115 = dma.done [#allocation3], 896
    $region37: #{tpu_custom_call.1} parent=1 // pred_fallthru
      _
    // Predicated region
    $region38: #{tpu_custom_call.1} parent=1 // pred_check
      _
    $region39: #{tpu_custom_call.1} parent=1 // pred_check_branch
      %117 = sbr.rel (0) target = $region41
    $region40: #{tpu_custom_call.1} parent=1 // pred_region
      %118 = dma.done [#allocation6], 128
    $region41: #{tpu_custom_call.1} parent=1 // pred_fallthru
      _
    // Predicated region
    $region42: #{tpu_custom_call.1} parent=1 // pred_check
      _
    $region43: #{tpu_custom_call.1} parent=1 // pred_check_branch
      %120 = sbr.rel (0) target = $region45
    $region44: #{tpu_custom_call.1} parent=1 // pred_region
      %121 = dma.done [#allocation6], 28672
    $region45: #{tpu_custom_call.1} parent=1 // pred_fallthru
      _
    // Predicated region
    $region46: #{tpu_custom_call.1} parent=1 // pred_check
      _
    $region47: #{tpu_custom_call.1} parent=1 // pred_check_branch
      %123 = sbr.rel (0) target = $region49
    $region48: #{tpu_custom_call.1} parent=1 // pred_region
      %124 = dma.done [#allocation9], 16384
    $region49: #{tpu_custom_call.1} parent=1 // pred_fallthru
      _
    // Predicated region
    $region50: #{tpu_custom_call.1} parent=1 // pred_check
      _
    $region51: #{tpu_custom_call.1} parent=1 // pred_check_branch
      %126 = sbr.rel (0) target = $region53
    $region52: #{tpu_custom_call.1} parent=1 // pred_region
      %127 = dma.done [#allocation9], 8192
    $region53: #{tpu_custom_call.1} parent=1 // pred_fallthru
      _
    // Predicated region
    $region54: #{tpu_custom_call.1} parent=1 // pred_check
      _
    $region55: #{tpu_custom_call.1} parent=1 // pred_check_branch
      %129 = sbr.rel (0) target = $region57
    $region56: #{tpu_custom_call.1} parent=1 // pred_region
      %130 = dma.done [#allocation12], 4096
    $region57: #{tpu_custom_call.1} parent=1 // pred_fallthru
      _
    // Predicated region
    $region58: #{tpu_custom_call.1} parent=1 // pred_check
      _
    $region59: #{tpu_custom_call.1} parent=1 // pred_check_branch
      %132 = sbr.rel (0) target = $region61
    $region60: #{tpu_custom_call.1} parent=1 // pred_region
      %133 = dma.done [#allocation12], 28672
    $region61: #{tpu_custom_call.1} parent=1 // pred_fallthru
      _
    // Predicated region
    $region62: #{tpu_custom_call.1} parent=1 // pred_check
      _
    $region63: #{tpu_custom_call.1} parent=1 // pred_check_branch
      %135 = sbr.rel (0) target = $region65
    $region64: #{tpu_custom_call.1} parent=1 // pred_region
      %136 = dma.done [#allocation15], 896
    $region65: #{tpu_custom_call.1} parent=1 // pred_fallthru
      _
    %v138 = vld [vmem:[#allocation14] ss:$8 sm:$0xf]
    %s139 = scalar_lea.vmem [#allocation14], 1
    %v140 = vld [vmem:[%s139] ss:$8 sm:$0xf]
    %s141 = scalar_lea.vmem [#allocation14], 2
    %v142 = vld [vmem:[%s141] ss:$8 sm:$0x3]
    %s143 = scalar_lea.vmem [#allocation14], 3
    %v144 = vld [vmem:[%s143] ss:$8 sm:$0xf]
    %s145 = scalar_lea.vmem [#allocation14], 4
    %v146 = vld [vmem:[%s145] ss:$8 sm:$0xf]
    %v147 = vld [vmem:[%s145] ss:$8 sm:$0xf0]
    %v148 = vor.u32 %v146, %v147
    %v149 = vld [vmem:[#allocation2] sm:$0xff]
    %v150 = vld [vmem:[#allocation2 + $0x8] sm:$0xff]
    %v151 = vld [vmem:[#allocation2 + $0x10] sm:$0xff]
    %v152 = vld [vmem:[#allocation2 + $0x18] sm:$0xff]
    %v153 = vld [vmem:[#allocation2 + $0x20] sm:$0xff]
    %v154 = vld [vmem:[#allocation2 + $0x28] sm:$0xff]
    %v155 = vld [vmem:[#allocation2 + $0x30] sm:$0xff]
    %v156 = vpack.c.bf16 %v149, %v149
    %v157 = vpack.c.bf16 %v150, %v150
    %v158 = vpack.c.bf16 %v151, %v151
    %v159 = vpack.c.bf16 %v152, %v152
    %v160 = vpack.c.bf16 %v153, %v153
    %v161 = vpack.c.bf16 %v154, %v154
    %v162 = vpack.c.bf16 %v155, %v155
    %v163 = vld [vmem:[#allocation7] sm:$0xff]
    %v164 = vld [vmem:[#allocation7 + $0x8] sm:$0xff]
    %v165 = vld [vmem:[#allocation7 + $0x10] sm:$0xff]
    %v166 = vld [vmem:[#allocation7 + $0x18] sm:$0xff]
    %v167 = vld [vmem:[#allocation7 + $0x20] sm:$0xff]
    %v168 = vld [vmem:[#allocation7 + $0x28] sm:$0xff]
    %v169 = vld [vmem:[#allocation7 + $0x30] sm:$0xff]
    %v170 = vld [vmem:[#allocation7 + $0x38] sm:$0xff]
    %v171 = vld [vmem:[#allocation7 + $0x40] sm:$0xff]
    %v172 = vld [vmem:[#allocation7 + $0x48] sm:$0xff]
    %v173 = vld [vmem:[#allocation7 + $0x50] sm:$0xff]
    %v174 = vld [vmem:[#allocation7 + $0x58] sm:$0xff]
    %v175 = vld [vmem:[#allocation7 + $0x60] sm:$0xff]
    %v176 = vld [vmem:[#allocation7 + $0x68] sm:$0xff]
    %v177 = vld [vmem:[#allocation7 + $0x70] sm:$0xff]
    %v178 = vld [vmem:[#allocation7 + $0x78] sm:$0xff]
    %v179 = vld [vmem:[#allocation7 + $0x80] sm:$0xff]
    %v180 = vld [vmem:[#allocation7 + $0x88] sm:$0xff]
    %v181 = vld [vmem:[#allocation7 + $0x90] sm:$0xff]
    %v182 = vld [vmem:[#allocation7 + $0x98] sm:$0xff]
    %v183 = vld [vmem:[#allocation7 + $0xa0] sm:$0xff]
    %v184 = vld [vmem:[#allocation7 + $0xa8] sm:$0xff]
    %v185 = vld [vmem:[#allocation7 + $0xb0] sm:$0xff]
    %v186 = vld [vmem:[#allocation7 + $0xb8] sm:$0xff]
    %v187 = vld [vmem:[#allocation7 + $0xc0] sm:$0xff]
    %v188 = vld [vmem:[#allocation7 + $0xc8] sm:$0xff]
    %v189 = vld [vmem:[#allocation7 + $0xd0] sm:$0xff]
    %v190 = vld [vmem:[#allocation7 + $0xd8] sm:$0xff]
    %v191 = vld [vmem:[#allocation7 + $0xe0] sm:$0xff]
    %v192 = vld [vmem:[#allocation7 + $0xe8] sm:$0xff]
    %v193 = vld [vmem:[#allocation7 + $0xf0] sm:$0xff]
    %v194 = vld [vmem:[#allocation7 + $0xf8] sm:$0xff]
    %v195 = vld [vmem:[#allocation7 + $0x100] sm:$0xff]
    %v196 = vld [vmem:[#allocation7 + $0x108] sm:$0xff]
    %v197 = vld [vmem:[#allocation7 + $0x110] sm:$0xff]
    %v198 = vld [vmem:[#allocation7 + $0x118] sm:$0xff]
    %v199 = vld [vmem:[#allocation7 + $0x120] sm:$0xff]
    %v200 = vld [vmem:[#allocation7 + $0x128] sm:$0xff]
    %v201 = vld [vmem:[#allocation7 + $0x130] sm:$0xff]
    %v202 = vld [vmem:[#allocation7 + $0x138] sm:$0xff]
    %v203 = vld [vmem:[#allocation7 + $0x140] sm:$0xff]
    %v204 = vld [vmem:[#allocation7 + $0x148] sm:$0xff]
    %v205 = vld [vmem:[#allocation7 + $0x150] sm:$0xff]
    %v206 = vld [vmem:[#allocation7 + $0x158] sm:$0xff]
    %v207 = vld [vmem:[#allocation7 + $0x160] sm:$0xff]
    %v208 = vld [vmem:[#allocation7 + $0x168] sm:$0xff]
    %v209 = vld [vmem:[#allocation7 + $0x170] sm:$0xff]
    %v210 = vld [vmem:[#allocation7 + $0x178] sm:$0xff]
    %v211 = vld [vmem:[#allocation7 + $0x180] sm:$0xff]
    %v212 = vld [vmem:[#allocation7 + $0x188] sm:$0xff]
    %v213 = vld [vmem:[#allocation7 + $0x190] sm:$0xff]
    %v214 = vld [vmem:[#allocation7 + $0x198] sm:$0xff]
    %v215 = vld [vmem:[#allocation7 + $0x1a0] sm:$0xff]
    %v216 = vld [vmem:[#allocation7 + $0x1a8] sm:$0xff]
    %v217 = vld [vmem:[#allocation7 + $0x1b0] sm:$0xff]
    %v218 = vld [vmem:[#allocation7 + $0x1b8] sm:$0xff]
    %v219 = vld [vmem:[#allocation7 + $0x1c0] sm:$0xff]
    %v220 = vld [vmem:[#allocation7 + $0x1c8] sm:$0xff]
    %v221 = vld [vmem:[#allocation7 + $0x1d0] sm:$0xff]
    %v222 = vld [vmem:[#allocation7 + $0x1d8] sm:$0xff]
    %v223 = vld [vmem:[#allocation7 + $0x1e0] sm:$0xff]
    %v224 = vld [vmem:[#allocation7 + $0x1e8] sm:$0xff]
    %v225 = vld [vmem:[#allocation7 + $0x1f0] sm:$0xff]
    %v226 = vld [vmem:[#allocation7 + $0x1f8] sm:$0xff]
    %v227 = vld [vmem:[#allocation7 + $0x200] sm:$0xff]
    %v228 = vld [vmem:[#allocation7 + $0x208] sm:$0xff]
    %v229 = vld [vmem:[#allocation7 + $0x210] sm:$0xff]
    %v230 = vld [vmem:[#allocation7 + $0x218] sm:$0xff]
    %v231 = vld [vmem:[#allocation7 + $0x220] sm:$0xff]
    %v232 = vld [vmem:[#allocation7 + $0x228] sm:$0xff]
    %v233 = vld [vmem:[#allocation7 + $0x230] sm:$0xff]
    %v234 = vld [vmem:[#allocation7 + $0x238] sm:$0xff]
    %v235 = vld [vmem:[#allocation7 + $0x240] sm:$0xff]
    %v236 = vld [vmem:[#allocation7 + $0x248] sm:$0xff]
    %v237 = vld [vmem:[#allocation7 + $0x250] sm:$0xff]
    %v238 = vld [vmem:[#allocation7 + $0x258] sm:$0xff]
    %v239 = vld [vmem:[#allocation7 + $0x260] sm:$0xff]
    %v240 = vld [vmem:[#allocation7 + $0x268] sm:$0xff]
    %v241 = vld [vmem:[#allocation7 + $0x270] sm:$0xff]
    %v242 = vld [vmem:[#allocation7 + $0x278] sm:$0xff]
    %v243 = vld [vmem:[#allocation7 + $0x280] sm:$0xff]
    %v244 = vld [vmem:[#allocation7 + $0x288] sm:$0xff]
    %v245 = vld [vmem:[#allocation7 + $0x290] sm:$0xff]
    %v246 = vld [vmem:[#allocation7 + $0x298] sm:$0xff]
    %v247 = vld [vmem:[#allocation7 + $0x2a0] sm:$0xff]
    %v248 = vld [vmem:[#allocation7 + $0x2a8] sm:$0xff]
    %v249 = vld [vmem:[#allocation7 + $0x2b0] sm:$0xff]
    %v250 = vld [vmem:[#allocation7 + $0x2b8] sm:$0xff]
    %v251 = vld [vmem:[#allocation7 + $0x2c0] sm:$0xff]
    %v252 = vld [vmem:[#allocation7 + $0x2c8] sm:$0xff]
    %v253 = vld [vmem:[#allocation7 + $0x2d0] sm:$0xff]
    %v254 = vld [vmem:[#allocation7 + $0x2d8] sm:$0xff]
    %v255 = vld [vmem:[#allocation7 + $0x2e0] sm:$0xff]
    %v256 = vld [vmem:[#allocation7 + $0x2e8] sm:$0xff]
    %v257 = vld [vmem:[#allocation7 + $0x2f0] sm:$0xff]
    %v258 = vld [vmem:[#allocation7 + $0x2f8] sm:$0xff]
    %v259 = vld [vmem:[#allocation7 + $0x300] sm:$0xff]
    %v260 = vld [vmem:[#allocation7 + $0x308] sm:$0xff]
    %v261 = vld [vmem:[#allocation7 + $0x310] sm:$0xff]
    %v262 = vld [vmem:[#allocation7 + $0x318] sm:$0xff]
    %v263 = vld [vmem:[#allocation7 + $0x320] sm:$0xff]
    %v264 = vld [vmem:[#allocation7 + $0x328] sm:$0xff]
    %v265 = vld [vmem:[#allocation7 + $0x330] sm:$0xff]
    %v266 = vld [vmem:[#allocation7 + $0x338] sm:$0xff]
    %v267 = vld [vmem:[#allocation7 + $0x340] sm:$0xff]
    %v268 = vld [vmem:[#allocation7 + $0x348] sm:$0xff]
    %v269 = vld [vmem:[#allocation7 + $0x350] sm:$0xff]
    %v270 = vld [vmem:[#allocation7 + $0x358] sm:$0xff]
    %v271 = vld [vmem:[#allocation7 + $0x360] sm:$0xff]
    %v272 = vld [vmem:[#allocation7 + $0x368] sm:$0xff]
    %v273 = vld [vmem:[#allocation7 + $0x370] sm:$0xff]
    %v274 = vld [vmem:[#allocation7 + $0x378] sm:$0xff]
    %v275 = vld [vmem:[#allocation7 + $0x380] sm:$0xff]
    %v276 = vld [vmem:[#allocation7 + $0x388] sm:$0xff]
    %v277 = vld [vmem:[#allocation7 + $0x390] sm:$0xff]
    %v278 = vld [vmem:[#allocation7 + $0x398] sm:$0xff]
    %v279 = vld [vmem:[#allocation7 + $0x3a0] sm:$0xff]
    %v280 = vld [vmem:[#allocation7 + $0x3a8] sm:$0xff]
    %v281 = vld [vmem:[#allocation7 + $0x3b0] sm:$0xff]
    %v282 = vld [vmem:[#allocation7 + $0x3b8] sm:$0xff]
    %v283 = vld [vmem:[#allocation7 + $0x3c0] sm:$0xff]
    %v284 = vld [vmem:[#allocation7 + $0x3c8] sm:$0xff]
    %v285 = vld [vmem:[#allocation7 + $0x3d0] sm:$0xff]
    %v286 = vld [vmem:[#allocation7 + $0x3d8] sm:$0xff]
    %v287 = vld [vmem:[#allocation7 + $0x3e0] sm:$0xff]
    %v288 = vld [vmem:[#allocation7 + $0x3e8] sm:$0xff]
    %v289 = vld [vmem:[#allocation7 + $0x3f0] sm:$0xff]
    %v290 = vld [vmem:[#allocation7 + $0x3f8] sm:$0xff]
    %v291 = vld [vmem:[#allocation7 + $0x400] sm:$0xff]
    %v292 = vld [vmem:[#allocation7 + $0x408] sm:$0xff]
    %v293 = vld [vmem:[#allocation7 + $0x410] sm:$0xff]
    %v294 = vld [vmem:[#allocation7 + $0x418] sm:$0xff]
    %v295 = vld [vmem:[#allocation7 + $0x420] sm:$0xff]
    %v296 = vld [vmem:[#allocation7 + $0x428] sm:$0xff]
    %v297 = vld [vmem:[#allocation7 + $0x430] sm:$0xff]
    %v298 = vld [vmem:[#allocation7 + $0x438] sm:$0xff]
    %v299 = vld [vmem:[#allocation7 + $0x440] sm:$0xff]
    %v300 = vld [vmem:[#allocation7 + $0x448] sm:$0xff]
    %v301 = vld [vmem:[#allocation7 + $0x450] sm:$0xff]
    %v302 = vld [vmem:[#allocation7 + $0x458] sm:$0xff]
    %v303 = vld [vmem:[#allocation7 + $0x460] sm:$0xff]
    %v304 = vld [vmem:[#allocation7 + $0x468] sm:$0xff]
    %v305 = vld [vmem:[#allocation7 + $0x470] sm:$0xff]
    %v306 = vld [vmem:[#allocation7 + $0x478] sm:$0xff]
    %v307 = vld [vmem:[#allocation7 + $0x480] sm:$0xff]
    %v308 = vld [vmem:[#allocation7 + $0x488] sm:$0xff]
    %v309 = vld [vmem:[#allocation7 + $0x490] sm:$0xff]
    %v310 = vld [vmem:[#allocation7 + $0x498] sm:$0xff]
    %v311 = vld [vmem:[#allocation7 + $0x4a0] sm:$0xff]
    %v312 = vld [vmem:[#allocation7 + $0x4a8] sm:$0xff]
    %v313 = vld [vmem:[#allocation7 + $0x4b0] sm:$0xff]
    %v314 = vld [vmem:[#allocation7 + $0x4b8] sm:$0xff]
    %v315 = vld [vmem:[#allocation7 + $0x4c0] sm:$0xff]
    %v316 = vld [vmem:[#allocation7 + $0x4c8] sm:$0xff]
    %v317 = vld [vmem:[#allocation7 + $0x4d0] sm:$0xff]
    %v318 = vld [vmem:[#allocation7 + $0x4d8] sm:$0xff]
    %v319 = vld [vmem:[#allocation7 + $0x4e0] sm:$0xff]
    %v320 = vld [vmem:[#allocation7 + $0x4e8] sm:$0xff]
    %v321 = vld [vmem:[#allocation7 + $0x4f0] sm:$0xff]
    %v322 = vld [vmem:[#allocation7 + $0x4f8] sm:$0xff]
    %v323 = vld [vmem:[#allocation7 + $0x500] sm:$0xff]
    %v324 = vld [vmem:[#allocation7 + $0x508] sm:$0xff]
    %v325 = vld [vmem:[#allocation7 + $0x510] sm:$0xff]
    %v326 = vld [vmem:[#allocation7 + $0x518] sm:$0xff]
    %v327 = vld [vmem:[#allocation7 + $0x520] sm:$0xff]
    %v328 = vld [vmem:[#allocation7 + $0x528] sm:$0xff]
    %v329 = vld [vmem:[#allocation7 + $0x530] sm:$0xff]
    %v330 = vld [vmem:[#allocation7 + $0x538] sm:$0xff]
    %v331 = vld [vmem:[#allocation7 + $0x540] sm:$0xff]
    %v332 = vld [vmem:[#allocation7 + $0x548] sm:$0xff]
    %v333 = vld [vmem:[#allocation7 + $0x550] sm:$0xff]
    %v334 = vld [vmem:[#allocation7 + $0x558] sm:$0xff]
    %v335 = vld [vmem:[#allocation7 + $0x560] sm:$0xff]
    %v336 = vld [vmem:[#allocation7 + $0x568] sm:$0xff]
    %v337 = vld [vmem:[#allocation7 + $0x570] sm:$0xff]
    %v338 = vld [vmem:[#allocation7 + $0x578] sm:$0xff]
    %v339 = vld [vmem:[#allocation7 + $0x580] sm:$0xff]
    %v340 = vld [vmem:[#allocation7 + $0x588] sm:$0xff]
    %v341 = vld [vmem:[#allocation7 + $0x590] sm:$0xff]
    %v342 = vld [vmem:[#allocation7 + $0x598] sm:$0xff]
    %v343 = vld [vmem:[#allocation7 + $0x5a0] sm:$0xff]
    %v344 = vld [vmem:[#allocation7 + $0x5a8] sm:$0xff]
    %v345 = vld [vmem:[#allocation7 + $0x5b0] sm:$0xff]
    %v346 = vld [vmem:[#allocation7 + $0x5b8] sm:$0xff]
    %v347 = vld [vmem:[#allocation7 + $0x5c0] sm:$0xff]
    %v348 = vld [vmem:[#allocation7 + $0x5c8] sm:$0xff]
    %v349 = vld [vmem:[#allocation7 + $0x5d0] sm:$0xff]
    %v350 = vld [vmem:[#allocation7 + $0x5d8] sm:$0xff]
    %v351 = vld [vmem:[#allocation7 + $0x5e0] sm:$0xff]
    %v352 = vld [vmem:[#allocation7 + $0x5e8] sm:$0xff]
    %v353 = vld [vmem:[#allocation7 + $0x5f0] sm:$0xff]
    %v354 = vld [vmem:[#allocation7 + $0x5f8] sm:$0xff]
    %v355 = vld [vmem:[#allocation7 + $0x600] sm:$0xff]
    %v356 = vld [vmem:[#allocation7 + $0x608] sm:$0xff]
    %v357 = vld [vmem:[#allocation7 + $0x610] sm:$0xff]
    %v358 = vld [vmem:[#allocation7 + $0x618] sm:$0xff]
    %v359 = vld [vmem:[#allocation7 + $0x620] sm:$0xff]
    %v360 = vld [vmem:[#allocation7 + $0x628] sm:$0xff]
    %v361 = vld [vmem:[#allocation7 + $0x630] sm:$0xff]
    %v362 = vld [vmem:[#allocation7 + $0x638] sm:$0xff]
    %v363 = vld [vmem:[#allocation7 + $0x640] sm:$0xff]
    %v364 = vld [vmem:[#allocation7 + $0x648] sm:$0xff]
    %v365 = vld [vmem:[#allocation7 + $0x650] sm:$0xff]
    %v366 = vld [vmem:[#allocation7 + $0x658] sm:$0xff]
    %v367 = vld [vmem:[#allocation7 + $0x660] sm:$0xff]
    %v368 = vld [vmem:[#allocation7 + $0x668] sm:$0xff]
    %v369 = vld [vmem:[#allocation7 + $0x670] sm:$0xff]
    %v370 = vld [vmem:[#allocation7 + $0x678] sm:$0xff]
    %v371 = vld [vmem:[#allocation7 + $0x680] sm:$0xff]
    %v372 = vld [vmem:[#allocation7 + $0x688] sm:$0xff]
    %v373 = vld [vmem:[#allocation7 + $0x690] sm:$0xff]
    %v374 = vld [vmem:[#allocation7 + $0x698] sm:$0xff]
    %v375 = vld [vmem:[#allocation7 + $0x6a0] sm:$0xff]
    %v376 = vld [vmem:[#allocation7 + $0x6a8] sm:$0xff]
    %v377 = vld [vmem:[#allocation7 + $0x6b0] sm:$0xff]
    %v378 = vld [vmem:[#allocation7 + $0x6b8] sm:$0xff]
    %v379 = vld [vmem:[#allocation7 + $0x6c0] sm:$0xff]
    %v380 = vld [vmem:[#allocation7 + $0x6c8] sm:$0xff]
    %v381 = vld [vmem:[#allocation7 + $0x6d0] sm:$0xff]
    %v382 = vld [vmem:[#allocation7 + $0x6d8] sm:$0xff]
    %v383 = vld [vmem:[#allocation7 + $0x6e0] sm:$0xff]
    %v384 = vld [vmem:[#allocation7 + $0x6e8] sm:$0xff]
    %v385 = vld [vmem:[#allocation7 + $0x6f0] sm:$0xff]
    %v386 = vld [vmem:[#allocation7 + $0x6f8] sm:$0xff]
    %v388 = vlaneseq
    %v389 = vshrl.u32 %v388, 7
    %v390 = vsub.s32 0, %v389
    %v391 = vrot.slane %v138, %v390
    %v392 = vlaneseq
    %v393 = vshrl.u32 %v392, 7
    %v394 = vsub.s32 1, %v393
    %v395 = vrot.slane %v138, %v394
    %v396 = vlaneseq
    %v397 = vshrl.u32 %v396, 7
    %v398 = vsub.s32 2, %v397
    %v399 = vrot.slane %v138, %v398
    %v400 = vlaneseq
    %v401 = vshrl.u32 %v400, 7
    %v402 = vsub.s32 3, %v401
    %v403 = vrot.slane %v138, %v402
    %v632 = vunpack.c.l.b16 %v163
    %v633 = vunpack.c.h.b16 %v163
    %v634 = vunpack.c.l.b16 %v164
    %v635 = vunpack.c.h.b16 %v164
    %v636 = vunpack.c.l.b16 %v165
    %v637 = vunpack.c.h.b16 %v165
    %v638 = vunpack.c.l.b16 %v166
    %v639 = vunpack.c.h.b16 %v166
    %v640 = vunpack.c.l.b16 %v167
    %v641 = vunpack.c.h.b16 %v167
    %v642 = vunpack.c.l.b16 %v168
    %v643 = vunpack.c.h.b16 %v168
    %v644 = vunpack.c.l.b16 %v169
    %v645 = vunpack.c.h.b16 %v169
    %v646 = vunpack.c.l.b16 %v170
    %v647 = vunpack.c.h.b16 %v170
    %v648 = vunpack.c.l.b16 %v171
    %v649 = vunpack.c.h.b16 %v171
    %v650 = vunpack.c.l.b16 %v172
    %v651 = vunpack.c.h.b16 %v172
    %v652 = vunpack.c.l.b16 %v173
    %v653 = vunpack.c.h.b16 %v173
    %v654 = vunpack.c.l.b16 %v174
    %v655 = vunpack.c.h.b16 %v174
    %v656 = vunpack.c.l.b16 %v175
    %v657 = vunpack.c.h.b16 %v175
    %v658 = vunpack.c.l.b16 %v176
    %v659 = vunpack.c.h.b16 %v176
    %v660 = vunpack.c.l.b16 %v177
    %v661 = vunpack.c.h.b16 %v177
    %v662 = vunpack.c.l.b16 %v178
    %v663 = vunpack.c.h.b16 %v178
    %v664 = vunpack.c.l.b16 %v179
    %v665 = vunpack.c.h.b16 %v179
    %v666 = vunpack.c.l.b16 %v180
    %v667 = vunpack.c.h.b16 %v180
    %v668 = vunpack.c.l.b16 %v181
    %v669 = vunpack.c.h.b16 %v181
    %v670 = vunpack.c.l.b16 %v182
    %v671 = vunpack.c.h.b16 %v182
    %v672 = vunpack.c.l.b16 %v183
    %v673 = vunpack.c.h.b16 %v183
    %v674 = vunpack.c.l.b16 %v184
    %v675 = vunpack.c.h.b16 %v184
    %v676 = vunpack.c.l.b16 %v185
    %v677 = vunpack.c.h.b16 %v185
    %v678 = vunpack.c.l.b16 %v186
    %v679 = vunpack.c.h.b16 %v186
    %v680 = vunpack.c.l.b16 %v187
    %v681 = vunpack.c.h.b16 %v187
    %v682 = vunpack.c.l.b16 %v188
    %v683 = vunpack.c.h.b16 %v188
    %v684 = vunpack.c.l.b16 %v189
    %v685 = vunpack.c.h.b16 %v189
    %v686 = vunpack.c.l.b16 %v190
    %v687 = vunpack.c.h.b16 %v190
    %v688 = vunpack.c.l.b16 %v191
    %v689 = vunpack.c.h.b16 %v191
    %v690 = vunpack.c.l.b16 %v192
    %v691 = vunpack.c.h.b16 %v192
    %v692 = vunpack.c.l.b16 %v193
    %v693 = vunpack.c.h.b16 %v193
    %v694 = vunpack.c.l.b16 %v194
    %v695 = vunpack.c.h.b16 %v194
    %v696 = vunpack.c.l.b16 %v195
    %v697 = vunpack.c.h.b16 %v195
    %v698 = vunpack.c.l.b16 %v196
    %v699 = vunpack.c.h.b16 %v196
    %v700 = vunpack.c.l.b16 %v197
    %v701 = vunpack.c.h.b16 %v197
    %v702 = vunpack.c.l.b16 %v198
    %v703 = vunpack.c.h.b16 %v198
    %v704 = vunpack.c.l.b16 %v199
    %v705 = vunpack.c.h.b16 %v199
    %v706 = vunpack.c.l.b16 %v200
    %v707 = vunpack.c.h.b16 %v200
    %v708 = vunpack.c.l.b16 %v201
    %v709 = vunpack.c.h.b16 %v201
    %v710 = vunpack.c.l.b16 %v202
    %v711 = vunpack.c.h.b16 %v202
    %v712 = vunpack.c.l.b16 %v203
    %v713 = vunpack.c.h.b16 %v203
    %v714 = vunpack.c.l.b16 %v204
    %v715 = vunpack.c.h.b16 %v204
    %v716 = vunpack.c.l.b16 %v205
    %v717 = vunpack.c.h.b16 %v205
    %v718 = vunpack.c.l.b16 %v206
    %v719 = vunpack.c.h.b16 %v206
    %v720 = vunpack.c.l.b16 %v207
    %v721 = vunpack.c.h.b16 %v207
    %v722 = vunpack.c.l.b16 %v208
    %v723 = vunpack.c.h.b16 %v208
    %v724 = vunpack.c.l.b16 %v209
    %v725 = vunpack.c.h.b16 %v209
    %v726 = vunpack.c.l.b16 %v210
    %v727 = vunpack.c.h.b16 %v210
    %v728 = vunpack.c.l.b16 %v211
    %v729 = vunpack.c.h.b16 %v211
    %v730 = vunpack.c.l.b16 %v212
    %v731 = vunpack.c.h.b16 %v212
    %v732 = vunpack.c.l.b16 %v213
    %v733 = vunpack.c.h.b16 %v213
    %v734 = vunpack.c.l.b16 %v214
    %v735 = vunpack.c.h.b16 %v214
    %v736 = vunpack.c.l.b16 %v215
    %v737 = vunpack.c.h.b16 %v215
    %v738 = vunpack.c.l.b16 %v216
    %v739 = vunpack.c.h.b16 %v216
    %v740 = vunpack.c.l.b16 %v217
    %v741 = vunpack.c.h.b16 %v217
    %v742 = vunpack.c.l.b16 %v218
    %v743 = vunpack.c.h.b16 %v218
    %v744 = vunpack.c.l.b16 %v219
    %v745 = vunpack.c.h.b16 %v219
    %v746 = vunpack.c.l.b16 %v220
    %v747 = vunpack.c.h.b16 %v220
    %v748 = vunpack.c.l.b16 %v221
    %v749 = vunpack.c.h.b16 %v221
    %v750 = vunpack.c.l.b16 %v222
    %v751 = vunpack.c.h.b16 %v222
    %v752 = vunpack.c.l.b16 %v223
    %v753 = vunpack.c.h.b16 %v223
    %v754 = vunpack.c.l.b16 %v224
    %v755 = vunpack.c.h.b16 %v224
    %v756 = vunpack.c.l.b16 %v225
    %v757 = vunpack.c.h.b16 %v225
    %v758 = vunpack.c.l.b16 %v226
    %v759 = vunpack.c.h.b16 %v226
    %v760 = vunpack.c.l.b16 %v227
    %v761 = vunpack.c.h.b16 %v227
    %v762 = vunpack.c.l.b16 %v228
    %v763 = vunpack.c.h.b16 %v228
    %v764 = vunpack.c.l.b16 %v229
    %v765 = vunpack.c.h.b16 %v229
    %v766 = vunpack.c.l.b16 %v230
    %v767 = vunpack.c.h.b16 %v230
    %v768 = vunpack.c.l.b16 %v231
    %v769 = vunpack.c.h.b16 %v231
    %v770 = vunpack.c.l.b16 %v232
    %v771 = vunpack.c.h.b16 %v232
    %v772 = vunpack.c.l.b16 %v233
    %v773 = vunpack.c.h.b16 %v233
    %v774 = vunpack.c.l.b16 %v234
    %v775 = vunpack.c.h.b16 %v234
    %v776 = vunpack.c.l.b16 %v235
    %v777 = vunpack.c.h.b16 %v235
    %v778 = vunpack.c.l.b16 %v236
    %v779 = vunpack.c.h.b16 %v236
    %v780 = vunpack.c.l.b16 %v237
    %v781 = vunpack.c.h.b16 %v237
    %v782 = vunpack.c.l.b16 %v238
    %v783 = vunpack.c.h.b16 %v238
    %v784 = vunpack.c.l.b16 %v239
    %v785 = vunpack.c.h.b16 %v239
    %v786 = vunpack.c.l.b16 %v240
    %v787 = vunpack.c.h.b16 %v240
    %v788 = vunpack.c.l.b16 %v241
    %v789 = vunpack.c.h.b16 %v241
    %v790 = vunpack.c.l.b16 %v242
    %v791 = vunpack.c.h.b16 %v242
    %v792 = vunpack.c.l.b16 %v243
    %v793 = vunpack.c.h.b16 %v243
    %v794 = vunpack.c.l.b16 %v244
    %v795 = vunpack.c.h.b16 %v244
    %v796 = vunpack.c.l.b16 %v245
    %v797 = vunpack.c.h.b16 %v245
    %v798 = vunpack.c.l.b16 %v246
    %v799 = vunpack.c.h.b16 %v246
    %v800 = vunpack.c.l.b16 %v247
    %v801 = vunpack.c.h.b16 %v247
    %v802 = vunpack.c.l.b16 %v248
    %v803 = vunpack.c.h.b16 %v248
    %v804 = vunpack.c.l.b16 %v249
    %v805 = vunpack.c.h.b16 %v249
    %v806 = vunpack.c.l.b16 %v250
    %v807 = vunpack.c.h.b16 %v250
    %v808 = vunpack.c.l.b16 %v251
    %v809 = vunpack.c.h.b16 %v251
    %v810 = vunpack.c.l.b16 %v252
    %v811 = vunpack.c.h.b16 %v252
    %v812 = vunpack.c.l.b16 %v253
    %v813 = vunpack.c.h.b16 %v253
    %v814 = vunpack.c.l.b16 %v254
    %v815 = vunpack.c.h.b16 %v254
    %v816 = vunpack.c.l.b16 %v255
    %v817 = vunpack.c.h.b16 %v255
    %v818 = vunpack.c.l.b16 %v256
    %v819 = vunpack.c.h.b16 %v256
    %v820 = vunpack.c.l.b16 %v257
    %v821 = vunpack.c.h.b16 %v257
    %v822 = vunpack.c.l.b16 %v258
    %v823 = vunpack.c.h.b16 %v258
    %v824 = vunpack.c.l.b16 %v259
    %v825 = vunpack.c.h.b16 %v259
    %v826 = vunpack.c.l.b16 %v260
    %v827 = vunpack.c.h.b16 %v260
    %v828 = vunpack.c.l.b16 %v261
    %v829 = vunpack.c.h.b16 %v261
    %v830 = vunpack.c.l.b16 %v262
    %v831 = vunpack.c.h.b16 %v262
    %v832 = vunpack.c.l.b16 %v263
    %v833 = vunpack.c.h.b16 %v263
    %v834 = vunpack.c.l.b16 %v264
    %v835 = vunpack.c.h.b16 %v264
    %v836 = vunpack.c.l.b16 %v265
    %v837 = vunpack.c.h.b16 %v265
    %v838 = vunpack.c.l.b16 %v266
    %v839 = vunpack.c.h.b16 %v266
    %v840 = vunpack.c.l.b16 %v267
    %v841 = vunpack.c.h.b16 %v267
    %v842 = vunpack.c.l.b16 %v268
    %v843 = vunpack.c.h.b16 %v268
    %v844 = vunpack.c.l.b16 %v269
    %v845 = vunpack.c.h.b16 %v269
    %v846 = vunpack.c.l.b16 %v270
    %v847 = vunpack.c.h.b16 %v270
    %v848 = vunpack.c.l.b16 %v271
    %v849 = vunpack.c.h.b16 %v271
    %v850 = vunpack.c.l.b16 %v272
    %v851 = vunpack.c.h.b16 %v272
    %v852 = vunpack.c.l.b16 %v273
    %v853 = vunpack.c.h.b16 %v273
    %v854 = vunpack.c.l.b16 %v274
    %v855 = vunpack.c.h.b16 %v274
    %v856 = vunpack.c.l.b16 %v275
    %v857 = vunpack.c.h.b16 %v275
    %v858 = vunpack.c.l.b16 %v276
    %v859 = vunpack.c.h.b16 %v276
    %v860 = vunpack.c.l.b16 %v277
    %v861 = vunpack.c.h.b16 %v277
    %v862 = vunpack.c.l.b16 %v278
    %v863 = vunpack.c.h.b16 %v278
    %v864 = vunpack.c.l.b16 %v279
    %v865 = vunpack.c.h.b16 %v279
    %v866 = vunpack.c.l.b16 %v280
    %v867 = vunpack.c.h.b16 %v280
    %v868 = vunpack.c.l.b16 %v281
    %v869 = vunpack.c.h.b16 %v281
    %v870 = vunpack.c.l.b16 %v282
    %v871 = vunpack.c.h.b16 %v282
    %v872 = vunpack.c.l.b16 %v283
    %v873 = vunpack.c.h.b16 %v283
    %v874 = vunpack.c.l.b16 %v284
    %v875 = vunpack.c.h.b16 %v284
    %v876 = vunpack.c.l.b16 %v285
    %v877 = vunpack.c.h.b16 %v285
    %v878 = vunpack.c.l.b16 %v286
    %v879 = vunpack.c.h.b16 %v286
    %v880 = vunpack.c.l.b16 %v287
    %v881 = vunpack.c.h.b16 %v287
    %v882 = vunpack.c.l.b16 %v288
    %v883 = vunpack.c.h.b16 %v288
    %v884 = vunpack.c.l.b16 %v289
    %v885 = vunpack.c.h.b16 %v289
    %v886 = vunpack.c.l.b16 %v290
    %v887 = vunpack.c.h.b16 %v290
    %v888 = vunpack.c.l.b16 %v291
    %v889 = vunpack.c.h.b16 %v291
    %v890 = vunpack.c.l.b16 %v292
    %v891 = vunpack.c.h.b16 %v292
    %v892 = vunpack.c.l.b16 %v293
    %v893 = vunpack.c.h.b16 %v293
    %v894 = vunpack.c.l.b16 %v294
    %v895 = vunpack.c.h.b16 %v294
    %v896 = vunpack.c.l.b16 %v295
    %v897 = vunpack.c.h.b16 %v295
    %v898 = vunpack.c.l.b16 %v296
    %v899 = vunpack.c.h.b16 %v296
    %v900 = vunpack.c.l.b16 %v297
    %v901 = vunpack.c.h.b16 %v297
    %v902 = vunpack.c.l.b16 %v298
    %v903 = vunpack.c.h.b16 %v298
    %v904 = vunpack.c.l.b16 %v299
    %v905 = vunpack.c.h.b16 %v299
    %v906 = vunpack.c.l.b16 %v300
    %v907 = vunpack.c.h.b16 %v300
    %v908 = vunpack.c.l.b16 %v301
    %v909 = vunpack.c.h.b16 %v301
    %v910 = vunpack.c.l.b16 %v302
    %v911 = vunpack.c.h.b16 %v302
    %v912 = vunpack.c.l.b16 %v303
    %v913 = vunpack.c.h.b16 %v303
    %v914 = vunpack.c.l.b16 %v304
    %v915 = vunpack.c.h.b16 %v304
    %v916 = vunpack.c.l.b16 %v305
    %v917 = vunpack.c.h.b16 %v305
    %v918 = vunpack.c.l.b16 %v306
    %v919 = vunpack.c.h.b16 %v306
    %v920 = vunpack.c.l.b16 %v307
    %v921 = vunpack.c.h.b16 %v307
    %v922 = vunpack.c.l.b16 %v308
    %v923 = vunpack.c.h.b16 %v308
    %v924 = vunpack.c.l.b16 %v309
    %v925 = vunpack.c.h.b16 %v309
    %v926 = vunpack.c.l.b16 %v310
    %v927 = vunpack.c.h.b16 %v310
    %v928 = vunpack.c.l.b16 %v311
    %v929 = vunpack.c.h.b16 %v311
    %v930 = vunpack.c.l.b16 %v312
    %v931 = vunpack.c.h.b16 %v312
    %v932 = vunpack.c.l.b16 %v313
    %v933 = vunpack.c.h.b16 %v313
    %v934 = vunpack.c.l.b16 %v314
    %v935 = vunpack.c.h.b16 %v314
    %v936 = vunpack.c.l.b16 %v315
    %v937 = vunpack.c.h.b16 %v315
    %v938 = vunpack.c.l.b16 %v316
    %v939 = vunpack.c.h.b16 %v316
    %v940 = vunpack.c.l.b16 %v317
    %v941 = vunpack.c.h.b16 %v317
    %v942 = vunpack.c.l.b16 %v318
    %v943 = vunpack.c.h.b16 %v318
    %v944 = vunpack.c.l.b16 %v319
    %v945 = vunpack.c.h.b16 %v319
    %v946 = vunpack.c.l.b16 %v320
    %v947 = vunpack.c.h.b16 %v320
    %v948 = vunpack.c.l.b16 %v321
    %v949 = vunpack.c.h.b16 %v321
    %v950 = vunpack.c.l.b16 %v322
    %v951 = vunpack.c.h.b16 %v322
    %v952 = vunpack.c.l.b16 %v323
    %v953 = vunpack.c.h.b16 %v323
    %v954 = vunpack.c.l.b16 %v324
    %v955 = vunpack.c.h.b16 %v324
    %v956 = vunpack.c.l.b16 %v325
    %v957 = vunpack.c.h.b16 %v325
    %v958 = vunpack.c.l.b16 %v326
    %v959 = vunpack.c.h.b16 %v326
    %v960 = vunpack.c.l.b16 %v327
    %v961 = vunpack.c.h.b16 %v327
    %v962 = vunpack.c.l.b16 %v328
    %v963 = vunpack.c.h.b16 %v328
    %v964 = vunpack.c.l.b16 %v329
    %v965 = vunpack.c.h.b16 %v329
    %v966 = vunpack.c.l.b16 %v330
    %v967 = vunpack.c.h.b16 %v330
    %v968 = vunpack.c.l.b16 %v331
    %v969 = vunpack.c.h.b16 %v331
    %v970 = vunpack.c.l.b16 %v332
    %v971 = vunpack.c.h.b16 %v332
    %v972 = vunpack.c.l.b16 %v333
    %v973 = vunpack.c.h.b16 %v333
    %v974 = vunpack.c.l.b16 %v334
    %v975 = vunpack.c.h.b16 %v334
    %v976 = vunpack.c.l.b16 %v335
    %v977 = vunpack.c.h.b16 %v335
    %v978 = vunpack.c.l.b16 %v336
    %v979 = vunpack.c.h.b16 %v336
    %v980 = vunpack.c.l.b16 %v337
    %v981 = vunpack.c.h.b16 %v337
    %v982 = vunpack.c.l.b16 %v338
    %v983 = vunpack.c.h.b16 %v338
    %v984 = vunpack.c.l.b16 %v339
    %v985 = vunpack.c.h.b16 %v339
    %v986 = vunpack.c.l.b16 %v340
    %v987 = vunpack.c.h.b16 %v340
    %v988 = vunpack.c.l.b16 %v341
    %v989 = vunpack.c.h.b16 %v341
    %v990 = vunpack.c.l.b16 %v342
    %v991 = vunpack.c.h.b16 %v342
    %v992 = vunpack.c.l.b16 %v343
    %v993 = vunpack.c.h.b16 %v343
    %v994 = vunpack.c.l.b16 %v344
    %v995 = vunpack.c.h.b16 %v344
    %v996 = vunpack.c.l.b16 %v345
    %v997 = vunpack.c.h.b16 %v345
    %v998 = vunpack.c.l.b16 %v346
    %v999 = vunpack.c.h.b16 %v346
    %v1000 = vunpack.c.l.b16 %v347
    %v1001 = vunpack.c.h.b16 %v347
    %v1002 = vunpack.c.l.b16 %v348
    %v1003 = vunpack.c.h.b16 %v348
    %v1004 = vunpack.c.l.b16 %v349
    %v1005 = vunpack.c.h.b16 %v349
    %v1006 = vunpack.c.l.b16 %v350
    %v1007 = vunpack.c.h.b16 %v350
    %v1008 = vunpack.c.l.b16 %v351
    %v1009 = vunpack.c.h.b16 %v351
    %v1010 = vunpack.c.l.b16 %v352
    %v1011 = vunpack.c.h.b16 %v352
    %v1012 = vunpack.c.l.b16 %v353
    %v1013 = vunpack.c.h.b16 %v353
    %v1014 = vunpack.c.l.b16 %v354
    %v1015 = vunpack.c.h.b16 %v354
    %v1016 = vunpack.c.l.b16 %v355
    %v1017 = vunpack.c.h.b16 %v355
    %v1018 = vunpack.c.l.b16 %v356
    %v1019 = vunpack.c.h.b16 %v356
    %v1020 = vunpack.c.l.b16 %v357
    %v1021 = vunpack.c.h.b16 %v357
    %v1022 = vunpack.c.l.b16 %v358
    %v1023 = vunpack.c.h.b16 %v358
    %v1024 = vunpack.c.l.b16 %v359
    %v1025 = vunpack.c.h.b16 %v359
    %v1026 = vunpack.c.l.b16 %v360
    %v1027 = vunpack.c.h.b16 %v360
    %v1028 = vunpack.c.l.b16 %v361
    %v1029 = vunpack.c.h.b16 %v361
    %v1030 = vunpack.c.l.b16 %v362
    %v1031 = vunpack.c.h.b16 %v362
    %v1032 = vunpack.c.l.b16 %v363
    %v1033 = vunpack.c.h.b16 %v363
    %v1034 = vunpack.c.l.b16 %v364
    %v1035 = vunpack.c.h.b16 %v364
    %v1036 = vunpack.c.l.b16 %v365
    %v1037 = vunpack.c.h.b16 %v365
    %v1038 = vunpack.c.l.b16 %v366
    %v1039 = vunpack.c.h.b16 %v366
    %v1040 = vunpack.c.l.b16 %v367
    %v1041 = vunpack.c.h.b16 %v367
    %v1042 = vunpack.c.l.b16 %v368
    %v1043 = vunpack.c.h.b16 %v368
    %v1044 = vunpack.c.l.b16 %v369
    %v1045 = vunpack.c.h.b16 %v369
    %v1046 = vunpack.c.l.b16 %v370
    %v1047 = vunpack.c.h.b16 %v370
    %v1048 = vunpack.c.l.b16 %v371
    %v1049 = vunpack.c.h.b16 %v371
    %v1050 = vunpack.c.l.b16 %v372
    %v1051 = vunpack.c.h.b16 %v372
    %v1052 = vunpack.c.l.b16 %v373
    %v1053 = vunpack.c.h.b16 %v373
    %v1054 = vunpack.c.l.b16 %v374
    %v1055 = vunpack.c.h.b16 %v374
    %v1056 = vunpack.c.l.b16 %v375
    %v1057 = vunpack.c.h.b16 %v375
    %v1058 = vunpack.c.l.b16 %v376
    %v1059 = vunpack.c.h.b16 %v376
    %v1060 = vunpack.c.l.b16 %v377
    %v1061 = vunpack.c.h.b16 %v377
    %v1062 = vunpack.c.l.b16 %v378
    %v1063 = vunpack.c.h.b16 %v378
    %v1064 = vunpack.c.l.b16 %v379
    %v1065 = vunpack.c.h.b16 %v379
    %v1066 = vunpack.c.l.b16 %v380
    %v1067 = vunpack.c.h.b16 %v380
    %v1068 = vunpack.c.l.b16 %v381
    %v1069 = vunpack.c.h.b16 %v381
    %v1070 = vunpack.c.l.b16 %v382
    %v1071 = vunpack.c.h.b16 %v382
    %v1072 = vunpack.c.l.b16 %v383
    %v1073 = vunpack.c.h.b16 %v383
    %v1074 = vunpack.c.l.b16 %v384
    %v1075 = vunpack.c.h.b16 %v384
    %v1076 = vunpack.c.l.b16 %v385
    %v1077 = vunpack.c.h.b16 %v385
    %v1078 = vunpack.c.l.b16 %v386
    %v1079 = vunpack.c.h.b16 %v386
    %v1080 = vpack.c.b16 %v636, %v632
    %v1081 = vpack.c.b16 %v637, %v633
    %v1082 = vpack.c.b16 %v638, %v634
    %v1083 = vpack.c.b16 %v639, %v635
    %v1084 = vpack.c.b16 %v644, %v640
    %v1085 = vpack.c.b16 %v645, %v641
    %v1086 = vpack.c.b16 %v646, %v642
    %v1087 = vpack.c.b16 %v647, %v643
    %v1088 = vpack.c.b16 %v652, %v648
    %v1089 = vpack.c.b16 %v653, %v649
    %v1090 = vpack.c.b16 %v654, %v650
    %v1091 = vpack.c.b16 %v655, %v651
    %v1092 = vpack.c.b16 %v660, %v656
    %v1093 = vpack.c.b16 %v661, %v657
    %v1094 = vpack.c.b16 %v662, %v658
    %v1095 = vpack.c.b16 %v663, %v659
    %v1096 = vpack.c.b16 %v668, %v664
    %v1097 = vpack.c.b16 %v669, %v665
    %v1098 = vpack.c.b16 %v670, %v666
    %v1099 = vpack.c.b16 %v671, %v667
    %v1100 = vpack.c.b16 %v676, %v672
    %v1101 = vpack.c.b16 %v677, %v673
    %v1102 = vpack.c.b16 %v678, %v674
    %v1103 = vpack.c.b16 %v679, %v675
    %v1104 = vpack.c.b16 %v684, %v680
    %v1105 = vpack.c.b16 %v685, %v681
    %v1106 = vpack.c.b16 %v686, %v682
    %v1107 = vpack.c.b16 %v687, %v683
    %v1108 = vpack.c.b16 %v692, %v688
    %v1109 = vpack.c.b16 %v693, %v689
    %v1110 = vpack.c.b16 %v694, %v690
    %v1111 = vpack.c.b16 %v695, %v691
    %v1112 = vpack.c.b16 %v700, %v696
    %v1113 = vpack.c.b16 %v701, %v697
    %v1114 = vpack.c.b16 %v702, %v698
    %v1115 = vpack.c.b16 %v703, %v699
    %v1116 = vpack.c.b16 %v708, %v704
    %v1117 = vpack.c.b16 %v709, %v705
    %v1118 = vpack.c.b16 %v710, %v706
    %v1119 = vpack.c.b16 %v711, %v707
    %v1120 = vpack.c.b16 %v716, %v712
    %v1121 = vpack.c.b16 %v717, %v713
    %v1122 = vpack.c.b16 %v718, %v714
    %v1123 = vpack.c.b16 %v719, %v715
    %v1124 = vpack.c.b16 %v724, %v720
    %v1125 = vpack.c.b16 %v725, %v721
    %v1126 = vpack.c.b16 %v726, %v722
    %v1127 = vpack.c.b16 %v727, %v723
    %v1128 = vpack.c.b16 %v732, %v728
    %v1129 = vpack.c.b16 %v733, %v729
    %v1130 = vpack.c.b16 %v734, %v730
    %v1131 = vpack.c.b16 %v735, %v731
    %v1132 = vpack.c.b16 %v740, %v736
    %v1133 = vpack.c.b16 %v741, %v737
    %v1134 = vpack.c.b16 %v742, %v738
    %v1135 = vpack.c.b16 %v743, %v739
    %v1136 = vpack.c.b16 %v748, %v744
    %v1137 = vpack.c.b16 %v749, %v745
    %v1138 = vpack.c.b16 %v750, %v746
    %v1139 = vpack.c.b16 %v751, %v747
    %v1140 = vpack.c.b16 %v756, %v752
    %v1141 = vpack.c.b16 %v757, %v753
    %v1142 = vpack.c.b16 %v758, %v754
    %v1143 = vpack.c.b16 %v759, %v755
    %v1144 = vpack.c.b16 %v764, %v760
    %v1145 = vpack.c.b16 %v765, %v761
    %v1146 = vpack.c.b16 %v766, %v762
    %v1147 = vpack.c.b16 %v767, %v763
    %v1148 = vpack.c.b16 %v772, %v768
    %v1149 = vpack.c.b16 %v773, %v769
    %v1150 = vpack.c.b16 %v774, %v770
    %v1151 = vpack.c.b16 %v775, %v771
    %v1152 = vpack.c.b16 %v780, %v776
    %v1153 = vpack.c.b16 %v781, %v777
    %v1154 = vpack.c.b16 %v782, %v778
    %v1155 = vpack.c.b16 %v783, %v779
    %v1156 = vpack.c.b16 %v788, %v784
    %v1157 = vpack.c.b16 %v789, %v785
    %v1158 = vpack.c.b16 %v790, %v786
    %v1159 = vpack.c.b16 %v791, %v787
    %v1160 = vpack.c.b16 %v796, %v792
    %v1161 = vpack.c.b16 %v797, %v793
    %v1162 = vpack.c.b16 %v798, %v794
    %v1163 = vpack.c.b16 %v799, %v795
    %v1164 = vpack.c.b16 %v804, %v800
    %v1165 = vpack.c.b16 %v805, %v801
    %v1166 = vpack.c.b16 %v806, %v802
    %v1167 = vpack.c.b16 %v807, %v803
    %v1168 = vpack.c.b16 %v812, %v808
    %v1169 = vpack.c.b16 %v813, %v809
    %v1170 = vpack.c.b16 %v814, %v810
    %v1171 = vpack.c.b16 %v815, %v811
    %v1172 = vpack.c.b16 %v820, %v816
    %v1173 = vpack.c.b16 %v821, %v817
    %v1174 = vpack.c.b16 %v822, %v818
    %v1175 = vpack.c.b16 %v823, %v819
    %v1176 = vpack.c.b16 %v828, %v824
    %v1177 = vpack.c.b16 %v829, %v825
    %v1178 = vpack.c.b16 %v830, %v826
    %v1179 = vpack.c.b16 %v831, %v827
    %v1180 = vpack.c.b16 %v836, %v832
    %v1181 = vpack.c.b16 %v837, %v833
    %v1182 = vpack.c.b16 %v838, %v834
    %v1183 = vpack.c.b16 %v839, %v835
    %v1184 = vpack.c.b16 %v844, %v840
    %v1185 = vpack.c.b16 %v845, %v841
    %v1186 = vpack.c.b16 %v846, %v842
    %v1187 = vpack.c.b16 %v847, %v843
    %v1188 = vpack.c.b16 %v852, %v848
    %v1189 = vpack.c.b16 %v853, %v849
    %v1190 = vpack.c.b16 %v854, %v850
    %v1191 = vpack.c.b16 %v855, %v851
    %v1192 = vpack.c.b16 %v860, %v856
    %v1193 = vpack.c.b16 %v861, %v857
    %v1194 = vpack.c.b16 %v862, %v858
    %v1195 = vpack.c.b16 %v863, %v859
    %v1196 = vpack.c.b16 %v868, %v864
    %v1197 = vpack.c.b16 %v869, %v865
    %v1198 = vpack.c.b16 %v870, %v866
    %v1199 = vpack.c.b16 %v871, %v867
    %v1200 = vpack.c.b16 %v876, %v872
    %v1201 = vpack.c.b16 %v877, %v873
    %v1202 = vpack.c.b16 %v878, %v874
    %v1203 = vpack.c.b16 %v879, %v875
    %v1204 = vpack.c.b16 %v884, %v880
    %v1205 = vpack.c.b16 %v885, %v881
    %v1206 = vpack.c.b16 %v886, %v882
    %v1207 = vpack.c.b16 %v887, %v883
    %v1208 = vpack.c.b16 %v892, %v888
    %v1209 = vpack.c.b16 %v893, %v889
    %v1210 = vpack.c.b16 %v894, %v890
    %v1211 = vpack.c.b16 %v895, %v891
    %v1212 = vpack.c.b16 %v900, %v896
    %v1213 = vpack.c.b16 %v901, %v897
    %v1214 = vpack.c.b16 %v902, %v898
    %v1215 = vpack.c.b16 %v903, %v899
    %v1216 = vpack.c.b16 %v908, %v904
    %v1217 = vpack.c.b16 %v909, %v905
    %v1218 = vpack.c.b16 %v910, %v906
    %v1219 = vpack.c.b16 %v911, %v907
    %v1220 = vpack.c.b16 %v916, %v912
    %v1221 = vpack.c.b16 %v917, %v913
    %v1222 = vpack.c.b16 %v918, %v914
    %v1223 = vpack.c.b16 %v919, %v915
    %v1224 = vpack.c.b16 %v924, %v920
    %v1225 = vpack.c.b16 %v925, %v921
    %v1226 = vpack.c.b16 %v926, %v922
    %v1227 = vpack.c.b16 %v927, %v923
    %v1228 = vpack.c.b16 %v932, %v928
    %v1229 = vpack.c.b16 %v933, %v929
    %v1230 = vpack.c.b16 %v934, %v930
    %v1231 = vpack.c.b16 %v935, %v931
    %v1232 = vpack.c.b16 %v940, %v936
    %v1233 = vpack.c.b16 %v941, %v937
    %v1234 = vpack.c.b16 %v942, %v938
    %v1235 = vpack.c.b16 %v943, %v939
    %v1236 = vpack.c.b16 %v948, %v944
    %v1237 = vpack.c.b16 %v949, %v945
    %v1238 = vpack.c.b16 %v950, %v946
    %v1239 = vpack.c.b16 %v951, %v947
    %v1240 = vpack.c.b16 %v956, %v952
    %v1241 = vpack.c.b16 %v957, %v953
    %v1242 = vpack.c.b16 %v958, %v954
    %v1243 = vpack.c.b16 %v959, %v955
    %v1244 = vpack.c.b16 %v964, %v960
    %v1245 = vpack.c.b16 %v965, %v961
    %v1246 = vpack.c.b16 %v966, %v962
    %v1247 = vpack.c.b16 %v967, %v963
    %v1248 = vpack.c.b16 %v972, %v968
    %v1249 = vpack.c.b16 %v973, %v969
    %v1250 = vpack.c.b16 %v974, %v970
    %v1251 = vpack.c.b16 %v975, %v971
    %v1252 = vpack.c.b16 %v980, %v976
    %v1253 = vpack.c.b16 %v981, %v977
    %v1254 = vpack.c.b16 %v982, %v978
    %v1255 = vpack.c.b16 %v983, %v979
    %v1256 = vpack.c.b16 %v988, %v984
    %v1257 = vpack.c.b16 %v989, %v985
    %v1258 = vpack.c.b16 %v990, %v986
    %v1259 = vpack.c.b16 %v991, %v987
    %v1260 = vpack.c.b16 %v996, %v992
    %v1261 = vpack.c.b16 %v997, %v993
    %v1262 = vpack.c.b16 %v998, %v994
    %v1263 = vpack.c.b16 %v999, %v995
    %v1264 = vpack.c.b16 %v1004, %v1000
    %v1265 = vpack.c.b16 %v1005, %v1001
    %v1266 = vpack.c.b16 %v1006, %v1002
    %v1267 = vpack.c.b16 %v1007, %v1003
    %v1268 = vpack.c.b16 %v1012, %v1008
    %v1269 = vpack.c.b16 %v1013, %v1009
    %v1270 = vpack.c.b16 %v1014, %v1010
    %v1271 = vpack.c.b16 %v1015, %v1011
    %v1272 = vpack.c.b16 %v1020, %v1016
    %v1273 = vpack.c.b16 %v1021, %v1017
    %v1274 = vpack.c.b16 %v1022, %v1018
    %v1275 = vpack.c.b16 %v1023, %v1019
    %v1276 = vpack.c.b16 %v1028, %v1024
    %v1277 = vpack.c.b16 %v1029, %v1025
    %v1278 = vpack.c.b16 %v1030, %v1026
    %v1279 = vpack.c.b16 %v1031, %v1027
    %v1280 = vpack.c.b16 %v1036, %v1032
    %v1281 = vpack.c.b16 %v1037, %v1033
    %v1282 = vpack.c.b16 %v1038, %v1034
    %v1283 = vpack.c.b16 %v1039, %v1035
    %v1284 = vpack.c.b16 %v1044, %v1040
    %v1285 = vpack.c.b16 %v1045, %v1041
    %v1286 = vpack.c.b16 %v1046, %v1042
    %v1287 = vpack.c.b16 %v1047, %v1043
    %v1288 = vpack.c.b16 %v1052, %v1048
    %v1289 = vpack.c.b16 %v1053, %v1049
    %v1290 = vpack.c.b16 %v1054, %v1050
    %v1291 = vpack.c.b16 %v1055, %v1051
    %v1292 = vpack.c.b16 %v1060, %v1056
    %v1293 = vpack.c.b16 %v1061, %v1057
    %v1294 = vpack.c.b16 %v1062, %v1058
    %v1295 = vpack.c.b16 %v1063, %v1059
    %v1296 = vpack.c.b16 %v1068, %v1064
    %v1297 = vpack.c.b16 %v1069, %v1065
    %v1298 = vpack.c.b16 %v1070, %v1066
    %v1299 = vpack.c.b16 %v1071, %v1067
    %v1300 = vpack.c.b16 %v1076, %v1072
    %v1301 = vpack.c.b16 %v1077, %v1073
    %v1302 = vpack.c.b16 %v1078, %v1074
    %v1303 = vpack.c.b16 %v1079, %v1075
    %1528 = vmatprep.subr.bf16.mxu0 %v1081
    %1529 = vmatpush1.bf16.msra.mxu0 %v1080
    %1530 = vmatprep.subr.bf16.mxu0 %v1085
    %1531 = vmatpush1.bf16.msra.mxu0 %v1084
    %1532 = vmatprep.subr.bf16.mxu0 %v1089
    %1533 = vmatpush1.bf16.msra.mxu0 %v1088
    %1534 = vmatprep.subr.bf16.mxu0 %v1093
    %1535 = vmatpush1.bf16.msra.mxu0 %v1092
    %1536 = vmatprep.subr.bf16.mxu0 %v1097
    %1537 = vmatpush1.bf16.msra.mxu0 %v1096
    %1538 = vmatprep.subr.bf16.mxu0 %v1101
    %1539 = vmatpush1.bf16.msra.mxu0 %v1100
    %1540 = vmatprep.subr.bf16.mxu0 %v1105
    %1541 = vmatpush1.bf16.msra.mxu0 %v1104
    %1542 = vmatprep.subr.bf16.mxu0 %v1109
    %1543 = vmatpush1.bf16.msra.mxu0 %v1108
    %1544 = vmatprep.subr.bf16.mxu0 %v1113
    %1545 = vmatpush1.bf16.msra.mxu0 %v1112
    %1546 = vmatprep.subr.bf16.mxu0 %v1117
    %1547 = vmatpush1.bf16.msra.mxu0 %v1116
    %1548 = vmatprep.subr.bf16.mxu0 %v1121
    %1549 = vmatpush1.bf16.msra.mxu0 %v1120
    %1550 = vmatprep.subr.bf16.mxu0 %v1125
    %1551 = vmatpush1.bf16.msra.mxu0 %v1124
    %1552 = vmatprep.subr.bf16.mxu0 %v1129
    %1553 = vmatpush1.bf16.msra.mxu0 %v1128
    %1554 = vmatprep.subr.bf16.mxu0 %v1133
    %1555 = vmatpush1.bf16.msra.mxu0 %v1132
    %1556 = vmatprep.subr.bf16.mxu0 %v1137
    %1557 = vmatpush1.bf16.msra.mxu0 %v1136
    %1558 = vmatprep.subr.bf16.mxu0 %v1141
    %1559 = vmatpush1.bf16.msra.mxu0 %v1140
    %1560 = vmatprep.mubr.bf16.mxu0 %v157
    %1561 = vmatmul.mubr.bf16.gmra.mrb[0].mxu0 %v156
    %v1562 = vpop.f32.mrb[0].mxu0
    %v1563 = vadd.f32 %v391, %v1562
    %v1564 = vpop.f32.mrb[0].mxu0
    %v1565 = vadd.f32 %v395, %v1564
    %v1566 = vpop.f32.mrb[0].mxu0
    %v1567 = vpop.f32.mrb[0].mxu0
    %1568 = vdwg.mxu0
    %1569 = vmatprep.subr.bf16.mxu0 %v1145
    %1570 = vmatpush1.bf16.msra.mxu0 %v1144
    %1571 = vmatprep.subr.bf16.mxu0 %v1149
    %1572 = vmatpush1.bf16.msra.mxu0 %v1148
    %1573 = vmatprep.subr.bf16.mxu0 %v1153
    %1574 = vmatpush1.bf16.msra.mxu0 %v1152
    %1575 = vmatprep.subr.bf16.mxu0 %v1157
    %1576 = vmatpush1.bf16.msra.mxu0 %v1156
    %1577 = vmatprep.subr.bf16.mxu0 %v1161
    %1578 = vmatpush1.bf16.msra.mxu0 %v1160
    %1579 = vmatprep.subr.bf16.mxu0 %v1165
    %1580 = vmatpush1.bf16.msra.mxu0 %v1164
    %1581 = vmatprep.subr.bf16.mxu0 %v1169
    %1582 = vmatpush1.bf16.msra.mxu0 %v1168
    %1583 = vmatprep.subr.bf16.mxu0 %v1173
    %1584 = vmatpush1.bf16.msra.mxu0 %v1172
    %1585 = vmatprep.subr.bf16.mxu0 %v1177
    %1586 = vmatpush1.bf16.msra.mxu0 %v1176
    %1587 = vmatprep.subr.bf16.mxu0 %v1181
    %1588 = vmatpush1.bf16.msra.mxu0 %v1180
    %1589 = vmatprep.subr.bf16.mxu0 %v1185
    %1590 = vmatpush1.bf16.msra.mxu0 %v1184
    %1591 = vmatprep.subr.bf16.mxu0 %v1189
    %1592 = vmatpush1.bf16.msra.mxu0 %v1188
    %1593 = vmatprep.subr.bf16.mxu0 %v1193
    %1594 = vmatpush1.bf16.msra.mxu0 %v1192
    %1595 = vmatprep.subr.bf16.mxu0 %v1197
    %1596 = vmatpush1.bf16.msra.mxu0 %v1196
    %1597 = vmatprep.subr.bf16.mxu0 %v1201
    %1598 = vmatpush1.bf16.msra.mxu0 %v1200
    %1599 = vmatprep.subr.bf16.mxu0 %v1205
    %1600 = vmatpush1.bf16.msra.mxu0 %v1204
    %1601 = vmatprep.mubr.bf16.mxu0 %v159
    %1602 = vmatmul.mubr.bf16.gmra.mrb[0].mxu0 %v158
    %v1603 = vpop.f32.mrb[0].mxu0
    %v1604 = vadd.f32 %v1563, %v1603
    %v1605 = vpop.f32.mrb[0].mxu0
    %v1606 = vadd.f32 %v1565, %v1605
    %v1607 = vpop.f32.mrb[0].mxu0
    %v1608 = vpop.f32.mrb[0].mxu0
    %1609 = vdwg.mxu0
    %1610 = vmatprep.subr.bf16.mxu0 %v1209
    %1611 = vmatpush1.bf16.msra.mxu0 %v1208
    %1612 = vmatprep.subr.bf16.mxu0 %v1213
    %1613 = vmatpush1.bf16.msra.mxu0 %v1212
    %1614 = vmatprep.subr.bf16.mxu0 %v1217
    %1615 = vmatpush1.bf16.msra.mxu0 %v1216
    %1616 = vmatprep.subr.bf16.mxu0 %v1221
    %1617 = vmatpush1.bf16.msra.mxu0 %v1220
    %1618 = vmatprep.subr.bf16.mxu0 %v1225
    %1619 = vmatpush1.bf16.msra.mxu0 %v1224
    %1620 = vmatprep.subr.bf16.mxu0 %v1229
    %1621 = vmatpush1.bf16.msra.mxu0 %v1228
    %1622 = vmatprep.subr.bf16.mxu0 %v1233
    %1623 = vmatpush1.bf16.msra.mxu0 %v1232
    %1624 = vmatprep.subr.bf16.mxu0 %v1237
    %1625 = vmatpush1.bf16.msra.mxu0 %v1236
    %1626 = vmatprep.subr.bf16.mxu0 %v1241
    %1627 = vmatpush1.bf16.msra.mxu0 %v1240
    %1628 = vmatprep.subr.bf16.mxu0 %v1245
    %1629 = vmatpush1.bf16.msra.mxu0 %v1244
    %1630 = vmatprep.subr.bf16.mxu0 %v1249
    %1631 = vmatpush1.bf16.msra.mxu0 %v1248
    %1632 = vmatprep.subr.bf16.mxu0 %v1253
    %1633 = vmatpush1.bf16.msra.mxu0 %v1252
    %1634 = vmatprep.subr.bf16.mxu0 %v1257
    %1635 = vmatpush1.bf16.msra.mxu0 %v1256
    %1636 = vmatprep.subr.bf16.mxu0 %v1261
    %1637 = vmatpush1.bf16.msra.mxu0 %v1260
    %1638 = vmatprep.subr.bf16.mxu0 %v1265
    %1639 = vmatpush1.bf16.msra.mxu0 %v1264
    %1640 = vmatprep.subr.bf16.mxu0 %v1269
    %1641 = vmatpush1.bf16.msra.mxu0 %v1268
    %1642 = vmatprep.mubr.bf16.mxu0 %v161
    %1643 = vmatmul.mubr.bf16.gmra.mrb[0].mxu0 %v160
    %v1644 = vpop.f32.mrb[0].mxu0
    %v1645 = vadd.f32 %v1604, %v1644
    %v1646 = vpop.f32.mrb[0].mxu0
    %v1647 = vadd.f32 %v1606, %v1646
    %v1648 = vpop.f32.mrb[0].mxu0
    %v1649 = vpop.f32.mrb[0].mxu0
    %1650 = vdwg.mxu0
    %1651 = vmatprep.subr.bf16.mxu0 %v1273
    %1652 = vmatpush1.bf16.msra.mxu0 %v1272
    %1653 = vmatprep.subr.bf16.mxu0 %v1277
    %1654 = vmatpush1.bf16.msra.mxu0 %v1276
    %1655 = vmatprep.subr.bf16.mxu0 %v1281
    %1656 = vmatpush1.bf16.msra.mxu0 %v1280
    %1657 = vmatprep.subr.bf16.mxu0 %v1285
    %1658 = vmatpush1.bf16.msra.mxu0 %v1284
    %1659 = vmatprep.subr.bf16.mxu0 %v1289
    %1660 = vmatpush1.bf16.msra.mxu0 %v1288
    %1661 = vmatprep.subr.bf16.mxu0 %v1293
    %1662 = vmatpush1.bf16.msra.mxu0 %v1292
    %1663 = vmatprep.subr.bf16.mxu0 %v1297
    %1664 = vmatpush1.bf16.msra.mxu0 %v1296
    %1665 = vmatprep.subr.bf16.mxu0 %v1301
    %1666 = vmatpush1.bf16.msra.mxu0 %v1300
    %1667 = vmatprep.subr.bf16.mxu0 0
    %1668 = vmatpush1.bf16.msra.mxu0 0
    %1669 = vmatprep.subr.bf16.mxu0 0
    %1670 = vmatpush1.bf16.msra.mxu0 0
    %1671 = vmatprep.subr.bf16.mxu0 0
    %1672 = vmatpush1.bf16.msra.mxu0 0
    %1673 = vmatprep.subr.bf16.mxu0 0
    %1674 = vmatpush1.bf16.msra.mxu0 0
    %1675 = vmatprep.subr.bf16.mxu0 0
    %1676 = vmatpush1.bf16.msra.mxu0 0
    %1677 = vmatprep.subr.bf16.mxu0 0
    %1678 = vmatpush1.bf16.msra.mxu0 0
    %1679 = vmatprep.subr.bf16.mxu0 0
    %1680 = vmatpush1.bf16.msra.mxu0 0
    %1681 = vmatprep.subr.bf16.mxu0 0
    %1682 = vmatpush1.bf16.msra.mxu0 0
    %1683 = vmatprep.mubr.bf16.mxu0 0
    %1684 = vmatmul.mubr.bf16.gmra.mrb[0].mxu0 %v162
    %v1685 = vpop.f32.mrb[0].mxu0
    %v1686 = vadd.f32 %v1645, %v1685
    %v1687 = vpop.f32.mrb[0].mxu0
    %v1688 = vadd.f32 %v1647, %v1687
    %v1689 = vpop.f32.mrb[0].mxu0
    %v1690 = vpop.f32.mrb[0].mxu0
    %1691 = vdwg.mxu0
    %1692 = vmatprep.subr.bf16.mxu0 %v1083
    %1693 = vmatpush1.bf16.msra.mxu0 %v1082
    %1694 = vmatprep.subr.bf16.mxu0 %v1087
    %1695 = vmatpush1.bf16.msra.mxu0 %v1086
    %1696 = vmatprep.subr.bf16.mxu0 %v1091
    %1697 = vmatpush1.bf16.msra.mxu0 %v1090
    %1698 = vmatprep.subr.bf16.mxu0 %v1095
    %1699 = vmatpush1.bf16.msra.mxu0 %v1094
    %1700 = vmatprep.subr.bf16.mxu0 %v1099
    %1701 = vmatpush1.bf16.msra.mxu0 %v1098
    %1702 = vmatprep.subr.bf16.mxu0 %v1103
    %1703 = vmatpush1.bf16.msra.mxu0 %v1102
    %1704 = vmatprep.subr.bf16.mxu0 %v1107
    %1705 = vmatpush1.bf16.msra.mxu0 %v1106
    %1706 = vmatprep.subr.bf16.mxu0 %v1111
    %1707 = vmatpush1.bf16.msra.mxu0 %v1110
    %1708 = vmatprep.subr.bf16.mxu0 %v1115
    %1709 = vmatpush1.bf16.msra.mxu0 %v1114
    %1710 = vmatprep.subr.bf16.mxu0 %v1119
    %1711 = vmatpush1.bf16.msra.mxu0 %v1118
    %1712 = vmatprep.subr.bf16.mxu0 %v1123
    %1713 = vmatpush1.bf16.msra.mxu0 %v1122
    %1714 = vmatprep.subr.bf16.mxu0 %v1127
    %1715 = vmatpush1.bf16.msra.mxu0 %v1126
    %1716 = vmatprep.subr.bf16.mxu0 %v1131
    %1717 = vmatpush1.bf16.msra.mxu0 %v1130
    %1718 = vmatprep.subr.bf16.mxu0 %v1135
    %1719 = vmatpush1.bf16.msra.mxu0 %v1134
    %1720 = vmatprep.subr.bf16.mxu0 %v1139
    %1721 = vmatpush1.bf16.msra.mxu0 %v1138
    %1722 = vmatprep.subr.bf16.mxu0 %v1143
    %1723 = vmatpush1.bf16.msra.mxu0 %v1142
    %1724 = vmatprep.mubr.bf16.mxu0 %v157
    %1725 = vmatmul.mubr.bf16.gmra.mrb[0].mxu0 %v156
    %v1726 = vpop.f32.mrb[0].mxu0
    %v1727 = vadd.f32 %v399, %v1726
    %v1728 = vpop.f32.mrb[0].mxu0
    %v1729 = vadd.f32 %v403, %v1728
    %v1730 = vpop.f32.mrb[0].mxu0
    %v1731 = vpop.f32.mrb[0].mxu0
    %1732 = vdwg.mxu0
    %1733 = vmatprep.subr.bf16.mxu0 %v1147
    %1734 = vmatpush1.bf16.msra.mxu0 %v1146
    %1735 = vmatprep.subr.bf16.mxu0 %v1151
    %1736 = vmatpush1.bf16.msra.mxu0 %v1150
    %1737 = vmatprep.subr.bf16.mxu0 %v1155
    %1738 = vmatpush1.bf16.msra.mxu0 %v1154
    %1739 = vmatprep.subr.bf16.mxu0 %v1159
    %1740 = vmatpush1.bf16.msra.mxu0 %v1158
    %1741 = vmatprep.subr.bf16.mxu0 %v1163
    %1742 = vmatpush1.bf16.msra.mxu0 %v1162
    %1743 = vmatprep.subr.bf16.mxu0 %v1167
    %1744 = vmatpush1.bf16.msra.mxu0 %v1166
    %1745 = vmatprep.subr.bf16.mxu0 %v1171
    %1746 = vmatpush1.bf16.msra.mxu0 %v1170
    %1747 = vmatprep.subr.bf16.mxu0 %v1175
    %1748 = vmatpush1.bf16.msra.mxu0 %v1174
    %1749 = vmatprep.subr.bf16.mxu0 %v1179
    %1750 = vmatpush1.bf16.msra.mxu0 %v1178
    %1751 = vmatprep.subr.bf16.mxu0 %v1183
    %1752 = vmatpush1.bf16.msra.mxu0 %v1182
    %1753 = vmatprep.subr.bf16.mxu0 %v1187
    %1754 = vmatpush1.bf16.msra.mxu0 %v1186
    %1755 = vmatprep.subr.bf16.mxu0 %v1191
    %1756 = vmatpush1.bf16.msra.mxu0 %v1190
    %1757 = vmatprep.subr.bf16.mxu0 %v1195
    %1758 = vmatpush1.bf16.msra.mxu0 %v1194
    %1759 = vmatprep.subr.bf16.mxu0 %v1199
    %1760 = vmatpush1.bf16.msra.mxu0 %v1198
    %1761 = vmatprep.subr.bf16.mxu0 %v1203
    %1762 = vmatpush1.bf16.msra.mxu0 %v1202
    %1763 = vmatprep.subr.bf16.mxu0 %v1207
    %1764 = vmatpush1.bf16.msra.mxu0 %v1206
    %1765 = vmatprep.mubr.bf16.mxu0 %v159
    %1766 = vmatmul.mubr.bf16.gmra.mrb[0].mxu0 %v158
    %v1767 = vpop.f32.mrb[0].mxu0
    %v1768 = vadd.f32 %v1727, %v1767
    %v1769 = vpop.f32.mrb[0].mxu0
    %v1770 = vadd.f32 %v1729, %v1769
    %v1771 = vpop.f32.mrb[0].mxu0
    %v1772 = vpop.f32.mrb[0].mxu0
    %1773 = vdwg.mxu0
    %1774 = vmatprep.subr.bf16.mxu0 %v1211
    %1775 = vmatpush1.bf16.msra.mxu0 %v1210
    %1776 = vmatprep.subr.bf16.mxu0 %v1215
    %1777 = vmatpush1.bf16.msra.mxu0 %v1214
    %1778 = vmatprep.subr.bf16.mxu0 %v1219
    %1779 = vmatpush1.bf16.msra.mxu0 %v1218
    %1780 = vmatprep.subr.bf16.mxu0 %v1223
    %1781 = vmatpush1.bf16.msra.mxu0 %v1222
    %1782 = vmatprep.subr.bf16.mxu0 %v1227
    %1783 = vmatpush1.bf16.msra.mxu0 %v1226
    %1784 = vmatprep.subr.bf16.mxu0 %v1231
    %1785 = vmatpush1.bf16.msra.mxu0 %v1230
    %1786 = vmatprep.subr.bf16.mxu0 %v1235
    %1787 = vmatpush1.bf16.msra.mxu0 %v1234
    %1788 = vmatprep.subr.bf16.mxu0 %v1239
    %1789 = vmatpush1.bf16.msra.mxu0 %v1238
    %1790 = vmatprep.subr.bf16.mxu0 %v1243
    %1791 = vmatpush1.bf16.msra.mxu0 %v1242
    %1792 = vmatprep.subr.bf16.mxu0 %v1247
    %1793 = vmatpush1.bf16.msra.mxu0 %v1246
    %1794 = vmatprep.subr.bf16.mxu0 %v1251
    %1795 = vmatpush1.bf16.msra.mxu0 %v1250
    %1796 = vmatprep.subr.bf16.mxu0 %v1255
    %1797 = vmatpush1.bf16.msra.mxu0 %v1254
    %1798 = vmatprep.subr.bf16.mxu0 %v1259
    %1799 = vmatpush1.bf16.msra.mxu0 %v1258
    %1800 = vmatprep.subr.bf16.mxu0 %v1263
    %1801 = vmatpush1.bf16.msra.mxu0 %v1262
    %1802 = vmatprep.subr.bf16.mxu0 %v1267
    %1803 = vmatpush1.bf16.msra.mxu0 %v1266
    %1804 = vmatprep.subr.bf16.mxu0 %v1271
    %1805 = vmatpush1.bf16.msra.mxu0 %v1270
    %1806 = vmatprep.mubr.bf16.mxu0 %v161
    %1807 = vmatmul.mubr.bf16.gmra.mrb[0].mxu0 %v160
    %v1808 = vpop.f32.mrb[0].mxu0
    %v1809 = vadd.f32 %v1768, %v1808
    %v1810 = vpop.f32.mrb[0].mxu0
    %v1811 = vadd.f32 %v1770, %v1810
    %v1812 = vpop.f32.mrb[0].mxu0
    %v1813 = vpop.f32.mrb[0].mxu0
    %1814 = vdwg.mxu0
    %1815 = vmatprep.subr.bf16.mxu0 %v1275
    %1816 = vmatpush1.bf16.msra.mxu0 %v1274
    %1817 = vmatprep.subr.bf16.mxu0 %v1279
    %1818 = vmatpush1.bf16.msra.mxu0 %v1278
    %1819 = vmatprep.subr.bf16.mxu0 %v1283
    %1820 = vmatpush1.bf16.msra.mxu0 %v1282
    %1821 = vmatprep.subr.bf16.mxu0 %v1287
    %1822 = vmatpush1.bf16.msra.mxu0 %v1286
    %1823 = vmatprep.subr.bf16.mxu0 %v1291
    %1824 = vmatpush1.bf16.msra.mxu0 %v1290
    %1825 = vmatprep.subr.bf16.mxu0 %v1295
    %1826 = vmatpush1.bf16.msra.mxu0 %v1294
    %1827 = vmatprep.subr.bf16.mxu0 %v1299
    %1828 = vmatpush1.bf16.msra.mxu0 %v1298
    %1829 = vmatprep.subr.bf16.mxu0 %v1303
    %1830 = vmatpush1.bf16.msra.mxu0 %v1302
    %1831 = vmatprep.subr.bf16.mxu0 0
    %1832 = vmatpush1.bf16.msra.mxu0 0
    %1833 = vmatprep.subr.bf16.mxu0 0
    %1834 = vmatpush1.bf16.msra.mxu0 0
    %1835 = vmatprep.subr.bf16.mxu0 0
    %1836 = vmatpush1.bf16.msra.mxu0 0
    %1837 = vmatprep.subr.bf16.mxu0 0
    %1838 = vmatpush1.bf16.msra.mxu0 0
    %1839 = vmatprep.subr.bf16.mxu0 0
    %1840 = vmatpush1.bf16.msra.mxu0 0
    %1841 = vmatprep.subr.bf16.mxu0 0
    %1842 = vmatpush1.bf16.msra.mxu0 0
    %1843 = vmatprep.subr.bf16.mxu0 0
    %1844 = vmatpush1.bf16.msra.mxu0 0
    %1845 = vmatprep.subr.bf16.mxu0 0
    %1846 = vmatpush1.bf16.msra.mxu0 0
    %1847 = vmatprep.mubr.bf16.mxu0 0
    %1848 = vmatmul.mubr.bf16.gmra.mrb[0].mxu0 %v162
    %v1849 = vpop.f32.mrb[0].mxu0
    %v1850 = vadd.f32 %v1809, %v1849
    %v1851 = vpop.f32.mrb[0].mxu0
    %v1852 = vadd.f32 %v1811, %v1851
    %v1853 = vpop.f32.mrb[0].mxu0
    %v1854 = vpop.f32.mrb[0].mxu0
    %1855 = vdwg.mxu0
    %v1856 = vmax.f32 %v1686, 0.0
    %v1857 = vmax.f32 %v1688, 0.0
    %v1858 = vmax.f32 %v1850, 0.0
    %v1859 = vmax.f32 %v1852, 0.0
    %v1860 = vpack.c.bf16 %v1856, %v1856
    %v1861 = vpack.c.bf16 %v1857, %v1857
    %v1862 = vpack.c.bf16 %v1858, %v1858
    %v1863 = vpack.c.bf16 %v1859, %v1859
    %v1864 = vld [vmem:[#allocation8] sm:$0xff]
    %v1865 = vld [vmem:[#allocation8 + $0x8] sm:$0xff]
    %v1866 = vld [vmem:[#allocation8 + $0x10] sm:$0xff]
    %v1867 = vld [vmem:[#allocation8 + $0x18] sm:$0xff]
    %v1868 = vld [vmem:[#allocation8 + $0x20] sm:$0xff]
    %v1869 = vld [vmem:[#allocation8 + $0x28] sm:$0xff]
    %v1870 = vld [vmem:[#allocation8 + $0x30] sm:$0xff]
    %v1871 = vld [vmem:[#allocation8 + $0x38] sm:$0xff]
    %v1872 = vld [vmem:[#allocation8 + $0x40] sm:$0xff]
    %v1873 = vld [vmem:[#allocation8 + $0x48] sm:$0xff]
    %v1874 = vld [vmem:[#allocation8 + $0x50] sm:$0xff]
    %v1875 = vld [vmem:[#allocation8 + $0x58] sm:$0xff]
    %v1876 = vld [vmem:[#allocation8 + $0x60] sm:$0xff]
    %v1877 = vld [vmem:[#allocation8 + $0x68] sm:$0xff]
    %v1878 = vld [vmem:[#allocation8 + $0x70] sm:$0xff]
    %v1879 = vld [vmem:[#allocation8 + $0x78] sm:$0xff]
    %v1880 = vld [vmem:[#allocation8 + $0x80] sm:$0xff]
    %v1881 = vld [vmem:[#allocation8 + $0x88] sm:$0xff]
    %v1882 = vld [vmem:[#allocation8 + $0x90] sm:$0xff]
    %v1883 = vld [vmem:[#allocation8 + $0x98] sm:$0xff]
    %v1884 = vld [vmem:[#allocation8 + $0xa0] sm:$0xff]
    %v1885 = vld [vmem:[#allocation8 + $0xa8] sm:$0xff]
    %v1886 = vld [vmem:[#allocation8 + $0xb0] sm:$0xff]
    %v1887 = vld [vmem:[#allocation8 + $0xb8] sm:$0xff]
    %v1888 = vld [vmem:[#allocation8 + $0xc0] sm:$0xff]
    %v1889 = vld [vmem:[#allocation8 + $0xc8] sm:$0xff]
    %v1890 = vld [vmem:[#allocation8 + $0xd0] sm:$0xff]
    %v1891 = vld [vmem:[#allocation8 + $0xd8] sm:$0xff]
    %v1892 = vld [vmem:[#allocation8 + $0xe0] sm:$0xff]
    %v1893 = vld [vmem:[#allocation8 + $0xe8] sm:$0xff]
    %v1894 = vld [vmem:[#allocation8 + $0xf0] sm:$0xff]
    %v1895 = vld [vmem:[#allocation8 + $0xf8] sm:$0xff]
    %v1896 = vld [vmem:[#allocation8 + $0x100] sm:$0xff]
    %v1897 = vld [vmem:[#allocation8 + $0x108] sm:$0xff]
    %v1898 = vld [vmem:[#allocation8 + $0x110] sm:$0xff]
    %v1899 = vld [vmem:[#allocation8 + $0x118] sm:$0xff]
    %v1900 = vld [vmem:[#allocation8 + $0x120] sm:$0xff]
    %v1901 = vld [vmem:[#allocation8 + $0x128] sm:$0xff]
    %v1902 = vld [vmem:[#allocation8 + $0x130] sm:$0xff]
    %v1903 = vld [vmem:[#allocation8 + $0x138] sm:$0xff]
    %v1904 = vld [vmem:[#allocation8 + $0x140] sm:$0xff]
    %v1905 = vld [vmem:[#allocation8 + $0x148] sm:$0xff]
    %v1906 = vld [vmem:[#allocation8 + $0x150] sm:$0xff]
    %v1907 = vld [vmem:[#allocation8 + $0x158] sm:$0xff]
    %v1908 = vld [vmem:[#allocation8 + $0x160] sm:$0xff]
    %v1909 = vld [vmem:[#allocation8 + $0x168] sm:$0xff]
    %v1910 = vld [vmem:[#allocation8 + $0x170] sm:$0xff]
    %v1911 = vld [vmem:[#allocation8 + $0x178] sm:$0xff]
    %v1912 = vld [vmem:[#allocation8 + $0x180] sm:$0xff]
    %v1913 = vld [vmem:[#allocation8 + $0x188] sm:$0xff]
    %v1914 = vld [vmem:[#allocation8 + $0x190] sm:$0xff]
    %v1915 = vld [vmem:[#allocation8 + $0x198] sm:$0xff]
    %v1916 = vld [vmem:[#allocation8 + $0x1a0] sm:$0xff]
    %v1917 = vld [vmem:[#allocation8 + $0x1a8] sm:$0xff]
    %v1918 = vld [vmem:[#allocation8 + $0x1b0] sm:$0xff]
    %v1919 = vld [vmem:[#allocation8 + $0x1b8] sm:$0xff]
    %v1920 = vld [vmem:[#allocation8 + $0x1c0] sm:$0xff]
    %v1921 = vld [vmem:[#allocation8 + $0x1c8] sm:$0xff]
    %v1922 = vld [vmem:[#allocation8 + $0x1d0] sm:$0xff]
    %v1923 = vld [vmem:[#allocation8 + $0x1d8] sm:$0xff]
    %v1924 = vld [vmem:[#allocation8 + $0x1e0] sm:$0xff]
    %v1925 = vld [vmem:[#allocation8 + $0x1e8] sm:$0xff]
    %v1926 = vld [vmem:[#allocation8 + $0x1f0] sm:$0xff]
    %v1927 = vld [vmem:[#allocation8 + $0x1f8] sm:$0xff]
    %v1928 = vld [vmem:[#allocation8 + $0x200] sm:$0xff]
    %v1929 = vld [vmem:[#allocation8 + $0x208] sm:$0xff]
    %v1930 = vld [vmem:[#allocation8 + $0x210] sm:$0xff]
    %v1931 = vld [vmem:[#allocation8 + $0x218] sm:$0xff]
    %v1932 = vld [vmem:[#allocation8 + $0x220] sm:$0xff]
    %v1933 = vld [vmem:[#allocation8 + $0x228] sm:$0xff]
    %v1934 = vld [vmem:[#allocation8 + $0x230] sm:$0xff]
    %v1935 = vld [vmem:[#allocation8 + $0x238] sm:$0xff]
    %v1936 = vld [vmem:[#allocation8 + $0x240] sm:$0xff]
    %v1937 = vld [vmem:[#allocation8 + $0x248] sm:$0xff]
    %v1938 = vld [vmem:[#allocation8 + $0x250] sm:$0xff]
    %v1939 = vld [vmem:[#allocation8 + $0x258] sm:$0xff]
    %v1940 = vld [vmem:[#allocation8 + $0x260] sm:$0xff]
    %v1941 = vld [vmem:[#allocation8 + $0x268] sm:$0xff]
    %v1942 = vld [vmem:[#allocation8 + $0x270] sm:$0xff]
    %v1943 = vld [vmem:[#allocation8 + $0x278] sm:$0xff]
    %v1944 = vld [vmem:[#allocation8 + $0x280] sm:$0xff]
    %v1945 = vld [vmem:[#allocation8 + $0x288] sm:$0xff]
    %v1946 = vld [vmem:[#allocation8 + $0x290] sm:$0xff]
    %v1947 = vld [vmem:[#allocation8 + $0x298] sm:$0xff]
    %v1948 = vld [vmem:[#allocation8 + $0x2a0] sm:$0xff]
    %v1949 = vld [vmem:[#allocation8 + $0x2a8] sm:$0xff]
    %v1950 = vld [vmem:[#allocation8 + $0x2b0] sm:$0xff]
    %v1951 = vld [vmem:[#allocation8 + $0x2b8] sm:$0xff]
    %v1952 = vld [vmem:[#allocation8 + $0x2c0] sm:$0xff]
    %v1953 = vld [vmem:[#allocation8 + $0x2c8] sm:$0xff]
    %v1954 = vld [vmem:[#allocation8 + $0x2d0] sm:$0xff]
    %v1955 = vld [vmem:[#allocation8 + $0x2d8] sm:$0xff]
    %v1956 = vld [vmem:[#allocation8 + $0x2e0] sm:$0xff]
    %v1957 = vld [vmem:[#allocation8 + $0x2e8] sm:$0xff]
    %v1958 = vld [vmem:[#allocation8 + $0x2f0] sm:$0xff]
    %v1959 = vld [vmem:[#allocation8 + $0x2f8] sm:$0xff]
    %v1960 = vld [vmem:[#allocation8 + $0x300] sm:$0xff]
    %v1961 = vld [vmem:[#allocation8 + $0x308] sm:$0xff]
    %v1962 = vld [vmem:[#allocation8 + $0x310] sm:$0xff]
    %v1963 = vld [vmem:[#allocation8 + $0x318] sm:$0xff]
    %v1964 = vld [vmem:[#allocation8 + $0x320] sm:$0xff]
    %v1965 = vld [vmem:[#allocation8 + $0x328] sm:$0xff]
    %v1966 = vld [vmem:[#allocation8 + $0x330] sm:$0xff]
    %v1967 = vld [vmem:[#allocation8 + $0x338] sm:$0xff]
    %v1968 = vld [vmem:[#allocation8 + $0x340] sm:$0xff]
    %v1969 = vld [vmem:[#allocation8 + $0x348] sm:$0xff]
    %v1970 = vld [vmem:[#allocation8 + $0x350] sm:$0xff]
    %v1971 = vld [vmem:[#allocation8 + $0x358] sm:$0xff]
    %v1972 = vld [vmem:[#allocation8 + $0x360] sm:$0xff]
    %v1973 = vld [vmem:[#allocation8 + $0x368] sm:$0xff]
    %v1974 = vld [vmem:[#allocation8 + $0x370] sm:$0xff]
    %v1975 = vld [vmem:[#allocation8 + $0x378] sm:$0xff]
    %v1976 = vld [vmem:[#allocation8 + $0x380] sm:$0xff]
    %v1977 = vld [vmem:[#allocation8 + $0x388] sm:$0xff]
    %v1978 = vld [vmem:[#allocation8 + $0x390] sm:$0xff]
    %v1979 = vld [vmem:[#allocation8 + $0x398] sm:$0xff]
    %v1980 = vld [vmem:[#allocation8 + $0x3a0] sm:$0xff]
    %v1981 = vld [vmem:[#allocation8 + $0x3a8] sm:$0xff]
    %v1982 = vld [vmem:[#allocation8 + $0x3b0] sm:$0xff]
    %v1983 = vld [vmem:[#allocation8 + $0x3b8] sm:$0xff]
    %v1984 = vld [vmem:[#allocation8 + $0x3c0] sm:$0xff]
    %v1985 = vld [vmem:[#allocation8 + $0x3c8] sm:$0xff]
    %v1986 = vld [vmem:[#allocation8 + $0x3d0] sm:$0xff]
    %v1987 = vld [vmem:[#allocation8 + $0x3d8] sm:$0xff]
    %v1988 = vld [vmem:[#allocation8 + $0x3e0] sm:$0xff]
    %v1989 = vld [vmem:[#allocation8 + $0x3e8] sm:$0xff]
    %v1990 = vld [vmem:[#allocation8 + $0x3f0] sm:$0xff]
    %v1991 = vld [vmem:[#allocation8 + $0x3f8] sm:$0xff]
    %v1993 = vlaneseq
    %v1994 = vshrl.u32 %v1993, 7
    %v1995 = vsub.s32 0, %v1994
    %v1996 = vrot.slane %v140, %v1995
    %v1997 = vlaneseq
    %v1998 = vshrl.u32 %v1997, 7
    %v1999 = vsub.s32 1, %v1998
    %v2000 = vrot.slane %v140, %v1999
    %v2001 = vlaneseq
    %v2002 = vshrl.u32 %v2001, 7
    %v2003 = vsub.s32 2, %v2002
    %v2004 = vrot.slane %v140, %v2003
    %v2005 = vlaneseq
    %v2006 = vshrl.u32 %v2005, 7
    %v2007 = vsub.s32 3, %v2006
    %v2008 = vrot.slane %v140, %v2007
    %v2141 = vunpack.c.l.b16 %v1864
    %v2142 = vunpack.c.h.b16 %v1864
    %v2143 = vunpack.c.l.b16 %v1865
    %v2144 = vunpack.c.h.b16 %v1865
    %v2145 = vunpack.c.l.b16 %v1866
    %v2146 = vunpack.c.h.b16 %v1866
    %v2147 = vunpack.c.l.b16 %v1867
    %v2148 = vunpack.c.h.b16 %v1867
    %v2149 = vunpack.c.l.b16 %v1868
    %v2150 = vunpack.c.h.b16 %v1868
    %v2151 = vunpack.c.l.b16 %v1869
    %v2152 = vunpack.c.h.b16 %v1869
    %v2153 = vunpack.c.l.b16 %v1870
    %v2154 = vunpack.c.h.b16 %v1870
    %v2155 = vunpack.c.l.b16 %v1871
    %v2156 = vunpack.c.h.b16 %v1871
    %v2157 = vunpack.c.l.b16 %v1872
    %v2158 = vunpack.c.h.b16 %v1872
    %v2159 = vunpack.c.l.b16 %v1873
    %v2160 = vunpack.c.h.b16 %v1873
    %v2161 = vunpack.c.l.b16 %v1874
    %v2162 = vunpack.c.h.b16 %v1874
    %v2163 = vunpack.c.l.b16 %v1875
    %v2164 = vunpack.c.h.b16 %v1875
    %v2165 = vunpack.c.l.b16 %v1876
    %v2166 = vunpack.c.h.b16 %v1876
    %v2167 = vunpack.c.l.b16 %v1877
    %v2168 = vunpack.c.h.b16 %v1877
    %v2169 = vunpack.c.l.b16 %v1878
    %v2170 = vunpack.c.h.b16 %v1878
    %v2171 = vunpack.c.l.b16 %v1879
    %v2172 = vunpack.c.h.b16 %v1879
    %v2173 = vunpack.c.l.b16 %v1880
    %v2174 = vunpack.c.h.b16 %v1880
    %v2175 = vunpack.c.l.b16 %v1881
    %v2176 = vunpack.c.h.b16 %v1881
    %v2177 = vunpack.c.l.b16 %v1882
    %v2178 = vunpack.c.h.b16 %v1882
    %v2179 = vunpack.c.l.b16 %v1883
    %v2180 = vunpack.c.h.b16 %v1883
    %v2181 = vunpack.c.l.b16 %v1884
    %v2182 = vunpack.c.h.b16 %v1884
    %v2183 = vunpack.c.l.b16 %v1885
    %v2184 = vunpack.c.h.b16 %v1885
    %v2185 = vunpack.c.l.b16 %v1886
    %v2186 = vunpack.c.h.b16 %v1886
    %v2187 = vunpack.c.l.b16 %v1887
    %v2188 = vunpack.c.h.b16 %v1887
    %v2189 = vunpack.c.l.b16 %v1888
    %v2190 = vunpack.c.h.b16 %v1888
    %v2191 = vunpack.c.l.b16 %v1889
    %v2192 = vunpack.c.h.b16 %v1889
    %v2193 = vunpack.c.l.b16 %v1890
    %v2194 = vunpack.c.h.b16 %v1890
    %v2195 = vunpack.c.l.b16 %v1891
    %v2196 = vunpack.c.h.b16 %v1891
    %v2197 = vunpack.c.l.b16 %v1892
    %v2198 = vunpack.c.h.b16 %v1892
    %v2199 = vunpack.c.l.b16 %v1893
    %v2200 = vunpack.c.h.b16 %v1893
    %v2201 = vunpack.c.l.b16 %v1894
    %v2202 = vunpack.c.h.b16 %v1894
    %v2203 = vunpack.c.l.b16 %v1895
    %v2204 = vunpack.c.h.b16 %v1895
    %v2205 = vunpack.c.l.b16 %v1896
    %v2206 = vunpack.c.h.b16 %v1896
    %v2207 = vunpack.c.l.b16 %v1897
    %v2208 = vunpack.c.h.b16 %v1897
    %v2209 = vunpack.c.l.b16 %v1898
    %v2210 = vunpack.c.h.b16 %v1898
    %v2211 = vunpack.c.l.b16 %v1899
    %v2212 = vunpack.c.h.b16 %v1899
    %v2213 = vunpack.c.l.b16 %v1900
    %v2214 = vunpack.c.h.b16 %v1900
    %v2215 = vunpack.c.l.b16 %v1901
    %v2216 = vunpack.c.h.b16 %v1901
    %v2217 = vunpack.c.l.b16 %v1902
    %v2218 = vunpack.c.h.b16 %v1902
    %v2219 = vunpack.c.l.b16 %v1903
    %v2220 = vunpack.c.h.b16 %v1903
    %v2221 = vunpack.c.l.b16 %v1904
    %v2222 = vunpack.c.h.b16 %v1904
    %v2223 = vunpack.c.l.b16 %v1905
    %v2224 = vunpack.c.h.b16 %v1905
    %v2225 = vunpack.c.l.b16 %v1906
    %v2226 = vunpack.c.h.b16 %v1906
    %v2227 = vunpack.c.l.b16 %v1907
    %v2228 = vunpack.c.h.b16 %v1907
    %v2229 = vunpack.c.l.b16 %v1908
    %v2230 = vunpack.c.h.b16 %v1908
    %v2231 = vunpack.c.l.b16 %v1909
    %v2232 = vunpack.c.h.b16 %v1909
    %v2233 = vunpack.c.l.b16 %v1910
    %v2234 = vunpack.c.h.b16 %v1910
    %v2235 = vunpack.c.l.b16 %v1911
    %v2236 = vunpack.c.h.b16 %v1911
    %v2237 = vunpack.c.l.b16 %v1912
    %v2238 = vunpack.c.h.b16 %v1912
    %v2239 = vunpack.c.l.b16 %v1913
    %v2240 = vunpack.c.h.b16 %v1913
    %v2241 = vunpack.c.l.b16 %v1914
    %v2242 = vunpack.c.h.b16 %v1914
    %v2243 = vunpack.c.l.b16 %v1915
    %v2244 = vunpack.c.h.b16 %v1915
    %v2245 = vunpack.c.l.b16 %v1916
    %v2246 = vunpack.c.h.b16 %v1916
    %v2247 = vunpack.c.l.b16 %v1917
    %v2248 = vunpack.c.h.b16 %v1917
    %v2249 = vunpack.c.l.b16 %v1918
    %v2250 = vunpack.c.h.b16 %v1918
    %v2251 = vunpack.c.l.b16 %v1919
    %v2252 = vunpack.c.h.b16 %v1919
    %v2253 = vunpack.c.l.b16 %v1920
    %v2254 = vunpack.c.h.b16 %v1920
    %v2255 = vunpack.c.l.b16 %v1921
    %v2256 = vunpack.c.h.b16 %v1921
    %v2257 = vunpack.c.l.b16 %v1922
    %v2258 = vunpack.c.h.b16 %v1922
    %v2259 = vunpack.c.l.b16 %v1923
    %v2260 = vunpack.c.h.b16 %v1923
    %v2261 = vunpack.c.l.b16 %v1924
    %v2262 = vunpack.c.h.b16 %v1924
    %v2263 = vunpack.c.l.b16 %v1925
    %v2264 = vunpack.c.h.b16 %v1925
    %v2265 = vunpack.c.l.b16 %v1926
    %v2266 = vunpack.c.h.b16 %v1926
    %v2267 = vunpack.c.l.b16 %v1927
    %v2268 = vunpack.c.h.b16 %v1927
    %v2269 = vunpack.c.l.b16 %v1928
    %v2270 = vunpack.c.h.b16 %v1928
    %v2271 = vunpack.c.l.b16 %v1929
    %v2272 = vunpack.c.h.b16 %v1929
    %v2273 = vunpack.c.l.b16 %v1930
    %v2274 = vunpack.c.h.b16 %v1930
    %v2275 = vunpack.c.l.b16 %v1931
    %v2276 = vunpack.c.h.b16 %v1931
    %v2277 = vunpack.c.l.b16 %v1932
    %v2278 = vunpack.c.h.b16 %v1932
    %v2279 = vunpack.c.l.b16 %v1933
    %v2280 = vunpack.c.h.b16 %v1933
    %v2281 = vunpack.c.l.b16 %v1934
    %v2282 = vunpack.c.h.b16 %v1934
    %v2283 = vunpack.c.l.b16 %v1935
    %v2284 = vunpack.c.h.b16 %v1935
    %v2285 = vunpack.c.l.b16 %v1936
    %v2286 = vunpack.c.h.b16 %v1936
    %v2287 = vunpack.c.l.b16 %v1937
    %v2288 = vunpack.c.h.b16 %v1937
    %v2289 = vunpack.c.l.b16 %v1938
    %v2290 = vunpack.c.h.b16 %v1938
    %v2291 = vunpack.c.l.b16 %v1939
    %v2292 = vunpack.c.h.b16 %v1939
    %v2293 = vunpack.c.l.b16 %v1940
    %v2294 = vunpack.c.h.b16 %v1940
    %v2295 = vunpack.c.l.b16 %v1941
    %v2296 = vunpack.c.h.b16 %v1941
    %v2297 = vunpack.c.l.b16 %v1942
    %v2298 = vunpack.c.h.b16 %v1942
    %v2299 = vunpack.c.l.b16 %v1943
    %v2300 = vunpack.c.h.b16 %v1943
    %v2301 = vunpack.c.l.b16 %v1944
    %v2302 = vunpack.c.h.b16 %v1944
    %v2303 = vunpack.c.l.b16 %v1945
    %v2304 = vunpack.c.h.b16 %v1945
    %v2305 = vunpack.c.l.b16 %v1946
    %v2306 = vunpack.c.h.b16 %v1946
    %v2307 = vunpack.c.l.b16 %v1947
    %v2308 = vunpack.c.h.b16 %v1947
    %v2309 = vunpack.c.l.b16 %v1948
    %v2310 = vunpack.c.h.b16 %v1948
    %v2311 = vunpack.c.l.b16 %v1949
    %v2312 = vunpack.c.h.b16 %v1949
    %v2313 = vunpack.c.l.b16 %v1950
    %v2314 = vunpack.c.h.b16 %v1950
    %v2315 = vunpack.c.l.b16 %v1951
    %v2316 = vunpack.c.h.b16 %v1951
    %v2317 = vunpack.c.l.b16 %v1952
    %v2318 = vunpack.c.h.b16 %v1952
    %v2319 = vunpack.c.l.b16 %v1953
    %v2320 = vunpack.c.h.b16 %v1953
    %v2321 = vunpack.c.l.b16 %v1954
    %v2322 = vunpack.c.h.b16 %v1954
    %v2323 = vunpack.c.l.b16 %v1955
    %v2324 = vunpack.c.h.b16 %v1955
    %v2325 = vunpack.c.l.b16 %v1956
    %v2326 = vunpack.c.h.b16 %v1956
    %v2327 = vunpack.c.l.b16 %v1957
    %v2328 = vunpack.c.h.b16 %v1957
    %v2329 = vunpack.c.l.b16 %v1958
    %v2330 = vunpack.c.h.b16 %v1958
    %v2331 = vunpack.c.l.b16 %v1959
    %v2332 = vunpack.c.h.b16 %v1959
    %v2333 = vunpack.c.l.b16 %v1960
    %v2334 = vunpack.c.h.b16 %v1960
    %v2335 = vunpack.c.l.b16 %v1961
    %v2336 = vunpack.c.h.b16 %v1961
    %v2337 = vunpack.c.l.b16 %v1962
    %v2338 = vunpack.c.h.b16 %v1962
    %v2339 = vunpack.c.l.b16 %v1963
    %v2340 = vunpack.c.h.b16 %v1963
    %v2341 = vunpack.c.l.b16 %v1964
    %v2342 = vunpack.c.h.b16 %v1964
    %v2343 = vunpack.c.l.b16 %v1965
    %v2344 = vunpack.c.h.b16 %v1965
    %v2345 = vunpack.c.l.b16 %v1966
    %v2346 = vunpack.c.h.b16 %v1966
    %v2347 = vunpack.c.l.b16 %v1967
    %v2348 = vunpack.c.h.b16 %v1967
    %v2349 = vunpack.c.l.b16 %v1968
    %v2350 = vunpack.c.h.b16 %v1968
    %v2351 = vunpack.c.l.b16 %v1969
    %v2352 = vunpack.c.h.b16 %v1969
    %v2353 = vunpack.c.l.b16 %v1970
    %v2354 = vunpack.c.h.b16 %v1970
    %v2355 = vunpack.c.l.b16 %v1971
    %v2356 = vunpack.c.h.b16 %v1971
    %v2357 = vunpack.c.l.b16 %v1972
    %v2358 = vunpack.c.h.b16 %v1972
    %v2359 = vunpack.c.l.b16 %v1973
    %v2360 = vunpack.c.h.b16 %v1973
    %v2361 = vunpack.c.l.b16 %v1974
    %v2362 = vunpack.c.h.b16 %v1974
    %v2363 = vunpack.c.l.b16 %v1975
    %v2364 = vunpack.c.h.b16 %v1975
    %v2365 = vunpack.c.l.b16 %v1976
    %v2366 = vunpack.c.h.b16 %v1976
    %v2367 = vunpack.c.l.b16 %v1977
    %v2368 = vunpack.c.h.b16 %v1977
    %v2369 = vunpack.c.l.b16 %v1978
    %v2370 = vunpack.c.h.b16 %v1978
    %v2371 = vunpack.c.l.b16 %v1979
    %v2372 = vunpack.c.h.b16 %v1979
    %v2373 = vunpack.c.l.b16 %v1980
    %v2374 = vunpack.c.h.b16 %v1980
    %v2375 = vunpack.c.l.b16 %v1981
    %v2376 = vunpack.c.h.b16 %v1981
    %v2377 = vunpack.c.l.b16 %v1982
    %v2378 = vunpack.c.h.b16 %v1982
    %v2379 = vunpack.c.l.b16 %v1983
    %v2380 = vunpack.c.h.b16 %v1983
    %v2381 = vunpack.c.l.b16 %v1984
    %v2382 = vunpack.c.h.b16 %v1984
    %v2383 = vunpack.c.l.b16 %v1985
    %v2384 = vunpack.c.h.b16 %v1985
    %v2385 = vunpack.c.l.b16 %v1986
    %v2386 = vunpack.c.h.b16 %v1986
    %v2387 = vunpack.c.l.b16 %v1987
    %v2388 = vunpack.c.h.b16 %v1987
    %v2389 = vunpack.c.l.b16 %v1988
    %v2390 = vunpack.c.h.b16 %v1988
    %v2391 = vunpack.c.l.b16 %v1989
    %v2392 = vunpack.c.h.b16 %v1989
    %v2393 = vunpack.c.l.b16 %v1990
    %v2394 = vunpack.c.h.b16 %v1990
    %v2395 = vunpack.c.l.b16 %v1991
    %v2396 = vunpack.c.h.b16 %v1991
    %v2397 = vpack.c.b16 %v2145, %v2141
    %v2398 = vpack.c.b16 %v2146, %v2142
    %v2399 = vpack.c.b16 %v2147, %v2143
    %v2400 = vpack.c.b16 %v2148, %v2144
    %v2401 = vpack.c.b16 %v2153, %v2149
    %v2402 = vpack.c.b16 %v2154, %v2150
    %v2403 = vpack.c.b16 %v2155, %v2151
    %v2404 = vpack.c.b16 %v2156, %v2152
    %v2405 = vpack.c.b16 %v2161, %v2157
    %v2406 = vpack.c.b16 %v2162, %v2158
    %v2407 = vpack.c.b16 %v2163, %v2159
    %v2408 = vpack.c.b16 %v2164, %v2160
    %v2409 = vpack.c.b16 %v2169, %v2165
    %v2410 = vpack.c.b16 %v2170, %v2166
    %v2411 = vpack.c.b16 %v2171, %v2167
    %v2412 = vpack.c.b16 %v2172, %v2168
    %v2413 = vpack.c.b16 %v2177, %v2173
    %v2414 = vpack.c.b16 %v2178, %v2174
    %v2415 = vpack.c.b16 %v2179, %v2175
    %v2416 = vpack.c.b16 %v2180, %v2176
    %v2417 = vpack.c.b16 %v2185, %v2181
    %v2418 = vpack.c.b16 %v2186, %v2182
    %v2419 = vpack.c.b16 %v2187, %v2183
    %v2420 = vpack.c.b16 %v2188, %v2184
    %v2421 = vpack.c.b16 %v2193, %v2189
    %v2422 = vpack.c.b16 %v2194, %v2190
    %v2423 = vpack.c.b16 %v2195, %v2191
    %v2424 = vpack.c.b16 %v2196, %v2192
    %v2425 = vpack.c.b16 %v2201, %v2197
    %v2426 = vpack.c.b16 %v2202, %v2198
    %v2427 = vpack.c.b16 %v2203, %v2199
    %v2428 = vpack.c.b16 %v2204, %v2200
    %v2429 = vpack.c.b16 %v2209, %v2205
    %v2430 = vpack.c.b16 %v2210, %v2206
    %v2431 = vpack.c.b16 %v2211, %v2207
    %v2432 = vpack.c.b16 %v2212, %v2208
    %v2433 = vpack.c.b16 %v2217, %v2213
    %v2434 = vpack.c.b16 %v2218, %v2214
    %v2435 = vpack.c.b16 %v2219, %v2215
    %v2436 = vpack.c.b16 %v2220, %v2216
    %v2437 = vpack.c.b16 %v2225, %v2221
    %v2438 = vpack.c.b16 %v2226, %v2222
    %v2439 = vpack.c.b16 %v2227, %v2223
    %v2440 = vpack.c.b16 %v2228, %v2224
    %v2441 = vpack.c.b16 %v2233, %v2229
    %v2442 = vpack.c.b16 %v2234, %v2230
    %v2443 = vpack.c.b16 %v2235, %v2231
    %v2444 = vpack.c.b16 %v2236, %v2232
    %v2445 = vpack.c.b16 %v2241, %v2237
    %v2446 = vpack.c.b16 %v2242, %v2238
    %v2447 = vpack.c.b16 %v2243, %v2239
    %v2448 = vpack.c.b16 %v2244, %v2240
    %v2449 = vpack.c.b16 %v2249, %v2245
    %v2450 = vpack.c.b16 %v2250, %v2246
    %v2451 = vpack.c.b16 %v2251, %v2247
    %v2452 = vpack.c.b16 %v2252, %v2248
    %v2453 = vpack.c.b16 %v2257, %v2253
    %v2454 = vpack.c.b16 %v2258, %v2254
    %v2455 = vpack.c.b16 %v2259, %v2255
    %v2456 = vpack.c.b16 %v2260, %v2256
    %v2457 = vpack.c.b16 %v2265, %v2261
    %v2458 = vpack.c.b16 %v2266, %v2262
    %v2459 = vpack.c.b16 %v2267, %v2263
    %v2460 = vpack.c.b16 %v2268, %v2264
    %v2461 = vpack.c.b16 %v2273, %v2269
    %v2462 = vpack.c.b16 %v2274, %v2270
    %v2463 = vpack.c.b16 %v2275, %v2271
    %v2464 = vpack.c.b16 %v2276, %v2272
    %v2465 = vpack.c.b16 %v2281, %v2277
    %v2466 = vpack.c.b16 %v2282, %v2278
    %v2467 = vpack.c.b16 %v2283, %v2279
    %v2468 = vpack.c.b16 %v2284, %v2280
    %v2469 = vpack.c.b16 %v2289, %v2285
    %v2470 = vpack.c.b16 %v2290, %v2286
    %v2471 = vpack.c.b16 %v2291, %v2287
    %v2472 = vpack.c.b16 %v2292, %v2288
    %v2473 = vpack.c.b16 %v2297, %v2293
    %v2474 = vpack.c.b16 %v2298, %v2294
    %v2475 = vpack.c.b16 %v2299, %v2295
    %v2476 = vpack.c.b16 %v2300, %v2296
    %v2477 = vpack.c.b16 %v2305, %v2301
    %v2478 = vpack.c.b16 %v2306, %v2302
    %v2479 = vpack.c.b16 %v2307, %v2303
    %v2480 = vpack.c.b16 %v2308, %v2304
    %v2481 = vpack.c.b16 %v2313, %v2309
    %v2482 = vpack.c.b16 %v2314, %v2310
    %v2483 = vpack.c.b16 %v2315, %v2311
    %v2484 = vpack.c.b16 %v2316, %v2312
    %v2485 = vpack.c.b16 %v2321, %v2317
    %v2486 = vpack.c.b16 %v2322, %v2318
    %v2487 = vpack.c.b16 %v2323, %v2319
    %v2488 = vpack.c.b16 %v2324, %v2320
    %v2489 = vpack.c.b16 %v2329, %v2325
    %v2490 = vpack.c.b16 %v2330, %v2326
    %v2491 = vpack.c.b16 %v2331, %v2327
    %v2492 = vpack.c.b16 %v2332, %v2328
    %v2493 = vpack.c.b16 %v2337, %v2333
    %v2494 = vpack.c.b16 %v2338, %v2334
    %v2495 = vpack.c.b16 %v2339, %v2335
    %v2496 = vpack.c.b16 %v2340, %v2336
    %v2497 = vpack.c.b16 %v2345, %v2341
    %v2498 = vpack.c.b16 %v2346, %v2342
    %v2499 = vpack.c.b16 %v2347, %v2343
    %v2500 = vpack.c.b16 %v2348, %v2344
    %v2501 = vpack.c.b16 %v2353, %v2349
    %v2502 = vpack.c.b16 %v2354, %v2350
    %v2503 = vpack.c.b16 %v2355, %v2351
    %v2504 = vpack.c.b16 %v2356, %v2352
    %v2505 = vpack.c.b16 %v2361, %v2357
    %v2506 = vpack.c.b16 %v2362, %v2358
    %v2507 = vpack.c.b16 %v2363, %v2359
    %v2508 = vpack.c.b16 %v2364, %v2360
    %v2509 = vpack.c.b16 %v2369, %v2365
    %v2510 = vpack.c.b16 %v2370, %v2366
    %v2511 = vpack.c.b16 %v2371, %v2367
    %v2512 = vpack.c.b16 %v2372, %v2368
    %v2513 = vpack.c.b16 %v2377, %v2373
    %v2514 = vpack.c.b16 %v2378, %v2374
    %v2515 = vpack.c.b16 %v2379, %v2375
    %v2516 = vpack.c.b16 %v2380, %v2376
    %v2517 = vpack.c.b16 %v2385, %v2381
    %v2518 = vpack.c.b16 %v2386, %v2382
    %v2519 = vpack.c.b16 %v2387, %v2383
    %v2520 = vpack.c.b16 %v2388, %v2384
    %v2521 = vpack.c.b16 %v2393, %v2389
    %v2522 = vpack.c.b16 %v2394, %v2390
    %v2523 = vpack.c.b16 %v2395, %v2391
    %v2524 = vpack.c.b16 %v2396, %v2392
    %2653 = vmatprep.subr.bf16.mxu0 %v2398
    %2654 = vmatpush1.bf16.msra.mxu0 %v2397
    %2655 = vmatprep.subr.bf16.mxu0 %v2402
    %2656 = vmatpush1.bf16.msra.mxu0 %v2401
    %2657 = vmatprep.subr.bf16.mxu0 %v2406
    %2658 = vmatpush1.bf16.msra.mxu0 %v2405
    %2659 = vmatprep.subr.bf16.mxu0 %v2410
    %2660 = vmatpush1.bf16.msra.mxu0 %v2409
    %2661 = vmatprep.subr.bf16.mxu0 %v2414
    %2662 = vmatpush1.bf16.msra.mxu0 %v2413
    %2663 = vmatprep.subr.bf16.mxu0 %v2418
    %2664 = vmatpush1.bf16.msra.mxu0 %v2417
    %2665 = vmatprep.subr.bf16.mxu0 %v2422
    %2666 = vmatpush1.bf16.msra.mxu0 %v2421
    %2667 = vmatprep.subr.bf16.mxu0 %v2426
    %2668 = vmatpush1.bf16.msra.mxu0 %v2425
    %2669 = vmatprep.subr.bf16.mxu0 %v2430
    %2670 = vmatpush1.bf16.msra.mxu0 %v2429
    %2671 = vmatprep.subr.bf16.mxu0 %v2434
    %2672 = vmatpush1.bf16.msra.mxu0 %v2433
    %2673 = vmatprep.subr.bf16.mxu0 %v2438
    %2674 = vmatpush1.bf16.msra.mxu0 %v2437
    %2675 = vmatprep.subr.bf16.mxu0 %v2442
    %2676 = vmatpush1.bf16.msra.mxu0 %v2441
    %2677 = vmatprep.subr.bf16.mxu0 %v2446
    %2678 = vmatpush1.bf16.msra.mxu0 %v2445
    %2679 = vmatprep.subr.bf16.mxu0 %v2450
    %2680 = vmatpush1.bf16.msra.mxu0 %v2449
    %2681 = vmatprep.subr.bf16.mxu0 %v2454
    %2682 = vmatpush1.bf16.msra.mxu0 %v2453
    %2683 = vmatprep.subr.bf16.mxu0 %v2458
    %2684 = vmatpush1.bf16.msra.mxu0 %v2457
    %2685 = vmatprep.mubr.bf16.mxu0 %v1861
    %2686 = vmatmul.mubr.bf16.gmra.mrb[0].mxu0 %v1860
    %v2687 = vpop.f32.mrb[0].mxu0
    %v2688 = vadd.f32 %v1996, %v2687
    %v2689 = vpop.f32.mrb[0].mxu0
    %v2690 = vadd.f32 %v2000, %v2689
    %v2691 = vpop.f32.mrb[0].mxu0
    %v2692 = vpop.f32.mrb[0].mxu0
    %2693 = vdwg.mxu0
    %2694 = vmatprep.subr.bf16.mxu0 %v2462
    %2695 = vmatpush1.bf16.msra.mxu0 %v2461
    %2696 = vmatprep.subr.bf16.mxu0 %v2466
    %2697 = vmatpush1.bf16.msra.mxu0 %v2465
    %2698 = vmatprep.subr.bf16.mxu0 %v2470
    %2699 = vmatpush1.bf16.msra.mxu0 %v2469
    %2700 = vmatprep.subr.bf16.mxu0 %v2474
    %2701 = vmatpush1.bf16.msra.mxu0 %v2473
    %2702 = vmatprep.subr.bf16.mxu0 %v2478
    %2703 = vmatpush1.bf16.msra.mxu0 %v2477
    %2704 = vmatprep.subr.bf16.mxu0 %v2482
    %2705 = vmatpush1.bf16.msra.mxu0 %v2481
    %2706 = vmatprep.subr.bf16.mxu0 %v2486
    %2707 = vmatpush1.bf16.msra.mxu0 %v2485
    %2708 = vmatprep.subr.bf16.mxu0 %v2490
    %2709 = vmatpush1.bf16.msra.mxu0 %v2489
    %2710 = vmatprep.subr.bf16.mxu0 %v2494
    %2711 = vmatpush1.bf16.msra.mxu0 %v2493
    %2712 = vmatprep.subr.bf16.mxu0 %v2498
    %2713 = vmatpush1.bf16.msra.mxu0 %v2497
    %2714 = vmatprep.subr.bf16.mxu0 %v2502
    %2715 = vmatpush1.bf16.msra.mxu0 %v2501
    %2716 = vmatprep.subr.bf16.mxu0 %v2506
    %2717 = vmatpush1.bf16.msra.mxu0 %v2505
    %2718 = vmatprep.subr.bf16.mxu0 %v2510
    %2719 = vmatpush1.bf16.msra.mxu0 %v2509
    %2720 = vmatprep.subr.bf16.mxu0 %v2514
    %2721 = vmatpush1.bf16.msra.mxu0 %v2513
    %2722 = vmatprep.subr.bf16.mxu0 %v2518
    %2723 = vmatpush1.bf16.msra.mxu0 %v2517
    %2724 = vmatprep.subr.bf16.mxu0 %v2522
    %2725 = vmatpush1.bf16.msra.mxu0 %v2521
    %2726 = vmatprep.mubr.bf16.mxu0 %v1863
    %2727 = vmatmul.mubr.bf16.gmra.mrb[0].mxu0 %v1862
    %v2728 = vpop.f32.mrb[0].mxu0
    %v2729 = vadd.f32 %v2688, %v2728
    %v2730 = vpop.f32.mrb[0].mxu0
    %v2731 = vadd.f32 %v2690, %v2730
    %v2732 = vpop.f32.mrb[0].mxu0
    %v2733 = vpop.f32.mrb[0].mxu0
    %2734 = vdwg.mxu0
    %2735 = vmatprep.subr.bf16.mxu0 %v2400
    %2736 = vmatpush1.bf16.msra.mxu0 %v2399
    %2737 = vmatprep.subr.bf16.mxu0 %v2404
    %2738 = vmatpush1.bf16.msra.mxu0 %v2403
    %2739 = vmatprep.subr.bf16.mxu0 %v2408
    %2740 = vmatpush1.bf16.msra.mxu0 %v2407
    %2741 = vmatprep.subr.bf16.mxu0 %v2412
    %2742 = vmatpush1.bf16.msra.mxu0 %v2411
    %2743 = vmatprep.subr.bf16.mxu0 %v2416
    %2744 = vmatpush1.bf16.msra.mxu0 %v2415
    %2745 = vmatprep.subr.bf16.mxu0 %v2420
    %2746 = vmatpush1.bf16.msra.mxu0 %v2419
    %2747 = vmatprep.subr.bf16.mxu0 %v2424
    %2748 = vmatpush1.bf16.msra.mxu0 %v2423
    %2749 = vmatprep.subr.bf16.mxu0 %v2428
    %2750 = vmatpush1.bf16.msra.mxu0 %v2427
    %2751 = vmatprep.subr.bf16.mxu0 %v2432
    %2752 = vmatpush1.bf16.msra.mxu0 %v2431
    %2753 = vmatprep.subr.bf16.mxu0 %v2436
    %2754 = vmatpush1.bf16.msra.mxu0 %v2435
    %2755 = vmatprep.subr.bf16.mxu0 %v2440
    %2756 = vmatpush1.bf16.msra.mxu0 %v2439
    %2757 = vmatprep.subr.bf16.mxu0 %v2444
    %2758 = vmatpush1.bf16.msra.mxu0 %v2443
    %2759 = vmatprep.subr.bf16.mxu0 %v2448
    %2760 = vmatpush1.bf16.msra.mxu0 %v2447
    %2761 = vmatprep.subr.bf16.mxu0 %v2452
    %2762 = vmatpush1.bf16.msra.mxu0 %v2451
    %2763 = vmatprep.subr.bf16.mxu0 %v2456
    %2764 = vmatpush1.bf16.msra.mxu0 %v2455
    %2765 = vmatprep.subr.bf16.mxu0 %v2460
    %2766 = vmatpush1.bf16.msra.mxu0 %v2459
    %2767 = vmatprep.mubr.bf16.mxu0 %v1861
    %2768 = vmatmul.mubr.bf16.gmra.mrb[0].mxu0 %v1860
    %v2769 = vpop.f32.mrb[0].mxu0
    %v2770 = vadd.f32 %v2004, %v2769
    %v2771 = vpop.f32.mrb[0].mxu0
    %v2772 = vadd.f32 %v2008, %v2771
    %v2773 = vpop.f32.mrb[0].mxu0
    %v2774 = vpop.f32.mrb[0].mxu0
    %2775 = vdwg.mxu0
    %2776 = vmatprep.subr.bf16.mxu0 %v2464
    %2777 = vmatpush1.bf16.msra.mxu0 %v2463
    %2778 = vmatprep.subr.bf16.mxu0 %v2468
    %2779 = vmatpush1.bf16.msra.mxu0 %v2467
    %2780 = vmatprep.subr.bf16.mxu0 %v2472
    %2781 = vmatpush1.bf16.msra.mxu0 %v2471
    %2782 = vmatprep.subr.bf16.mxu0 %v2476
    %2783 = vmatpush1.bf16.msra.mxu0 %v2475
    %2784 = vmatprep.subr.bf16.mxu0 %v2480
    %2785 = vmatpush1.bf16.msra.mxu0 %v2479
    %2786 = vmatprep.subr.bf16.mxu0 %v2484
    %2787 = vmatpush1.bf16.msra.mxu0 %v2483
    %2788 = vmatprep.subr.bf16.mxu0 %v2488
    %2789 = vmatpush1.bf16.msra.mxu0 %v2487
    %2790 = vmatprep.subr.bf16.mxu0 %v2492
    %2791 = vmatpush1.bf16.msra.mxu0 %v2491
    %2792 = vmatprep.subr.bf16.mxu0 %v2496
    %2793 = vmatpush1.bf16.msra.mxu0 %v2495
    %2794 = vmatprep.subr.bf16.mxu0 %v2500
    %2795 = vmatpush1.bf16.msra.mxu0 %v2499
    %2796 = vmatprep.subr.bf16.mxu0 %v2504
    %2797 = vmatpush1.bf16.msra.mxu0 %v2503
    %2798 = vmatprep.subr.bf16.mxu0 %v2508
    %2799 = vmatpush1.bf16.msra.mxu0 %v2507
    %2800 = vmatprep.subr.bf16.mxu0 %v2512
    %2801 = vmatpush1.bf16.msra.mxu0 %v2511
    %2802 = vmatprep.subr.bf16.mxu0 %v2516
    %2803 = vmatpush1.bf16.msra.mxu0 %v2515
    %2804 = vmatprep.subr.bf16.mxu0 %v2520
    %2805 = vmatpush1.bf16.msra.mxu0 %v2519
    %2806 = vmatprep.subr.bf16.mxu0 %v2524
    %2807 = vmatpush1.bf16.msra.mxu0 %v2523
    %2808 = vmatprep.mubr.bf16.mxu0 %v1863
    %2809 = vmatmul.mubr.bf16.gmra.mrb[0].mxu0 %v1862
    %v2810 = vpop.f32.mrb[0].mxu0
    %v2811 = vadd.f32 %v2770, %v2810
    %v2812 = vpop.f32.mrb[0].mxu0
    %v2813 = vadd.f32 %v2772, %v2812
    %v2814 = vpop.f32.mrb[0].mxu0
    %v2815 = vpop.f32.mrb[0].mxu0
    %2816 = vdwg.mxu0
    %v2817 = vpack.c.bf16 %v2729, %v2729
    %v2818 = vpack.c.bf16 %v2731, %v2731
    %v2819 = vpack.c.bf16 %v2811, %v2811
    %v2820 = vpack.c.bf16 %v2813, %v2813
    %v2821 = vld [vmem:[#allocation10] sm:$0xff]
    %v2822 = vld [vmem:[#allocation10 + $0x8] sm:$0xff]
    %v2823 = vld [vmem:[#allocation10 + $0x10] sm:$0xff]
    %v2824 = vld [vmem:[#allocation10 + $0x18] sm:$0xff]
    %v2825 = vld [vmem:[#allocation10 + $0x20] sm:$0xff]
    %v2826 = vld [vmem:[#allocation10 + $0x28] sm:$0xff]
    %v2827 = vld [vmem:[#allocation10 + $0x30] sm:$0xff]
    %v2828 = vld [vmem:[#allocation10 + $0x38] sm:$0xff]
    %v2829 = vld [vmem:[#allocation10 + $0x40] sm:$0xff]
    %v2830 = vld [vmem:[#allocation10 + $0x48] sm:$0xff]
    %v2831 = vld [vmem:[#allocation10 + $0x50] sm:$0xff]
    %v2832 = vld [vmem:[#allocation10 + $0x58] sm:$0xff]
    %v2833 = vld [vmem:[#allocation10 + $0x60] sm:$0xff]
    %v2834 = vld [vmem:[#allocation10 + $0x68] sm:$0xff]
    %v2835 = vld [vmem:[#allocation10 + $0x70] sm:$0xff]
    %v2836 = vld [vmem:[#allocation10 + $0x78] sm:$0xff]
    %v2837 = vld [vmem:[#allocation10 + $0x80] sm:$0xff]
    %v2838 = vld [vmem:[#allocation10 + $0x88] sm:$0xff]
    %v2839 = vld [vmem:[#allocation10 + $0x90] sm:$0xff]
    %v2840 = vld [vmem:[#allocation10 + $0x98] sm:$0xff]
    %v2841 = vld [vmem:[#allocation10 + $0xa0] sm:$0xff]
    %v2842 = vld [vmem:[#allocation10 + $0xa8] sm:$0xff]
    %v2843 = vld [vmem:[#allocation10 + $0xb0] sm:$0xff]
    %v2844 = vld [vmem:[#allocation10 + $0xb8] sm:$0xff]
    %v2845 = vld [vmem:[#allocation10 + $0xc0] sm:$0xff]
    %v2846 = vld [vmem:[#allocation10 + $0xc8] sm:$0xff]
    %v2847 = vld [vmem:[#allocation10 + $0xd0] sm:$0xff]
    %v2848 = vld [vmem:[#allocation10 + $0xd8] sm:$0xff]
    %v2849 = vld [vmem:[#allocation10 + $0xe0] sm:$0xff]
    %v2850 = vld [vmem:[#allocation10 + $0xe8] sm:$0xff]
    %v2851 = vld [vmem:[#allocation10 + $0xf0] sm:$0xff]
    %v2852 = vld [vmem:[#allocation10 + $0xf8] sm:$0xff]
    %v2853 = vld [vmem:[#allocation10 + $0x100] sm:$0xff]
    %v2854 = vld [vmem:[#allocation10 + $0x108] sm:$0xff]
    %v2855 = vld [vmem:[#allocation10 + $0x110] sm:$0xff]
    %v2856 = vld [vmem:[#allocation10 + $0x118] sm:$0xff]
    %v2857 = vld [vmem:[#allocation10 + $0x120] sm:$0xff]
    %v2858 = vld [vmem:[#allocation10 + $0x128] sm:$0xff]
    %v2859 = vld [vmem:[#allocation10 + $0x130] sm:$0xff]
    %v2860 = vld [vmem:[#allocation10 + $0x138] sm:$0xff]
    %v2861 = vld [vmem:[#allocation10 + $0x140] sm:$0xff]
    %v2862 = vld [vmem:[#allocation10 + $0x148] sm:$0xff]
    %v2863 = vld [vmem:[#allocation10 + $0x150] sm:$0xff]
    %v2864 = vld [vmem:[#allocation10 + $0x158] sm:$0xff]
    %v2865 = vld [vmem:[#allocation10 + $0x160] sm:$0xff]
    %v2866 = vld [vmem:[#allocation10 + $0x168] sm:$0xff]
    %v2867 = vld [vmem:[#allocation10 + $0x170] sm:$0xff]
    %v2868 = vld [vmem:[#allocation10 + $0x178] sm:$0xff]
    %v2869 = vld [vmem:[#allocation10 + $0x180] sm:$0xff]
    %v2870 = vld [vmem:[#allocation10 + $0x188] sm:$0xff]
    %v2871 = vld [vmem:[#allocation10 + $0x190] sm:$0xff]
    %v2872 = vld [vmem:[#allocation10 + $0x198] sm:$0xff]
    %v2873 = vld [vmem:[#allocation10 + $0x1a0] sm:$0xff]
    %v2874 = vld [vmem:[#allocation10 + $0x1a8] sm:$0xff]
    %v2875 = vld [vmem:[#allocation10 + $0x1b0] sm:$0xff]
    %v2876 = vld [vmem:[#allocation10 + $0x1b8] sm:$0xff]
    %v2877 = vld [vmem:[#allocation10 + $0x1c0] sm:$0xff]
    %v2878 = vld [vmem:[#allocation10 + $0x1c8] sm:$0xff]
    %v2879 = vld [vmem:[#allocation10 + $0x1d0] sm:$0xff]
    %v2880 = vld [vmem:[#allocation10 + $0x1d8] sm:$0xff]
    %v2881 = vld [vmem:[#allocation10 + $0x1e0] sm:$0xff]
    %v2882 = vld [vmem:[#allocation10 + $0x1e8] sm:$0xff]
    %v2883 = vld [vmem:[#allocation10 + $0x1f0] sm:$0xff]
    %v2884 = vld [vmem:[#allocation10 + $0x1f8] sm:$0xff]
    %v2886 = vlaneseq
    %v2887 = vshrl.u32 %v2886, 7
    %v2888 = vsub.s32 0, %v2887
    %v2889 = vrot.slane %v142, %v2888
    %v2890 = vlaneseq
    %v2891 = vshrl.u32 %v2890, 7
    %v2892 = vsub.s32 1, %v2891
    %v2893 = vrot.slane %v142, %v2892
    %v2960 = vunpack.c.l.b16 %v2821
    %v2961 = vunpack.c.h.b16 %v2821
    %v2962 = vunpack.c.l.b16 %v2822
    %v2963 = vunpack.c.h.b16 %v2822
    %v2964 = vunpack.c.l.b16 %v2823
    %v2965 = vunpack.c.h.b16 %v2823
    %v2966 = vunpack.c.l.b16 %v2824
    %v2967 = vunpack.c.h.b16 %v2824
    %v2968 = vunpack.c.l.b16 %v2825
    %v2969 = vunpack.c.h.b16 %v2825
    %v2970 = vunpack.c.l.b16 %v2826
    %v2971 = vunpack.c.h.b16 %v2826
    %v2972 = vunpack.c.l.b16 %v2827
    %v2973 = vunpack.c.h.b16 %v2827
    %v2974 = vunpack.c.l.b16 %v2828
    %v2975 = vunpack.c.h.b16 %v2828
    %v2976 = vunpack.c.l.b16 %v2829
    %v2977 = vunpack.c.h.b16 %v2829
    %v2978 = vunpack.c.l.b16 %v2830
    %v2979 = vunpack.c.h.b16 %v2830
    %v2980 = vunpack.c.l.b16 %v2831
    %v2981 = vunpack.c.h.b16 %v2831
    %v2982 = vunpack.c.l.b16 %v2832
    %v2983 = vunpack.c.h.b16 %v2832
    %v2984 = vunpack.c.l.b16 %v2833
    %v2985 = vunpack.c.h.b16 %v2833
    %v2986 = vunpack.c.l.b16 %v2834
    %v2987 = vunpack.c.h.b16 %v2834
    %v2988 = vunpack.c.l.b16 %v2835
    %v2989 = vunpack.c.h.b16 %v2835
    %v2990 = vunpack.c.l.b16 %v2836
    %v2991 = vunpack.c.h.b16 %v2836
    %v2992 = vunpack.c.l.b16 %v2837
    %v2993 = vunpack.c.h.b16 %v2837
    %v2994 = vunpack.c.l.b16 %v2838
    %v2995 = vunpack.c.h.b16 %v2838
    %v2996 = vunpack.c.l.b16 %v2839
    %v2997 = vunpack.c.h.b16 %v2839
    %v2998 = vunpack.c.l.b16 %v2840
    %v2999 = vunpack.c.h.b16 %v2840
    %v3000 = vunpack.c.l.b16 %v2841
    %v3001 = vunpack.c.h.b16 %v2841
    %v3002 = vunpack.c.l.b16 %v2842
    %v3003 = vunpack.c.h.b16 %v2842
    %v3004 = vunpack.c.l.b16 %v2843
    %v3005 = vunpack.c.h.b16 %v2843
    %v3006 = vunpack.c.l.b16 %v2844
    %v3007 = vunpack.c.h.b16 %v2844
    %v3008 = vunpack.c.l.b16 %v2845
    %v3009 = vunpack.c.h.b16 %v2845
    %v3010 = vunpack.c.l.b16 %v2846
    %v3011 = vunpack.c.h.b16 %v2846
    %v3012 = vunpack.c.l.b16 %v2847
    %v3013 = vunpack.c.h.b16 %v2847
    %v3014 = vunpack.c.l.b16 %v2848
    %v3015 = vunpack.c.h.b16 %v2848
    %v3016 = vunpack.c.l.b16 %v2849
    %v3017 = vunpack.c.h.b16 %v2849
    %v3018 = vunpack.c.l.b16 %v2850
    %v3019 = vunpack.c.h.b16 %v2850
    %v3020 = vunpack.c.l.b16 %v2851
    %v3021 = vunpack.c.h.b16 %v2851
    %v3022 = vunpack.c.l.b16 %v2852
    %v3023 = vunpack.c.h.b16 %v2852
    %v3024 = vunpack.c.l.b16 %v2853
    %v3025 = vunpack.c.h.b16 %v2853
    %v3026 = vunpack.c.l.b16 %v2854
    %v3027 = vunpack.c.h.b16 %v2854
    %v3028 = vunpack.c.l.b16 %v2855
    %v3029 = vunpack.c.h.b16 %v2855
    %v3030 = vunpack.c.l.b16 %v2856
    %v3031 = vunpack.c.h.b16 %v2856
    %v3032 = vunpack.c.l.b16 %v2857
    %v3033 = vunpack.c.h.b16 %v2857
    %v3034 = vunpack.c.l.b16 %v2858
    %v3035 = vunpack.c.h.b16 %v2858
    %v3036 = vunpack.c.l.b16 %v2859
    %v3037 = vunpack.c.h.b16 %v2859
    %v3038 = vunpack.c.l.b16 %v2860
    %v3039 = vunpack.c.h.b16 %v2860
    %v3040 = vunpack.c.l.b16 %v2861
    %v3041 = vunpack.c.h.b16 %v2861
    %v3042 = vunpack.c.l.b16 %v2862
    %v3043 = vunpack.c.h.b16 %v2862
    %v3044 = vunpack.c.l.b16 %v2863
    %v3045 = vunpack.c.h.b16 %v2863
    %v3046 = vunpack.c.l.b16 %v2864
    %v3047 = vunpack.c.h.b16 %v2864
    %v3048 = vunpack.c.l.b16 %v2865
    %v3049 = vunpack.c.h.b16 %v2865
    %v3050 = vunpack.c.l.b16 %v2866
    %v3051 = vunpack.c.h.b16 %v2866
    %v3052 = vunpack.c.l.b16 %v2867
    %v3053 = vunpack.c.h.b16 %v2867
    %v3054 = vunpack.c.l.b16 %v2868
    %v3055 = vunpack.c.h.b16 %v2868
    %v3056 = vunpack.c.l.b16 %v2869
    %v3057 = vunpack.c.h.b16 %v2869
    %v3058 = vunpack.c.l.b16 %v2870
    %v3059 = vunpack.c.h.b16 %v2870
    %v3060 = vunpack.c.l.b16 %v2871
    %v3061 = vunpack.c.h.b16 %v2871
    %v3062 = vunpack.c.l.b16 %v2872
    %v3063 = vunpack.c.h.b16 %v2872
    %v3064 = vunpack.c.l.b16 %v2873
    %v3065 = vunpack.c.h.b16 %v2873
    %v3066 = vunpack.c.l.b16 %v2874
    %v3067 = vunpack.c.h.b16 %v2874
    %v3068 = vunpack.c.l.b16 %v2875
    %v3069 = vunpack.c.h.b16 %v2875
    %v3070 = vunpack.c.l.b16 %v2876
    %v3071 = vunpack.c.h.b16 %v2876
    %v3072 = vunpack.c.l.b16 %v2877
    %v3073 = vunpack.c.h.b16 %v2877
    %v3074 = vunpack.c.l.b16 %v2878
    %v3075 = vunpack.c.h.b16 %v2878
    %v3076 = vunpack.c.l.b16 %v2879
    %v3077 = vunpack.c.h.b16 %v2879
    %v3078 = vunpack.c.l.b16 %v2880
    %v3079 = vunpack.c.h.b16 %v2880
    %v3080 = vunpack.c.l.b16 %v2881
    %v3081 = vunpack.c.h.b16 %v2881
    %v3082 = vunpack.c.l.b16 %v2882
    %v3083 = vunpack.c.h.b16 %v2882
    %v3084 = vunpack.c.l.b16 %v2883
    %v3085 = vunpack.c.h.b16 %v2883
    %v3086 = vunpack.c.l.b16 %v2884
    %v3087 = vunpack.c.h.b16 %v2884
    %v3088 = vpack.c.b16 %v2962, %v2960
    %v3089 = vpack.c.b16 %v2963, %v2961
    %v3090 = vpack.c.b16 %v2966, %v2964
    %v3091 = vpack.c.b16 %v2967, %v2965
    %v3092 = vpack.c.b16 %v2970, %v2968
    %v3093 = vpack.c.b16 %v2971, %v2969
    %v3094 = vpack.c.b16 %v2974, %v2972
    %v3095 = vpack.c.b16 %v2975, %v2973
    %v3096 = vpack.c.b16 %v2978, %v2976
    %v3097 = vpack.c.b16 %v2979, %v2977
    %v3098 = vpack.c.b16 %v2982, %v2980
    %v3099 = vpack.c.b16 %v2983, %v2981
    %v3100 = vpack.c.b16 %v2986, %v2984
    %v3101 = vpack.c.b16 %v2987, %v2985
    %v3102 = vpack.c.b16 %v2990, %v2988
    %v3103 = vpack.c.b16 %v2991, %v2989
    %v3104 = vpack.c.b16 %v2994, %v2992
    %v3105 = vpack.c.b16 %v2995, %v2993
    %v3106 = vpack.c.b16 %v2998, %v2996
    %v3107 = vpack.c.b16 %v2999, %v2997
    %v3108 = vpack.c.b16 %v3002, %v3000
    %v3109 = vpack.c.b16 %v3003, %v3001
    %v3110 = vpack.c.b16 %v3006, %v3004
    %v3111 = vpack.c.b16 %v3007, %v3005
    %v3112 = vpack.c.b16 %v3010, %v3008
    %v3113 = vpack.c.b16 %v3011, %v3009
    %v3114 = vpack.c.b16 %v3014, %v3012
    %v3115 = vpack.c.b16 %v3015, %v3013
    %v3116 = vpack.c.b16 %v3018, %v3016
    %v3117 = vpack.c.b16 %v3019, %v3017
    %v3118 = vpack.c.b16 %v3022, %v3020
    %v3119 = vpack.c.b16 %v3023, %v3021
    %v3120 = vpack.c.b16 %v3026, %v3024
    %v3121 = vpack.c.b16 %v3027, %v3025
    %v3122 = vpack.c.b16 %v3030, %v3028
    %v3123 = vpack.c.b16 %v3031, %v3029
    %v3124 = vpack.c.b16 %v3034, %v3032
    %v3125 = vpack.c.b16 %v3035, %v3033
    %v3126 = vpack.c.b16 %v3038, %v3036
    %v3127 = vpack.c.b16 %v3039, %v3037
    %v3128 = vpack.c.b16 %v3042, %v3040
    %v3129 = vpack.c.b16 %v3043, %v3041
    %v3130 = vpack.c.b16 %v3046, %v3044
    %v3131 = vpack.c.b16 %v3047, %v3045
    %v3132 = vpack.c.b16 %v3050, %v3048
    %v3133 = vpack.c.b16 %v3051, %v3049
    %v3134 = vpack.c.b16 %v3054, %v3052
    %v3135 = vpack.c.b16 %v3055, %v3053
    %v3136 = vpack.c.b16 %v3058, %v3056
    %v3137 = vpack.c.b16 %v3059, %v3057
    %v3138 = vpack.c.b16 %v3062, %v3060
    %v3139 = vpack.c.b16 %v3063, %v3061
    %v3140 = vpack.c.b16 %v3066, %v3064
    %v3141 = vpack.c.b16 %v3067, %v3065
    %v3142 = vpack.c.b16 %v3070, %v3068
    %v3143 = vpack.c.b16 %v3071, %v3069
    %v3144 = vpack.c.b16 %v3074, %v3072
    %v3145 = vpack.c.b16 %v3075, %v3073
    %v3146 = vpack.c.b16 %v3078, %v3076
    %v3147 = vpack.c.b16 %v3079, %v3077
    %v3148 = vpack.c.b16 %v3082, %v3080
    %v3149 = vpack.c.b16 %v3083, %v3081
    %v3150 = vpack.c.b16 %v3086, %v3084
    %v3151 = vpack.c.b16 %v3087, %v3085
    %3216 = vmatprep.subr.bf16.mxu0 %v3089
    %3217 = vmatpush1.bf16.msra.mxu0 %v3088
    %3218 = vmatprep.subr.bf16.mxu0 %v3091
    %3219 = vmatpush1.bf16.msra.mxu0 %v3090
    %3220 = vmatprep.subr.bf16.mxu0 %v3093
    %3221 = vmatpush1.bf16.msra.mxu0 %v3092
    %3222 = vmatprep.subr.bf16.mxu0 %v3095
    %3223 = vmatpush1.bf16.msra.mxu0 %v3094
    %3224 = vmatprep.subr.bf16.mxu0 %v3097
    %3225 = vmatpush1.bf16.msra.mxu0 %v3096
    %3226 = vmatprep.subr.bf16.mxu0 %v3099
    %3227 = vmatpush1.bf16.msra.mxu0 %v3098
    %3228 = vmatprep.subr.bf16.mxu0 %v3101
    %3229 = vmatpush1.bf16.msra.mxu0 %v3100
    %3230 = vmatprep.subr.bf16.mxu0 %v3103
    %3231 = vmatpush1.bf16.msra.mxu0 %v3102
    %3232 = vmatprep.subr.bf16.mxu0 %v3105
    %3233 = vmatpush1.bf16.msra.mxu0 %v3104
    %3234 = vmatprep.subr.bf16.mxu0 %v3107
    %3235 = vmatpush1.bf16.msra.mxu0 %v3106
    %3236 = vmatprep.subr.bf16.mxu0 %v3109
    %3237 = vmatpush1.bf16.msra.mxu0 %v3108
    %3238 = vmatprep.subr.bf16.mxu0 %v3111
    %3239 = vmatpush1.bf16.msra.mxu0 %v3110
    %3240 = vmatprep.subr.bf16.mxu0 %v3113
    %3241 = vmatpush1.bf16.msra.mxu0 %v3112
    %3242 = vmatprep.subr.bf16.mxu0 %v3115
    %3243 = vmatpush1.bf16.msra.mxu0 %v3114
    %3244 = vmatprep.subr.bf16.mxu0 %v3117
    %3245 = vmatpush1.bf16.msra.mxu0 %v3116
    %3246 = vmatprep.subr.bf16.mxu0 %v3119
    %3247 = vmatpush1.bf16.msra.mxu0 %v3118
    %3248 = vmatprep.mubr.bf16.mxu0 %v2818
    %3249 = vmatmul.mubr.bf16.gmra.mrb[0].mxu0 %v2817
    %v3250 = vpop.f32.mrb[0].mxu0
    %v3251 = vadd.f32 %v2889, %v3250
    %v3252 = vpop.f32.mrb[0].mxu0
    %v3253 = vadd.f32 %v2893, %v3252
    %v3254 = vpop.f32.mrb[0].mxu0
    %v3255 = vpop.f32.mrb[0].mxu0
    %3256 = vdwg.mxu0
    %3257 = vmatprep.subr.bf16.mxu0 %v3121
    %3258 = vmatpush1.bf16.msra.mxu0 %v3120
    %3259 = vmatprep.subr.bf16.mxu0 %v3123
    %3260 = vmatpush1.bf16.msra.mxu0 %v3122
    %3261 = vmatprep.subr.bf16.mxu0 %v3125
    %3262 = vmatpush1.bf16.msra.mxu0 %v3124
    %3263 = vmatprep.subr.bf16.mxu0 %v3127
    %3264 = vmatpush1.bf16.msra.mxu0 %v3126
    %3265 = vmatprep.subr.bf16.mxu0 %v3129
    %3266 = vmatpush1.bf16.msra.mxu0 %v3128
    %3267 = vmatprep.subr.bf16.mxu0 %v3131
    %3268 = vmatpush1.bf16.msra.mxu0 %v3130
    %3269 = vmatprep.subr.bf16.mxu0 %v3133
    %3270 = vmatpush1.bf16.msra.mxu0 %v3132
    %3271 = vmatprep.subr.bf16.mxu0 %v3135
    %3272 = vmatpush1.bf16.msra.mxu0 %v3134
    %3273 = vmatprep.subr.bf16.mxu0 %v3137
    %3274 = vmatpush1.bf16.msra.mxu0 %v3136
    %3275 = vmatprep.subr.bf16.mxu0 %v3139
    %3276 = vmatpush1.bf16.msra.mxu0 %v3138
    %3277 = vmatprep.subr.bf16.mxu0 %v3141
    %3278 = vmatpush1.bf16.msra.mxu0 %v3140
    %3279 = vmatprep.subr.bf16.mxu0 %v3143
    %3280 = vmatpush1.bf16.msra.mxu0 %v3142
    %3281 = vmatprep.subr.bf16.mxu0 %v3145
    %3282 = vmatpush1.bf16.msra.mxu0 %v3144
    %3283 = vmatprep.subr.bf16.mxu0 %v3147
    %3284 = vmatpush1.bf16.msra.mxu0 %v3146
    %3285 = vmatprep.subr.bf16.mxu0 %v3149
    %3286 = vmatpush1.bf16.msra.mxu0 %v3148
    %3287 = vmatprep.subr.bf16.mxu0 %v3151
    %3288 = vmatpush1.bf16.msra.mxu0 %v3150
    %3289 = vmatprep.mubr.bf16.mxu0 %v2820
    %3290 = vmatmul.mubr.bf16.gmra.mrb[0].mxu0 %v2819
    %v3291 = vpop.f32.mrb[0].mxu0
    %v3292 = vadd.f32 %v3251, %v3291
    %v3293 = vpop.f32.mrb[0].mxu0
    %v3294 = vadd.f32 %v3253, %v3293
    %v3295 = vpop.f32.mrb[0].mxu0
    %v3296 = vpop.f32.mrb[0].mxu0
    %3297 = vdwg.mxu0
    %v3298 = vld [vmem:[#allocation5] sm:$0xff]
    %v3299 = vmul.f32 %v3294, 0.5
    %v3300 = vmul.f32 %v3299, 1.442695
    %v3301 = vpow.pop %v3300
    %v3302 = vmul.f32 %v3298, %v3301
    %v3303 = vadd.f32 %v3292, %v3302
    %v3304 = vpack.c.bf16 %v3303, %v3303
    %v3305 = vld [vmem:[#allocation11] sm:$0xff]
    %v3306 = vld [vmem:[#allocation11 + $0x8] sm:$0xff]
    %v3307 = vld [vmem:[#allocation11 + $0x10] sm:$0xff]
    %v3308 = vld [vmem:[#allocation11 + $0x18] sm:$0xff]
    %v3309 = vld [vmem:[#allocation11 + $0x20] sm:$0xff]
    %v3310 = vld [vmem:[#allocation11 + $0x28] sm:$0xff]
    %v3311 = vld [vmem:[#allocation11 + $0x30] sm:$0xff]
    %v3312 = vld [vmem:[#allocation11 + $0x38] sm:$0xff]
    %v3313 = vld [vmem:[#allocation11 + $0x40] sm:$0xff]
    %v3314 = vld [vmem:[#allocation11 + $0x48] sm:$0xff]
    %v3315 = vld [vmem:[#allocation11 + $0x50] sm:$0xff]
    %v3316 = vld [vmem:[#allocation11 + $0x58] sm:$0xff]
    %v3317 = vld [vmem:[#allocation11 + $0x60] sm:$0xff]
    %v3318 = vld [vmem:[#allocation11 + $0x68] sm:$0xff]
    %v3319 = vld [vmem:[#allocation11 + $0x70] sm:$0xff]
    %v3320 = vld [vmem:[#allocation11 + $0x78] sm:$0xff]
    %v3321 = vld [vmem:[#allocation11 + $0x80] sm:$0xff]
    %v3322 = vld [vmem:[#allocation11 + $0x88] sm:$0xff]
    %v3323 = vld [vmem:[#allocation11 + $0x90] sm:$0xff]
    %v3324 = vld [vmem:[#allocation11 + $0x98] sm:$0xff]
    %v3325 = vld [vmem:[#allocation11 + $0xa0] sm:$0xff]
    %v3326 = vld [vmem:[#allocation11 + $0xa8] sm:$0xff]
    %v3327 = vld [vmem:[#allocation11 + $0xb0] sm:$0xff]
    %v3328 = vld [vmem:[#allocation11 + $0xb8] sm:$0xff]
    %v3329 = vld [vmem:[#allocation11 + $0xc0] sm:$0xff]
    %v3330 = vld [vmem:[#allocation11 + $0xc8] sm:$0xff]
    %v3331 = vld [vmem:[#allocation11 + $0xd0] sm:$0xff]
    %v3332 = vld [vmem:[#allocation11 + $0xd8] sm:$0xff]
    %v3333 = vld [vmem:[#allocation11 + $0xe0] sm:$0xff]
    %v3334 = vld [vmem:[#allocation11 + $0xe8] sm:$0xff]
    %v3335 = vld [vmem:[#allocation11 + $0xf0] sm:$0xff]
    %v3336 = vld [vmem:[#allocation11 + $0xf8] sm:$0xff]
    %v3338 = vlaneseq
    %v3339 = vshrl.u32 %v3338, 7
    %v3340 = vsub.s32 0, %v3339
    %v3341 = vrot.slane %v144, %v3340
    %v3342 = vlaneseq
    %v3343 = vshrl.u32 %v3342, 7
    %v3344 = vsub.s32 1, %v3343
    %v3345 = vrot.slane %v144, %v3344
    %v3346 = vlaneseq
    %v3347 = vshrl.u32 %v3346, 7
    %v3348 = vsub.s32 2, %v3347
    %v3349 = vrot.slane %v144, %v3348
    %v3350 = vlaneseq
    %v3351 = vshrl.u32 %v3350, 7
    %v3352 = vsub.s32 3, %v3351
    %v3353 = vrot.slane %v144, %v3352
    %v3390 = vunpack.c.l.b16 %v3305
    %v3391 = vunpack.c.h.b16 %v3305
    %v3392 = vunpack.c.l.b16 %v3306
    %v3393 = vunpack.c.h.b16 %v3306
    %v3394 = vunpack.c.l.b16 %v3307
    %v3395 = vunpack.c.h.b16 %v3307
    %v3396 = vunpack.c.l.b16 %v3308
    %v3397 = vunpack.c.h.b16 %v3308
    %v3398 = vunpack.c.l.b16 %v3309
    %v3399 = vunpack.c.h.b16 %v3309
    %v3400 = vunpack.c.l.b16 %v3310
    %v3401 = vunpack.c.h.b16 %v3310
    %v3402 = vunpack.c.l.b16 %v3311
    %v3403 = vunpack.c.h.b16 %v3311
    %v3404 = vunpack.c.l.b16 %v3312
    %v3405 = vunpack.c.h.b16 %v3312
    %v3406 = vunpack.c.l.b16 %v3313
    %v3407 = vunpack.c.h.b16 %v3313
    %v3408 = vunpack.c.l.b16 %v3314
    %v3409 = vunpack.c.h.b16 %v3314
    %v3410 = vunpack.c.l.b16 %v3315
    %v3411 = vunpack.c.h.b16 %v3315
    %v3412 = vunpack.c.l.b16 %v3316
    %v3413 = vunpack.c.h.b16 %v3316
    %v3414 = vunpack.c.l.b16 %v3317
    %v3415 = vunpack.c.h.b16 %v3317
    %v3416 = vunpack.c.l.b16 %v3318
    %v3417 = vunpack.c.h.b16 %v3318
    %v3418 = vunpack.c.l.b16 %v3319
    %v3419 = vunpack.c.h.b16 %v3319
    %v3420 = vunpack.c.l.b16 %v3320
    %v3421 = vunpack.c.h.b16 %v3320
    %v3422 = vunpack.c.l.b16 %v3321
    %v3423 = vunpack.c.h.b16 %v3321
    %v3424 = vunpack.c.l.b16 %v3322
    %v3425 = vunpack.c.h.b16 %v3322
    %v3426 = vunpack.c.l.b16 %v3323
    %v3427 = vunpack.c.h.b16 %v3323
    %v3428 = vunpack.c.l.b16 %v3324
    %v3429 = vunpack.c.h.b16 %v3324
    %v3430 = vunpack.c.l.b16 %v3325
    %v3431 = vunpack.c.h.b16 %v3325
    %v3432 = vunpack.c.l.b16 %v3326
    %v3433 = vunpack.c.h.b16 %v3326
    %v3434 = vunpack.c.l.b16 %v3327
    %v3435 = vunpack.c.h.b16 %v3327
    %v3436 = vunpack.c.l.b16 %v3328
    %v3437 = vunpack.c.h.b16 %v3328
    %v3438 = vunpack.c.l.b16 %v3329
    %v3439 = vunpack.c.h.b16 %v3329
    %v3440 = vunpack.c.l.b16 %v3330
    %v3441 = vunpack.c.h.b16 %v3330
    %v3442 = vunpack.c.l.b16 %v3331
    %v3443 = vunpack.c.h.b16 %v3331
    %v3444 = vunpack.c.l.b16 %v3332
    %v3445 = vunpack.c.h.b16 %v3332
    %v3446 = vunpack.c.l.b16 %v3333
    %v3447 = vunpack.c.h.b16 %v3333
    %v3448 = vunpack.c.l.b16 %v3334
    %v3449 = vunpack.c.h.b16 %v3334
    %v3450 = vunpack.c.l.b16 %v3335
    %v3451 = vunpack.c.h.b16 %v3335
    %v3452 = vunpack.c.l.b16 %v3336
    %v3453 = vunpack.c.h.b16 %v3336
    %v3454 = vpack.c.b16 %v3394, %v3390
    %v3455 = vpack.c.b16 %v3395, %v3391
    %v3456 = vpack.c.b16 %v3396, %v3392
    %v3457 = vpack.c.b16 %v3397, %v3393
    %v3458 = vpack.c.b16 %v3402, %v3398
    %v3459 = vpack.c.b16 %v3403, %v3399
    %v3460 = vpack.c.b16 %v3404, %v3400
    %v3461 = vpack.c.b16 %v3405, %v3401
    %v3462 = vpack.c.b16 %v3410, %v3406
    %v3463 = vpack.c.b16 %v3411, %v3407
    %v3464 = vpack.c.b16 %v3412, %v3408
    %v3465 = vpack.c.b16 %v3413, %v3409
    %v3466 = vpack.c.b16 %v3418, %v3414
    %v3467 = vpack.c.b16 %v3419, %v3415
    %v3468 = vpack.c.b16 %v3420, %v3416
    %v3469 = vpack.c.b16 %v3421, %v3417
    %v3470 = vpack.c.b16 %v3426, %v3422
    %v3471 = vpack.c.b16 %v3427, %v3423
    %v3472 = vpack.c.b16 %v3428, %v3424
    %v3473 = vpack.c.b16 %v3429, %v3425
    %v3474 = vpack.c.b16 %v3434, %v3430
    %v3475 = vpack.c.b16 %v3435, %v3431
    %v3476 = vpack.c.b16 %v3436, %v3432
    %v3477 = vpack.c.b16 %v3437, %v3433
    %v3478 = vpack.c.b16 %v3442, %v3438
    %v3479 = vpack.c.b16 %v3443, %v3439
    %v3480 = vpack.c.b16 %v3444, %v3440
    %v3481 = vpack.c.b16 %v3445, %v3441
    %v3482 = vpack.c.b16 %v3450, %v3446
    %v3483 = vpack.c.b16 %v3451, %v3447
    %v3484 = vpack.c.b16 %v3452, %v3448
    %v3485 = vpack.c.b16 %v3453, %v3449
    %3518 = vmatprep.subr.bf16.mxu0 %v3455
    %3519 = vmatpush1.bf16.msra.mxu0 %v3454
    %3520 = vmatprep.subr.bf16.mxu0 %v3459
    %3521 = vmatpush1.bf16.msra.mxu0 %v3458
    %3522 = vmatprep.subr.bf16.mxu0 %v3463
    %3523 = vmatpush1.bf16.msra.mxu0 %v3462
    %3524 = vmatprep.subr.bf16.mxu0 %v3467
    %3525 = vmatpush1.bf16.msra.mxu0 %v3466
    %3526 = vmatprep.subr.bf16.mxu0 %v3471
    %3527 = vmatpush1.bf16.msra.mxu0 %v3470
    %3528 = vmatprep.subr.bf16.mxu0 %v3475
    %3529 = vmatpush1.bf16.msra.mxu0 %v3474
    %3530 = vmatprep.subr.bf16.mxu0 %v3479
    %3531 = vmatpush1.bf16.msra.mxu0 %v3478
    %3532 = vmatprep.subr.bf16.mxu0 %v3483
    %3533 = vmatpush1.bf16.msra.mxu0 %v3482
    %3534 = vmatprep.subr.bf16.mxu0 0
    %3535 = vmatpush1.bf16.msra.mxu0 0
    %3536 = vmatprep.subr.bf16.mxu0 0
    %3537 = vmatpush1.bf16.msra.mxu0 0
    %3538 = vmatprep.subr.bf16.mxu0 0
    %3539 = vmatpush1.bf16.msra.mxu0 0
    %3540 = vmatprep.subr.bf16.mxu0 0
    %3541 = vmatpush1.bf16.msra.mxu0 0
    %3542 = vmatprep.subr.bf16.mxu0 0
    %3543 = vmatpush1.bf16.msra.mxu0 0
    %3544 = vmatprep.subr.bf16.mxu0 0
    %3545 = vmatpush1.bf16.msra.mxu0 0
    %3546 = vmatprep.subr.bf16.mxu0 0
    %3547 = vmatpush1.bf16.msra.mxu0 0
    %3548 = vmatprep.subr.bf16.mxu0 0
    %3549 = vmatpush1.bf16.msra.mxu0 0
    %3550 = vmatprep.mubr.bf16.mxu0 0
    %3551 = vmatmul.mubr.bf16.gmra.mrb[0].mxu0 %v3304
    %v3552 = vpop.f32.mrb[0].mxu0
    %v3553 = vadd.f32 %v3341, %v3552
    %v3554 = vpop.f32.mrb[0].mxu0
    %v3555 = vadd.f32 %v3345, %v3554
    %v3556 = vpop.f32.mrb[0].mxu0
    %v3557 = vpop.f32.mrb[0].mxu0
    %3558 = vdwg.mxu0
    %3559 = vmatprep.subr.bf16.mxu0 %v3457
    %3560 = vmatpush1.bf16.msra.mxu0 %v3456
    %3561 = vmatprep.subr.bf16.mxu0 %v3461
    %3562 = vmatpush1.bf16.msra.mxu0 %v3460
    %3563 = vmatprep.subr.bf16.mxu0 %v3465
    %3564 = vmatpush1.bf16.msra.mxu0 %v3464
    %3565 = vmatprep.subr.bf16.mxu0 %v3469
    %3566 = vmatpush1.bf16.msra.mxu0 %v3468
    %3567 = vmatprep.subr.bf16.mxu0 %v3473
    %3568 = vmatpush1.bf16.msra.mxu0 %v3472
    %3569 = vmatprep.subr.bf16.mxu0 %v3477
    %3570 = vmatpush1.bf16.msra.mxu0 %v3476
    %3571 = vmatprep.subr.bf16.mxu0 %v3481
    %3572 = vmatpush1.bf16.msra.mxu0 %v3480
    %3573 = vmatprep.subr.bf16.mxu0 %v3485
    %3574 = vmatpush1.bf16.msra.mxu0 %v3484
    %3575 = vmatprep.subr.bf16.mxu0 0
    %3576 = vmatpush1.bf16.msra.mxu0 0
    %3577 = vmatprep.subr.bf16.mxu0 0
    %3578 = vmatpush1.bf16.msra.mxu0 0
    %3579 = vmatprep.subr.bf16.mxu0 0
    %3580 = vmatpush1.bf16.msra.mxu0 0
    %3581 = vmatprep.subr.bf16.mxu0 0
    %3582 = vmatpush1.bf16.msra.mxu0 0
    %3583 = vmatprep.subr.bf16.mxu0 0
    %3584 = vmatpush1.bf16.msra.mxu0 0
    %3585 = vmatprep.subr.bf16.mxu0 0
    %3586 = vmatpush1.bf16.msra.mxu0 0
    %3587 = vmatprep.subr.bf16.mxu0 0
    %3588 = vmatpush1.bf16.msra.mxu0 0
    %3589 = vmatprep.subr.bf16.mxu0 0
    %3590 = vmatpush1.bf16.msra.mxu0 0
    %3591 = vmatprep.mubr.bf16.mxu0 0
    %3592 = vmatmul.mubr.bf16.gmra.mrb[0].mxu0 %v3304
    %v3593 = vpop.f32.mrb[0].mxu0
    %v3594 = vadd.f32 %v3349, %v3593
    %v3595 = vpop.f32.mrb[0].mxu0
    %v3596 = vadd.f32 %v3353, %v3595
    %v3597 = vpop.f32.mrb[0].mxu0
    %v3598 = vpop.f32.mrb[0].mxu0
    %3599 = vdwg.mxu0
    %v3600 = vmax.f32 %v3553, 0.0
    %v3601 = vmax.f32 %v3555, 0.0
    %v3602 = vmax.f32 %v3594, 0.0
    %v3603 = vmax.f32 %v3596, 0.0
    %v3604 = vpack.c.bf16 %v3600, %v3600
    %v3605 = vpack.c.bf16 %v3601, %v3601
    %v3606 = vpack.c.bf16 %v3602, %v3602
    %v3607 = vpack.c.bf16 %v3603, %v3603
    %v3608 = vld [vmem:[#allocation13] sm:$0xff]
    %v3609 = vld [vmem:[#allocation13 + $0x8] sm:$0xff]
    %v3610 = vld [vmem:[#allocation13 + $0x10] sm:$0xff]
    %v3611 = vld [vmem:[#allocation13 + $0x18] sm:$0xf]
    %v3612 = vld [vmem:[#allocation13 + $0x1c] sm:$0xff]
    %v3613 = vld [vmem:[#allocation13 + $0x24] sm:$0xff]
    %v3614 = vld [vmem:[#allocation13 + $0x2c] sm:$0xff]
    %v3615 = vld [vmem:[#allocation13 + $0x34] sm:$0xf]
    %v3616 = vld [vmem:[#allocation13 + $0x38] sm:$0xff]
    %v3617 = vld [vmem:[#allocation13 + $0x40] sm:$0xff]
    %v3618 = vld [vmem:[#allocation13 + $0x48] sm:$0xff]
    %v3619 = vld [vmem:[#allocation13 + $0x50] sm:$0xf]
    %v3620 = vld [vmem:[#allocation13 + $0x54] sm:$0xff]
    %v3621 = vld [vmem:[#allocation13 + $0x5c] sm:$0xff]
    %v3622 = vld [vmem:[#allocation13 + $0x64] sm:$0xff]
    %v3623 = vld [vmem:[#allocation13 + $0x6c] sm:$0xf]
    %v3624 = vld [vmem:[#allocation13 + $0x70] sm:$0xff]
    %v3625 = vld [vmem:[#allocation13 + $0x78] sm:$0xff]
    %v3626 = vld [vmem:[#allocation13 + $0x80] sm:$0xff]
    %v3627 = vld [vmem:[#allocation13 + $0x88] sm:$0xf]
    %v3628 = vld [vmem:[#allocation13 + $0x8c] sm:$0xff]
    %v3629 = vld [vmem:[#allocation13 + $0x94] sm:$0xff]
    %v3630 = vld [vmem:[#allocation13 + $0x9c] sm:$0xff]
    %v3631 = vld [vmem:[#allocation13 + $0xa4] sm:$0xf]
    %v3632 = vld [vmem:[#allocation13 + $0xa8] sm:$0xff]
    %v3633 = vld [vmem:[#allocation13 + $0xb0] sm:$0xff]
    %v3634 = vld [vmem:[#allocation13 + $0xb8] sm:$0xff]
    %v3635 = vld [vmem:[#allocation13 + $0xc0] sm:$0xf]
    %v3636 = vld [vmem:[#allocation13 + $0xc4] sm:$0xff]
    %v3637 = vld [vmem:[#allocation13 + $0xcc] sm:$0xff]
    %v3638 = vld [vmem:[#allocation13 + $0xd4] sm:$0xff]
    %v3639 = vld [vmem:[#allocation13 + $0xdc] sm:$0xf]
    %v3640 = vld [vmem:[#allocation13 + $0xe0] sm:$0xff]
    %v3641 = vld [vmem:[#allocation13 + $0xe8] sm:$0xff]
    %v3642 = vld [vmem:[#allocation13 + $0xf0] sm:$0xff]
    %v3643 = vld [vmem:[#allocation13 + $0xf8] sm:$0xf]
    %v3644 = vld [vmem:[#allocation13 + $0xfc] sm:$0xff]
    %v3645 = vld [vmem:[#allocation13 + $0x104] sm:$0xff]
    %v3646 = vld [vmem:[#allocation13 + $0x10c] sm:$0xff]
    %v3647 = vld [vmem:[#allocation13 + $0x114] sm:$0xf]
    %v3648 = vld [vmem:[#allocation13 + $0x118] sm:$0xff]
    %v3649 = vld [vmem:[#allocation13 + $0x120] sm:$0xff]
    %v3650 = vld [vmem:[#allocation13 + $0x128] sm:$0xff]
    %v3651 = vld [vmem:[#allocation13 + $0x130] sm:$0xf]
    %v3652 = vld [vmem:[#allocation13 + $0x134] sm:$0xff]
    %v3653 = vld [vmem:[#allocation13 + $0x13c] sm:$0xff]
    %v3654 = vld [vmem:[#allocation13 + $0x144] sm:$0xff]
    %v3655 = vld [vmem:[#allocation13 + $0x14c] sm:$0xf]
    %v3656 = vld [vmem:[#allocation13 + $0x150] sm:$0xff]
    %v3657 = vld [vmem:[#allocation13 + $0x158] sm:$0xff]
    %v3658 = vld [vmem:[#allocation13 + $0x160] sm:$0xff]
    %v3659 = vld [vmem:[#allocation13 + $0x168] sm:$0xf]
    %v3660 = vld [vmem:[#allocation13 + $0x16c] sm:$0xff]
    %v3661 = vld [vmem:[#allocation13 + $0x174] sm:$0xff]
    %v3662 = vld [vmem:[#allocation13 + $0x17c] sm:$0xff]
    %v3663 = vld [vmem:[#allocation13 + $0x184] sm:$0xf]
    %v3664 = vld [vmem:[#allocation13 + $0x188] sm:$0xff]
    %v3665 = vld [vmem:[#allocation13 + $0x190] sm:$0xff]
    %v3666 = vld [vmem:[#allocation13 + $0x198] sm:$0xff]
    %v3667 = vld [vmem:[#allocation13 + $0x1a0] sm:$0xf]
    %v3668 = vld [vmem:[#allocation13 + $0x1a4] sm:$0xff]
    %v3669 = vld [vmem:[#allocation13 + $0x1ac] sm:$0xff]
    %v3670 = vld [vmem:[#allocation13 + $0x1b4] sm:$0xff]
    %v3671 = vld [vmem:[#allocation13 + $0x1bc] sm:$0xf]
    %v3672 = vld [vmem:[#allocation13 + $0x1c0] sm:$0xff]
    %v3673 = vld [vmem:[#allocation13 + $0x1c8] sm:$0xff]
    %v3674 = vld [vmem:[#allocation13 + $0x1d0] sm:$0xff]
    %v3675 = vld [vmem:[#allocation13 + $0x1d8] sm:$0xf]
    %v3676 = vld [vmem:[#allocation13 + $0x1dc] sm:$0xff]
    %v3677 = vld [vmem:[#allocation13 + $0x1e4] sm:$0xff]
    %v3678 = vld [vmem:[#allocation13 + $0x1ec] sm:$0xff]
    %v3679 = vld [vmem:[#allocation13 + $0x1f4] sm:$0xf]
    %v3680 = vld [vmem:[#allocation13 + $0x1f8] sm:$0xff]
    %v3681 = vld [vmem:[#allocation13 + $0x200] sm:$0xff]
    %v3682 = vld [vmem:[#allocation13 + $0x208] sm:$0xff]
    %v3683 = vld [vmem:[#allocation13 + $0x210] sm:$0xf]
    %v3684 = vld [vmem:[#allocation13 + $0x214] sm:$0xff]
    %v3685 = vld [vmem:[#allocation13 + $0x21c] sm:$0xff]
    %v3686 = vld [vmem:[#allocation13 + $0x224] sm:$0xff]
    %v3687 = vld [vmem:[#allocation13 + $0x22c] sm:$0xf]
    %v3688 = vld [vmem:[#allocation13 + $0x230] sm:$0xff]
    %v3689 = vld [vmem:[#allocation13 + $0x238] sm:$0xff]
    %v3690 = vld [vmem:[#allocation13 + $0x240] sm:$0xff]
    %v3691 = vld [vmem:[#allocation13 + $0x248] sm:$0xf]
    %v3692 = vld [vmem:[#allocation13 + $0x24c] sm:$0xff]
    %v3693 = vld [vmem:[#allocation13 + $0x254] sm:$0xff]
    %v3694 = vld [vmem:[#allocation13 + $0x25c] sm:$0xff]
    %v3695 = vld [vmem:[#allocation13 + $0x264] sm:$0xf]
    %v3696 = vld [vmem:[#allocation13 + $0x268] sm:$0xff]
    %v3697 = vld [vmem:[#allocation13 + $0x270] sm:$0xff]
    %v3698 = vld [vmem:[#allocation13 + $0x278] sm:$0xff]
    %v3699 = vld [vmem:[#allocation13 + $0x280] sm:$0xf]
    %v3700 = vld [vmem:[#allocation13 + $0x284] sm:$0xff]
    %v3701 = vld [vmem:[#allocation13 + $0x28c] sm:$0xff]
    %v3702 = vld [vmem:[#allocation13 + $0x294] sm:$0xff]
    %v3703 = vld [vmem:[#allocation13 + $0x29c] sm:$0xf]
    %v3704 = vld [vmem:[#allocation13 + $0x2a0] sm:$0xff]
    %v3705 = vld [vmem:[#allocation13 + $0x2a8] sm:$0xff]
    %v3706 = vld [vmem:[#allocation13 + $0x2b0] sm:$0xff]
    %v3707 = vld [vmem:[#allocation13 + $0x2b8] sm:$0xf]
    %v3708 = vld [vmem:[#allocation13 + $0x2bc] sm:$0xff]
    %v3709 = vld [vmem:[#allocation13 + $0x2c4] sm:$0xff]
    %v3710 = vld [vmem:[#allocation13 + $0x2cc] sm:$0xff]
    %v3711 = vld [vmem:[#allocation13 + $0x2d4] sm:$0xf]
    %v3712 = vld [vmem:[#allocation13 + $0x2d8] sm:$0xff]
    %v3713 = vld [vmem:[#allocation13 + $0x2e0] sm:$0xff]
    %v3714 = vld [vmem:[#allocation13 + $0x2e8] sm:$0xff]
    %v3715 = vld [vmem:[#allocation13 + $0x2f0] sm:$0xf]
    %v3716 = vld [vmem:[#allocation13 + $0x2f4] sm:$0xff]
    %v3717 = vld [vmem:[#allocation13 + $0x2fc] sm:$0xff]
    %v3718 = vld [vmem:[#allocation13 + $0x304] sm:$0xff]
    %v3719 = vld [vmem:[#allocation13 + $0x30c] sm:$0xf]
    %v3720 = vld [vmem:[#allocation13 + $0x310] sm:$0xff]
    %v3721 = vld [vmem:[#allocation13 + $0x318] sm:$0xff]
    %v3722 = vld [vmem:[#allocation13 + $0x320] sm:$0xff]
    %v3723 = vld [vmem:[#allocation13 + $0x328] sm:$0xf]
    %v3724 = vld [vmem:[#allocation13 + $0x32c] sm:$0xff]
    %v3725 = vld [vmem:[#allocation13 + $0x334] sm:$0xff]
    %v3726 = vld [vmem:[#allocation13 + $0x33c] sm:$0xff]
    %v3727 = vld [vmem:[#allocation13 + $0x344] sm:$0xf]
    %v3728 = vld [vmem:[#allocation13 + $0x348] sm:$0xff]
    %v3729 = vld [vmem:[#allocation13 + $0x350] sm:$0xff]
    %v3730 = vld [vmem:[#allocation13 + $0x358] sm:$0xff]
    %v3731 = vld [vmem:[#allocation13 + $0x360] sm:$0xf]
    %v3732 = vld [vmem:[#allocation13 + $0x364] sm:$0xff]
    %v3733 = vld [vmem:[#allocation13 + $0x36c] sm:$0xff]
    %v3734 = vld [vmem:[#allocation13 + $0x374] sm:$0xff]
    %v3735 = vld [vmem:[#allocation13 + $0x37c] sm:$0xf]
    %v3736 = vld [vmem:[#allocation13 + $0x380] sm:$0xff]
    %v3737 = vld [vmem:[#allocation13 + $0x388] sm:$0xff]
    %v3738 = vld [vmem:[#allocation13 + $0x390] sm:$0xff]
    %v3739 = vld [vmem:[#allocation13 + $0x398] sm:$0xf]
    %v3740 = vld [vmem:[#allocation13 + $0x39c] sm:$0xff]
    %v3741 = vld [vmem:[#allocation13 + $0x3a4] sm:$0xff]
    %v3742 = vld [vmem:[#allocation13 + $0x3ac] sm:$0xff]
    %v3743 = vld [vmem:[#allocation13 + $0x3b4] sm:$0xf]
    %v3744 = vld [vmem:[#allocation13 + $0x3b8] sm:$0xff]
    %v3745 = vld [vmem:[#allocation13 + $0x3c0] sm:$0xff]
    %v3746 = vld [vmem:[#allocation13 + $0x3c8] sm:$0xff]
    %v3747 = vld [vmem:[#allocation13 + $0x3d0] sm:$0xf]
    %v3748 = vld [vmem:[#allocation13 + $0x3d4] sm:$0xff]
    %v3749 = vld [vmem:[#allocation13 + $0x3dc] sm:$0xff]
    %v3750 = vld [vmem:[#allocation13 + $0x3e4] sm:$0xff]
    %v3751 = vld [vmem:[#allocation13 + $0x3ec] sm:$0xf]
    %v3752 = vld [vmem:[#allocation13 + $0x3f0] sm:$0xff]
    %v3753 = vld [vmem:[#allocation13 + $0x3f8] sm:$0xff]
    %v3754 = vld [vmem:[#allocation13 + $0x400] sm:$0xff]
    %v3755 = vld [vmem:[#allocation13 + $0x408] sm:$0xf]
    %v3756 = vld [vmem:[#allocation13 + $0x40c] sm:$0xff]
    %v3757 = vld [vmem:[#allocation13 + $0x414] sm:$0xff]
    %v3758 = vld [vmem:[#allocation13 + $0x41c] sm:$0xff]
    %v3759 = vld [vmem:[#allocation13 + $0x424] sm:$0xf]
    %v3760 = vld [vmem:[#allocation13 + $0x428] sm:$0xff]
    %v3761 = vld [vmem:[#allocation13 + $0x430] sm:$0xff]
    %v3762 = vld [vmem:[#allocation13 + $0x438] sm:$0xff]
    %v3763 = vld [vmem:[#allocation13 + $0x440] sm:$0xf]
    %v3764 = vld [vmem:[#allocation13 + $0x444] sm:$0xff]
    %v3765 = vld [vmem:[#allocation13 + $0x44c] sm:$0xff]
    %v3766 = vld [vmem:[#allocation13 + $0x454] sm:$0xff]
    %v3767 = vld [vmem:[#allocation13 + $0x45c] sm:$0xf]
    %v3768 = vld [vmem:[#allocation13 + $0x460] sm:$0xff]
    %v3769 = vld [vmem:[#allocation13 + $0x468] sm:$0xff]
    %v3770 = vld [vmem:[#allocation13 + $0x470] sm:$0xff]
    %v3771 = vld [vmem:[#allocation13 + $0x478] sm:$0xf]
    %v3772 = vld [vmem:[#allocation13 + $0x47c] sm:$0xff]
    %v3773 = vld [vmem:[#allocation13 + $0x484] sm:$0xff]
    %v3774 = vld [vmem:[#allocation13 + $0x48c] sm:$0xff]
    %v3775 = vld [vmem:[#allocation13 + $0x494] sm:$0xf]
    %v3776 = vld [vmem:[#allocation13 + $0x498] sm:$0xff]
    %v3777 = vld [vmem:[#allocation13 + $0x4a0] sm:$0xff]
    %v3778 = vld [vmem:[#allocation13 + $0x4a8] sm:$0xff]
    %v3779 = vld [vmem:[#allocation13 + $0x4b0] sm:$0xf]
    %v3780 = vld [vmem:[#allocation13 + $0x4b4] sm:$0xff]
    %v3781 = vld [vmem:[#allocation13 + $0x4bc] sm:$0xff]
    %v3782 = vld [vmem:[#allocation13 + $0x4c4] sm:$0xff]
    %v3783 = vld [vmem:[#allocation13 + $0x4cc] sm:$0xf]
    %v3784 = vld [vmem:[#allocation13 + $0x4d0] sm:$0xff]
    %v3785 = vld [vmem:[#allocation13 + $0x4d8] sm:$0xff]
    %v3786 = vld [vmem:[#allocation13 + $0x4e0] sm:$0xff]
    %v3787 = vld [vmem:[#allocation13 + $0x4e8] sm:$0xf]
    %v3788 = vld [vmem:[#allocation13 + $0x4ec] sm:$0xff]
    %v3789 = vld [vmem:[#allocation13 + $0x4f4] sm:$0xff]
    %v3790 = vld [vmem:[#allocation13 + $0x4fc] sm:$0xff]
    %v3791 = vld [vmem:[#allocation13 + $0x504] sm:$0xf]
    %v3792 = vld [vmem:[#allocation13 + $0x508] sm:$0xff]
    %v3793 = vld [vmem:[#allocation13 + $0x510] sm:$0xff]
    %v3794 = vld [vmem:[#allocation13 + $0x518] sm:$0xff]
    %v3795 = vld [vmem:[#allocation13 + $0x520] sm:$0xf]
    %v3796 = vld [vmem:[#allocation13 + $0x524] sm:$0xff]
    %v3797 = vld [vmem:[#allocation13 + $0x52c] sm:$0xff]
    %v3798 = vld [vmem:[#allocation13 + $0x534] sm:$0xff]
    %v3799 = vld [vmem:[#allocation13 + $0x53c] sm:$0xf]
    %v3800 = vld [vmem:[#allocation13 + $0x540] sm:$0xff]
    %v3801 = vld [vmem:[#allocation13 + $0x548] sm:$0xff]
    %v3802 = vld [vmem:[#allocation13 + $0x550] sm:$0xff]
    %v3803 = vld [vmem:[#allocation13 + $0x558] sm:$0xf]
    %v3804 = vld [vmem:[#allocation13 + $0x55c] sm:$0xff]
    %v3805 = vld [vmem:[#allocation13 + $0x564] sm:$0xff]
    %v3806 = vld [vmem:[#allocation13 + $0x56c] sm:$0xff]
    %v3807 = vld [vmem:[#allocation13 + $0x574] sm:$0xf]
    %v3808 = vld [vmem:[#allocation13 + $0x578] sm:$0xff]
    %v3809 = vld [vmem:[#allocation13 + $0x580] sm:$0xff]
    %v3810 = vld [vmem:[#allocation13 + $0x588] sm:$0xff]
    %v3811 = vld [vmem:[#allocation13 + $0x590] sm:$0xf]
    %v3812 = vld [vmem:[#allocation13 + $0x594] sm:$0xff]
    %v3813 = vld [vmem:[#allocation13 + $0x59c] sm:$0xff]
    %v3814 = vld [vmem:[#allocation13 + $0x5a4] sm:$0xff]
    %v3815 = vld [vmem:[#allocation13 + $0x5ac] sm:$0xf]
    %v3816 = vld [vmem:[#allocation13 + $0x5b0] sm:$0xff]
    %v3817 = vld [vmem:[#allocation13 + $0x5b8] sm:$0xff]
    %v3818 = vld [vmem:[#allocation13 + $0x5c0] sm:$0xff]
    %v3819 = vld [vmem:[#allocation13 + $0x5c8] sm:$0xf]
    %v3820 = vld [vmem:[#allocation13 + $0x5cc] sm:$0xff]
    %v3821 = vld [vmem:[#allocation13 + $0x5d4] sm:$0xff]
    %v3822 = vld [vmem:[#allocation13 + $0x5dc] sm:$0xff]
    %v3823 = vld [vmem:[#allocation13 + $0x5e4] sm:$0xf]
    %v3824 = vld [vmem:[#allocation13 + $0x5e8] sm:$0xff]
    %v3825 = vld [vmem:[#allocation13 + $0x5f0] sm:$0xff]
    %v3826 = vld [vmem:[#allocation13 + $0x5f8] sm:$0xff]
    %v3827 = vld [vmem:[#allocation13 + $0x600] sm:$0xf]
    %v3828 = vld [vmem:[#allocation13 + $0x604] sm:$0xff]
    %v3829 = vld [vmem:[#allocation13 + $0x60c] sm:$0xff]
    %v3830 = vld [vmem:[#allocation13 + $0x614] sm:$0xff]
    %v3831 = vld [vmem:[#allocation13 + $0x61c] sm:$0xf]
    %v3832 = vld [vmem:[#allocation13 + $0x620] sm:$0xff]
    %v3833 = vld [vmem:[#allocation13 + $0x628] sm:$0xff]
    %v3834 = vld [vmem:[#allocation13 + $0x630] sm:$0xff]
    %v3835 = vld [vmem:[#allocation13 + $0x638] sm:$0xf]
    %v3836 = vld [vmem:[#allocation13 + $0x63c] sm:$0xff]
    %v3837 = vld [vmem:[#allocation13 + $0x644] sm:$0xff]
    %v3838 = vld [vmem:[#allocation13 + $0x64c] sm:$0xff]
    %v3839 = vld [vmem:[#allocation13 + $0x654] sm:$0xf]
    %v3840 = vld [vmem:[#allocation13 + $0x658] sm:$0xff]
    %v3841 = vld [vmem:[#allocation13 + $0x660] sm:$0xff]
    %v3842 = vld [vmem:[#allocation13 + $0x668] sm:$0xff]
    %v3843 = vld [vmem:[#allocation13 + $0x670] sm:$0xf]
    %v3844 = vld [vmem:[#allocation13 + $0x674] sm:$0xff]
    %v3845 = vld [vmem:[#allocation13 + $0x67c] sm:$0xff]
    %v3846 = vld [vmem:[#allocation13 + $0x684] sm:$0xff]
    %v3847 = vld [vmem:[#allocation13 + $0x68c] sm:$0xf]
    %v3848 = vld [vmem:[#allocation13 + $0x690] sm:$0xff]
    %v3849 = vld [vmem:[#allocation13 + $0x698] sm:$0xff]
    %v3850 = vld [vmem:[#allocation13 + $0x6a0] sm:$0xff]
    %v3851 = vld [vmem:[#allocation13 + $0x6a8] sm:$0xf]
    %v3852 = vld [vmem:[#allocation13 + $0x6ac] sm:$0xff]
    %v3853 = vld [vmem:[#allocation13 + $0x6b4] sm:$0xff]
    %v3854 = vld [vmem:[#allocation13 + $0x6bc] sm:$0xff]
    %v3855 = vld [vmem:[#allocation13 + $0x6c4] sm:$0xf]
    %v3856 = vld [vmem:[#allocation13 + $0x6c8] sm:$0xff]
    %v3857 = vld [vmem:[#allocation13 + $0x6d0] sm:$0xff]
    %v3858 = vld [vmem:[#allocation13 + $0x6d8] sm:$0xff]
    %v3859 = vld [vmem:[#allocation13 + $0x6e0] sm:$0xf]
    %v3860 = vld [vmem:[#allocation13 + $0x6e4] sm:$0xff]
    %v3861 = vld [vmem:[#allocation13 + $0x6ec] sm:$0xff]
    %v3862 = vld [vmem:[#allocation13 + $0x6f4] sm:$0xff]
    %v3863 = vld [vmem:[#allocation13 + $0x6fc] sm:$0xf]
    %v3865 = vlaneseq
    %v3866 = vshrl.u32 %v3865, 7
    %v3867 = vsub.s32 0, %v3866
    %v3868 = vrot.slane %v148, %v3867
    %v3869 = vlaneseq
    %v3870 = vshrl.u32 %v3869, 7
    %v3871 = vsub.s32 1, %v3870
    %v3872 = vrot.slane %v148, %v3871
    %v3873 = vlaneseq
    %v3874 = vshrl.u32 %v3873, 7
    %v3875 = vsub.s32 2, %v3874
    %v3876 = vrot.slane %v148, %v3875
    %v3877 = vlaneseq
    %v3878 = vshrl.u32 %v3877, 7
    %v3879 = vsub.s32 3, %v3878
    %v3880 = vrot.slane %v148, %v3879
    %v3881 = vlaneseq
    %v3882 = vshrl.u32 %v3881, 7
    %v3883 = vsub.s32 4, %v3882
    %v3884 = vrot.slane %v148, %v3883
    %v3885 = vlaneseq
    %v3886 = vshrl.u32 %v3885, 7
    %v3887 = vsub.s32 5, %v3886
    %v3888 = vrot.slane %v148, %v3887
    %v3889 = vlaneseq
    %v3890 = vshrl.u32 %v3889, 7
    %v3891 = vsub.s32 6, %v3890
    %v3892 = vrot.slane %v148, %v3891
    %v4156 = vunpack.c.l.b16 %v3608
    %v4157 = vunpack.c.h.b16 %v3608
    %v4158 = vunpack.c.l.b16 %v3609
    %v4159 = vunpack.c.h.b16 %v3609
    %v4160 = vunpack.c.l.b16 %v3610
    %v4161 = vunpack.c.h.b16 %v3610
    %v4162 = vunpack.c.l.b16 %v3611
    %v4163 = vunpack.c.l.b16 %v3612
    %v4164 = vunpack.c.h.b16 %v3612
    %v4165 = vunpack.c.l.b16 %v3613
    %v4166 = vunpack.c.h.b16 %v3613
    %v4167 = vunpack.c.l.b16 %v3614
    %v4168 = vunpack.c.h.b16 %v3614
    %v4169 = vunpack.c.l.b16 %v3615
    %v4170 = vunpack.c.l.b16 %v3616
    %v4171 = vunpack.c.h.b16 %v3616
    %v4172 = vunpack.c.l.b16 %v3617
    %v4173 = vunpack.c.h.b16 %v3617
    %v4174 = vunpack.c.l.b16 %v3618
    %v4175 = vunpack.c.h.b16 %v3618
    %v4176 = vunpack.c.l.b16 %v3619
    %v4177 = vunpack.c.l.b16 %v3620
    %v4178 = vunpack.c.h.b16 %v3620
    %v4179 = vunpack.c.l.b16 %v3621
    %v4180 = vunpack.c.h.b16 %v3621
    %v4181 = vunpack.c.l.b16 %v3622
    %v4182 = vunpack.c.h.b16 %v3622
    %v4183 = vunpack.c.l.b16 %v3623
    %v4184 = vunpack.c.l.b16 %v3624
    %v4185 = vunpack.c.h.b16 %v3624
    %v4186 = vunpack.c.l.b16 %v3625
    %v4187 = vunpack.c.h.b16 %v3625
    %v4188 = vunpack.c.l.b16 %v3626
    %v4189 = vunpack.c.h.b16 %v3626
    %v4190 = vunpack.c.l.b16 %v3627
    %v4191 = vunpack.c.l.b16 %v3628
    %v4192 = vunpack.c.h.b16 %v3628
    %v4193 = vunpack.c.l.b16 %v3629
    %v4194 = vunpack.c.h.b16 %v3629
    %v4195 = vunpack.c.l.b16 %v3630
    %v4196 = vunpack.c.h.b16 %v3630
    %v4197 = vunpack.c.l.b16 %v3631
    %v4198 = vunpack.c.l.b16 %v3632
    %v4199 = vunpack.c.h.b16 %v3632
    %v4200 = vunpack.c.l.b16 %v3633
    %v4201 = vunpack.c.h.b16 %v3633
    %v4202 = vunpack.c.l.b16 %v3634
    %v4203 = vunpack.c.h.b16 %v3634
    %v4204 = vunpack.c.l.b16 %v3635
    %v4205 = vunpack.c.l.b16 %v3636
    %v4206 = vunpack.c.h.b16 %v3636
    %v4207 = vunpack.c.l.b16 %v3637
    %v4208 = vunpack.c.h.b16 %v3637
    %v4209 = vunpack.c.l.b16 %v3638
    %v4210 = vunpack.c.h.b16 %v3638
    %v4211 = vunpack.c.l.b16 %v3639
    %v4212 = vunpack.c.l.b16 %v3640
    %v4213 = vunpack.c.h.b16 %v3640
    %v4214 = vunpack.c.l.b16 %v3641
    %v4215 = vunpack.c.h.b16 %v3641
    %v4216 = vunpack.c.l.b16 %v3642
    %v4217 = vunpack.c.h.b16 %v3642
    %v4218 = vunpack.c.l.b16 %v3643
    %v4219 = vunpack.c.l.b16 %v3644
    %v4220 = vunpack.c.h.b16 %v3644
    %v4221 = vunpack.c.l.b16 %v3645
    %v4222 = vunpack.c.h.b16 %v3645
    %v4223 = vunpack.c.l.b16 %v3646
    %v4224 = vunpack.c.h.b16 %v3646
    %v4225 = vunpack.c.l.b16 %v3647
    %v4226 = vunpack.c.l.b16 %v3648
    %v4227 = vunpack.c.h.b16 %v3648
    %v4228 = vunpack.c.l.b16 %v3649
    %v4229 = vunpack.c.h.b16 %v3649
    %v4230 = vunpack.c.l.b16 %v3650
    %v4231 = vunpack.c.h.b16 %v3650
    %v4232 = vunpack.c.l.b16 %v3651
    %v4233 = vunpack.c.l.b16 %v3652
    %v4234 = vunpack.c.h.b16 %v3652
    %v4235 = vunpack.c.l.b16 %v3653
    %v4236 = vunpack.c.h.b16 %v3653
    %v4237 = vunpack.c.l.b16 %v3654
    %v4238 = vunpack.c.h.b16 %v3654
    %v4239 = vunpack.c.l.b16 %v3655
    %v4240 = vunpack.c.l.b16 %v3656
    %v4241 = vunpack.c.h.b16 %v3656
    %v4242 = vunpack.c.l.b16 %v3657
    %v4243 = vunpack.c.h.b16 %v3657
    %v4244 = vunpack.c.l.b16 %v3658
    %v4245 = vunpack.c.h.b16 %v3658
    %v4246 = vunpack.c.l.b16 %v3659
    %v4247 = vunpack.c.l.b16 %v3660
    %v4248 = vunpack.c.h.b16 %v3660
    %v4249 = vunpack.c.l.b16 %v3661
    %v4250 = vunpack.c.h.b16 %v3661
    %v4251 = vunpack.c.l.b16 %v3662
    %v4252 = vunpack.c.h.b16 %v3662
    %v4253 = vunpack.c.l.b16 %v3663
    %v4254 = vunpack.c.l.b16 %v3664
    %v4255 = vunpack.c.h.b16 %v3664
    %v4256 = vunpack.c.l.b16 %v3665
    %v4257 = vunpack.c.h.b16 %v3665
    %v4258 = vunpack.c.l.b16 %v3666
    %v4259 = vunpack.c.h.b16 %v3666
    %v4260 = vunpack.c.l.b16 %v3667
    %v4261 = vunpack.c.l.b16 %v3668
    %v4262 = vunpack.c.h.b16 %v3668
    %v4263 = vunpack.c.l.b16 %v3669
    %v4264 = vunpack.c.h.b16 %v3669
    %v4265 = vunpack.c.l.b16 %v3670
    %v4266 = vunpack.c.h.b16 %v3670
    %v4267 = vunpack.c.l.b16 %v3671
    %v4268 = vunpack.c.l.b16 %v3672
    %v4269 = vunpack.c.h.b16 %v3672
    %v4270 = vunpack.c.l.b16 %v3673
    %v4271 = vunpack.c.h.b16 %v3673
    %v4272 = vunpack.c.l.b16 %v3674
    %v4273 = vunpack.c.h.b16 %v3674
    %v4274 = vunpack.c.l.b16 %v3675
    %v4275 = vunpack.c.l.b16 %v3676
    %v4276 = vunpack.c.h.b16 %v3676
    %v4277 = vunpack.c.l.b16 %v3677
    %v4278 = vunpack.c.h.b16 %v3677
    %v4279 = vunpack.c.l.b16 %v3678
    %v4280 = vunpack.c.h.b16 %v3678
    %v4281 = vunpack.c.l.b16 %v3679
    %v4282 = vunpack.c.l.b16 %v3680
    %v4283 = vunpack.c.h.b16 %v3680
    %v4284 = vunpack.c.l.b16 %v3681
    %v4285 = vunpack.c.h.b16 %v3681
    %v4286 = vunpack.c.l.b16 %v3682
    %v4287 = vunpack.c.h.b16 %v3682
    %v4288 = vunpack.c.l.b16 %v3683
    %v4289 = vunpack.c.l.b16 %v3684
    %v4290 = vunpack.c.h.b16 %v3684
    %v4291 = vunpack.c.l.b16 %v3685
    %v4292 = vunpack.c.h.b16 %v3685
    %v4293 = vunpack.c.l.b16 %v3686
    %v4294 = vunpack.c.h.b16 %v3686
    %v4295 = vunpack.c.l.b16 %v3687
    %v4296 = vunpack.c.l.b16 %v3688
    %v4297 = vunpack.c.h.b16 %v3688
    %v4298 = vunpack.c.l.b16 %v3689
    %v4299 = vunpack.c.h.b16 %v3689
    %v4300 = vunpack.c.l.b16 %v3690
    %v4301 = vunpack.c.h.b16 %v3690
    %v4302 = vunpack.c.l.b16 %v3691
    %v4303 = vunpack.c.l.b16 %v3692
    %v4304 = vunpack.c.h.b16 %v3692
    %v4305 = vunpack.c.l.b16 %v3693
    %v4306 = vunpack.c.h.b16 %v3693
    %v4307 = vunpack.c.l.b16 %v3694
    %v4308 = vunpack.c.h.b16 %v3694
    %v4309 = vunpack.c.l.b16 %v3695
    %v4310 = vunpack.c.l.b16 %v3696
    %v4311 = vunpack.c.h.b16 %v3696
    %v4312 = vunpack.c.l.b16 %v3697
    %v4313 = vunpack.c.h.b16 %v3697
    %v4314 = vunpack.c.l.b16 %v3698
    %v4315 = vunpack.c.h.b16 %v3698
    %v4316 = vunpack.c.l.b16 %v3699
    %v4317 = vunpack.c.l.b16 %v3700
    %v4318 = vunpack.c.h.b16 %v3700
    %v4319 = vunpack.c.l.b16 %v3701
    %v4320 = vunpack.c.h.b16 %v3701
    %v4321 = vunpack.c.l.b16 %v3702
    %v4322 = vunpack.c.h.b16 %v3702
    %v4323 = vunpack.c.l.b16 %v3703
    %v4324 = vunpack.c.l.b16 %v3704
    %v4325 = vunpack.c.h.b16 %v3704
    %v4326 = vunpack.c.l.b16 %v3705
    %v4327 = vunpack.c.h.b16 %v3705
    %v4328 = vunpack.c.l.b16 %v3706
    %v4329 = vunpack.c.h.b16 %v3706
    %v4330 = vunpack.c.l.b16 %v3707
    %v4331 = vunpack.c.l.b16 %v3708
    %v4332 = vunpack.c.h.b16 %v3708
    %v4333 = vunpack.c.l.b16 %v3709
    %v4334 = vunpack.c.h.b16 %v3709
    %v4335 = vunpack.c.l.b16 %v3710
    %v4336 = vunpack.c.h.b16 %v3710
    %v4337 = vunpack.c.l.b16 %v3711
    %v4338 = vunpack.c.l.b16 %v3712
    %v4339 = vunpack.c.h.b16 %v3712
    %v4340 = vunpack.c.l.b16 %v3713
    %v4341 = vunpack.c.h.b16 %v3713
    %v4342 = vunpack.c.l.b16 %v3714
    %v4343 = vunpack.c.h.b16 %v3714
    %v4344 = vunpack.c.l.b16 %v3715
    %v4345 = vunpack.c.l.b16 %v3716
    %v4346 = vunpack.c.h.b16 %v3716
    %v4347 = vunpack.c.l.b16 %v3717
    %v4348 = vunpack.c.h.b16 %v3717
    %v4349 = vunpack.c.l.b16 %v3718
    %v4350 = vunpack.c.h.b16 %v3718
    %v4351 = vunpack.c.l.b16 %v3719
    %v4352 = vunpack.c.l.b16 %v3720
    %v4353 = vunpack.c.h.b16 %v3720
    %v4354 = vunpack.c.l.b16 %v3721
    %v4355 = vunpack.c.h.b16 %v3721
    %v4356 = vunpack.c.l.b16 %v3722
    %v4357 = vunpack.c.h.b16 %v3722
    %v4358 = vunpack.c.l.b16 %v3723
    %v4359 = vunpack.c.l.b16 %v3724
    %v4360 = vunpack.c.h.b16 %v3724
    %v4361 = vunpack.c.l.b16 %v3725
    %v4362 = vunpack.c.h.b16 %v3725
    %v4363 = vunpack.c.l.b16 %v3726
    %v4364 = vunpack.c.h.b16 %v3726
    %v4365 = vunpack.c.l.b16 %v3727
    %v4366 = vunpack.c.l.b16 %v3728
    %v4367 = vunpack.c.h.b16 %v3728
    %v4368 = vunpack.c.l.b16 %v3729
    %v4369 = vunpack.c.h.b16 %v3729
    %v4370 = vunpack.c.l.b16 %v3730
    %v4371 = vunpack.c.h.b16 %v3730
    %v4372 = vunpack.c.l.b16 %v3731
    %v4373 = vunpack.c.l.b16 %v3732
    %v4374 = vunpack.c.h.b16 %v3732
    %v4375 = vunpack.c.l.b16 %v3733
    %v4376 = vunpack.c.h.b16 %v3733
    %v4377 = vunpack.c.l.b16 %v3734
    %v4378 = vunpack.c.h.b16 %v3734
    %v4379 = vunpack.c.l.b16 %v3735
    %v4380 = vunpack.c.l.b16 %v3736
    %v4381 = vunpack.c.h.b16 %v3736
    %v4382 = vunpack.c.l.b16 %v3737
    %v4383 = vunpack.c.h.b16 %v3737
    %v4384 = vunpack.c.l.b16 %v3738
    %v4385 = vunpack.c.h.b16 %v3738
    %v4386 = vunpack.c.l.b16 %v3739
    %v4387 = vunpack.c.l.b16 %v3740
    %v4388 = vunpack.c.h.b16 %v3740
    %v4389 = vunpack.c.l.b16 %v3741
    %v4390 = vunpack.c.h.b16 %v3741
    %v4391 = vunpack.c.l.b16 %v3742
    %v4392 = vunpack.c.h.b16 %v3742
    %v4393 = vunpack.c.l.b16 %v3743
    %v4394 = vunpack.c.l.b16 %v3744
    %v4395 = vunpack.c.h.b16 %v3744
    %v4396 = vunpack.c.l.b16 %v3745
    %v4397 = vunpack.c.h.b16 %v3745
    %v4398 = vunpack.c.l.b16 %v3746
    %v4399 = vunpack.c.h.b16 %v3746
    %v4400 = vunpack.c.l.b16 %v3747
    %v4401 = vunpack.c.l.b16 %v3748
    %v4402 = vunpack.c.h.b16 %v3748
    %v4403 = vunpack.c.l.b16 %v3749
    %v4404 = vunpack.c.h.b16 %v3749
    %v4405 = vunpack.c.l.b16 %v3750
    %v4406 = vunpack.c.h.b16 %v3750
    %v4407 = vunpack.c.l.b16 %v3751
    %v4408 = vunpack.c.l.b16 %v3752
    %v4409 = vunpack.c.h.b16 %v3752
    %v4410 = vunpack.c.l.b16 %v3753
    %v4411 = vunpack.c.h.b16 %v3753
    %v4412 = vunpack.c.l.b16 %v3754
    %v4413 = vunpack.c.h.b16 %v3754
    %v4414 = vunpack.c.l.b16 %v3755
    %v4415 = vunpack.c.l.b16 %v3756
    %v4416 = vunpack.c.h.b16 %v3756
    %v4417 = vunpack.c.l.b16 %v3757
    %v4418 = vunpack.c.h.b16 %v3757
    %v4419 = vunpack.c.l.b16 %v3758
    %v4420 = vunpack.c.h.b16 %v3758
    %v4421 = vunpack.c.l.b16 %v3759
    %v4422 = vunpack.c.l.b16 %v3760
    %v4423 = vunpack.c.h.b16 %v3760
    %v4424 = vunpack.c.l.b16 %v3761
    %v4425 = vunpack.c.h.b16 %v3761
    %v4426 = vunpack.c.l.b16 %v3762
    %v4427 = vunpack.c.h.b16 %v3762
    %v4428 = vunpack.c.l.b16 %v3763
    %v4429 = vunpack.c.l.b16 %v3764
    %v4430 = vunpack.c.h.b16 %v3764
    %v4431 = vunpack.c.l.b16 %v3765
    %v4432 = vunpack.c.h.b16 %v3765
    %v4433 = vunpack.c.l.b16 %v3766
    %v4434 = vunpack.c.h.b16 %v3766
    %v4435 = vunpack.c.l.b16 %v3767
    %v4436 = vunpack.c.l.b16 %v3768
    %v4437 = vunpack.c.h.b16 %v3768
    %v4438 = vunpack.c.l.b16 %v3769
    %v4439 = vunpack.c.h.b16 %v3769
    %v4440 = vunpack.c.l.b16 %v3770
    %v4441 = vunpack.c.h.b16 %v3770
    %v4442 = vunpack.c.l.b16 %v3771
    %v4443 = vunpack.c.l.b16 %v3772
    %v4444 = vunpack.c.h.b16 %v3772
    %v4445 = vunpack.c.l.b16 %v3773
    %v4446 = vunpack.c.h.b16 %v3773
    %v4447 = vunpack.c.l.b16 %v3774
    %v4448 = vunpack.c.h.b16 %v3774
    %v4449 = vunpack.c.l.b16 %v3775
    %v4450 = vunpack.c.l.b16 %v3776
    %v4451 = vunpack.c.h.b16 %v3776
    %v4452 = vunpack.c.l.b16 %v3777
    %v4453 = vunpack.c.h.b16 %v3777
    %v4454 = vunpack.c.l.b16 %v3778
    %v4455 = vunpack.c.h.b16 %v3778
    %v4456 = vunpack.c.l.b16 %v3779
    %v4457 = vunpack.c.l.b16 %v3780
    %v4458 = vunpack.c.h.b16 %v3780
    %v4459 = vunpack.c.l.b16 %v3781
    %v4460 = vunpack.c.h.b16 %v3781
    %v4461 = vunpack.c.l.b16 %v3782
    %v4462 = vunpack.c.h.b16 %v3782
    %v4463 = vunpack.c.l.b16 %v3783
    %v4464 = vunpack.c.l.b16 %v3784
    %v4465 = vunpack.c.h.b16 %v3784
    %v4466 = vunpack.c.l.b16 %v3785
    %v4467 = vunpack.c.h.b16 %v3785
    %v4468 = vunpack.c.l.b16 %v3786
    %v4469 = vunpack.c.h.b16 %v3786
    %v4470 = vunpack.c.l.b16 %v3787
    %v4471 = vunpack.c.l.b16 %v3788
    %v4472 = vunpack.c.h.b16 %v3788
    %v4473 = vunpack.c.l.b16 %v3789
    %v4474 = vunpack.c.h.b16 %v3789
    %v4475 = vunpack.c.l.b16 %v3790
    %v4476 = vunpack.c.h.b16 %v3790
    %v4477 = vunpack.c.l.b16 %v3791
    %v4478 = vunpack.c.l.b16 %v3792
    %v4479 = vunpack.c.h.b16 %v3792
    %v4480 = vunpack.c.l.b16 %v3793
    %v4481 = vunpack.c.h.b16 %v3793
    %v4482 = vunpack.c.l.b16 %v3794
    %v4483 = vunpack.c.h.b16 %v3794
    %v4484 = vunpack.c.l.b16 %v3795
    %v4485 = vunpack.c.l.b16 %v3796
    %v4486 = vunpack.c.h.b16 %v3796
    %v4487 = vunpack.c.l.b16 %v3797
    %v4488 = vunpack.c.h.b16 %v3797
    %v4489 = vunpack.c.l.b16 %v3798
    %v4490 = vunpack.c.h.b16 %v3798
    %v4491 = vunpack.c.l.b16 %v3799
    %v4492 = vunpack.c.l.b16 %v3800
    %v4493 = vunpack.c.h.b16 %v3800
    %v4494 = vunpack.c.l.b16 %v3801
    %v4495 = vunpack.c.h.b16 %v3801
    %v4496 = vunpack.c.l.b16 %v3802
    %v4497 = vunpack.c.h.b16 %v3802
    %v4498 = vunpack.c.l.b16 %v3803
    %v4499 = vunpack.c.l.b16 %v3804
    %v4500 = vunpack.c.h.b16 %v3804
    %v4501 = vunpack.c.l.b16 %v3805
    %v4502 = vunpack.c.h.b16 %v3805
    %v4503 = vunpack.c.l.b16 %v3806
    %v4504 = vunpack.c.h.b16 %v3806
    %v4505 = vunpack.c.l.b16 %v3807
    %v4506 = vunpack.c.l.b16 %v3808
    %v4507 = vunpack.c.h.b16 %v3808
    %v4508 = vunpack.c.l.b16 %v3809
    %v4509 = vunpack.c.h.b16 %v3809
    %v4510 = vunpack.c.l.b16 %v3810
    %v4511 = vunpack.c.h.b16 %v3810
    %v4512 = vunpack.c.l.b16 %v3811
    %v4513 = vunpack.c.l.b16 %v3812
    %v4514 = vunpack.c.h.b16 %v3812
    %v4515 = vunpack.c.l.b16 %v3813
    %v4516 = vunpack.c.h.b16 %v3813
    %v4517 = vunpack.c.l.b16 %v3814
    %v4518 = vunpack.c.h.b16 %v3814
    %v4519 = vunpack.c.l.b16 %v3815
    %v4520 = vunpack.c.l.b16 %v3816
    %v4521 = vunpack.c.h.b16 %v3816
    %v4522 = vunpack.c.l.b16 %v3817
    %v4523 = vunpack.c.h.b16 %v3817
    %v4524 = vunpack.c.l.b16 %v3818
    %v4525 = vunpack.c.h.b16 %v3818
    %v4526 = vunpack.c.l.b16 %v3819
    %v4527 = vunpack.c.l.b16 %v3820
    %v4528 = vunpack.c.h.b16 %v3820
    %v4529 = vunpack.c.l.b16 %v3821
    %v4530 = vunpack.c.h.b16 %v3821
    %v4531 = vunpack.c.l.b16 %v3822
    %v4532 = vunpack.c.h.b16 %v3822
    %v4533 = vunpack.c.l.b16 %v3823
    %v4534 = vunpack.c.l.b16 %v3824
    %v4535 = vunpack.c.h.b16 %v3824
    %v4536 = vunpack.c.l.b16 %v3825
    %v4537 = vunpack.c.h.b16 %v3825
    %v4538 = vunpack.c.l.b16 %v3826
    %v4539 = vunpack.c.h.b16 %v3826
    %v4540 = vunpack.c.l.b16 %v3827
    %v4541 = vunpack.c.l.b16 %v3828
    %v4542 = vunpack.c.h.b16 %v3828
    %v4543 = vunpack.c.l.b16 %v3829
    %v4544 = vunpack.c.h.b16 %v3829
    %v4545 = vunpack.c.l.b16 %v3830
    %v4546 = vunpack.c.h.b16 %v3830
    %v4547 = vunpack.c.l.b16 %v3831
    %v4548 = vunpack.c.l.b16 %v3832
    %v4549 = vunpack.c.h.b16 %v3832
    %v4550 = vunpack.c.l.b16 %v3833
    %v4551 = vunpack.c.h.b16 %v3833
    %v4552 = vunpack.c.l.b16 %v3834
    %v4553 = vunpack.c.h.b16 %v3834
    %v4554 = vunpack.c.l.b16 %v3835
    %v4555 = vunpack.c.l.b16 %v3836
    %v4556 = vunpack.c.h.b16 %v3836
    %v4557 = vunpack.c.l.b16 %v3837
    %v4558 = vunpack.c.h.b16 %v3837
    %v4559 = vunpack.c.l.b16 %v3838
    %v4560 = vunpack.c.h.b16 %v3838
    %v4561 = vunpack.c.l.b16 %v3839
    %v4562 = vunpack.c.l.b16 %v3840
    %v4563 = vunpack.c.h.b16 %v3840
    %v4564 = vunpack.c.l.b16 %v3841
    %v4565 = vunpack.c.h.b16 %v3841
    %v4566 = vunpack.c.l.b16 %v3842
    %v4567 = vunpack.c.h.b16 %v3842
    %v4568 = vunpack.c.l.b16 %v3843
    %v4569 = vunpack.c.l.b16 %v3844
    %v4570 = vunpack.c.h.b16 %v3844
    %v4571 = vunpack.c.l.b16 %v3845
    %v4572 = vunpack.c.h.b16 %v3845
    %v4573 = vunpack.c.l.b16 %v3846
    %v4574 = vunpack.c.h.b16 %v3846
    %v4575 = vunpack.c.l.b16 %v3847
    %v4576 = vunpack.c.l.b16 %v3848
    %v4577 = vunpack.c.h.b16 %v3848
    %v4578 = vunpack.c.l.b16 %v3849
    %v4579 = vunpack.c.h.b16 %v3849
    %v4580 = vunpack.c.l.b16 %v3850
    %v4581 = vunpack.c.h.b16 %v3850
    %v4582 = vunpack.c.l.b16 %v3851
    %v4583 = vunpack.c.l.b16 %v3852
    %v4584 = vunpack.c.h.b16 %v3852
    %v4585 = vunpack.c.l.b16 %v3853
    %v4586 = vunpack.c.h.b16 %v3853
    %v4587 = vunpack.c.l.b16 %v3854
    %v4588 = vunpack.c.h.b16 %v3854
    %v4589 = vunpack.c.l.b16 %v3855
    %v4590 = vunpack.c.l.b16 %v3856
    %v4591 = vunpack.c.h.b16 %v3856
    %v4592 = vunpack.c.l.b16 %v3857
    %v4593 = vunpack.c.h.b16 %v3857
    %v4594 = vunpack.c.l.b16 %v3858
    %v4595 = vunpack.c.h.b16 %v3858
    %v4596 = vunpack.c.l.b16 %v3859
    %v4597 = vunpack.c.l.b16 %v3860
    %v4598 = vunpack.c.h.b16 %v3860
    %v4599 = vunpack.c.l.b16 %v3861
    %v4600 = vunpack.c.h.b16 %v3861
    %v4601 = vunpack.c.l.b16 %v3862
    %v4602 = vunpack.c.h.b16 %v3862
    %v4603 = vunpack.c.l.b16 %v3863
    %v4604 = vpack.c.b16 %v4163, %v4156
    %v4605 = vpack.c.b16 %v4164, %v4157
    %v4606 = vpack.c.b16 %v4165, %v4158
    %v4607 = vpack.c.b16 %v4166, %v4159
    %v4608 = vpack.c.b16 %v4167, %v4160
    %v4609 = vpack.c.b16 %v4168, %v4161
    %v4610 = vpack.c.b16 %v4169, %v4162
    %v4611 = vpack.c.b16 %v4177, %v4170
    %v4612 = vpack.c.b16 %v4178, %v4171
    %v4613 = vpack.c.b16 %v4179, %v4172
    %v4614 = vpack.c.b16 %v4180, %v4173
    %v4615 = vpack.c.b16 %v4181, %v4174
    %v4616 = vpack.c.b16 %v4182, %v4175
    %v4617 = vpack.c.b16 %v4183, %v4176
    %v4618 = vpack.c.b16 %v4191, %v4184
    %v4619 = vpack.c.b16 %v4192, %v4185
    %v4620 = vpack.c.b16 %v4193, %v4186
    %v4621 = vpack.c.b16 %v4194, %v4187
    %v4622 = vpack.c.b16 %v4195, %v4188
    %v4623 = vpack.c.b16 %v4196, %v4189
    %v4624 = vpack.c.b16 %v4197, %v4190
    %v4625 = vpack.c.b16 %v4205, %v4198
    %v4626 = vpack.c.b16 %v4206, %v4199
    %v4627 = vpack.c.b16 %v4207, %v4200
    %v4628 = vpack.c.b16 %v4208, %v4201
    %v4629 = vpack.c.b16 %v4209, %v4202
    %v4630 = vpack.c.b16 %v4210, %v4203
    %v4631 = vpack.c.b16 %v4211, %v4204
    %v4632 = vpack.c.b16 %v4219, %v4212
    %v4633 = vpack.c.b16 %v4220, %v4213
    %v4634 = vpack.c.b16 %v4221, %v4214
    %v4635 = vpack.c.b16 %v4222, %v4215
    %v4636 = vpack.c.b16 %v4223, %v4216
    %v4637 = vpack.c.b16 %v4224, %v4217
    %v4638 = vpack.c.b16 %v4225, %v4218
    %v4639 = vpack.c.b16 %v4233, %v4226
    %v4640 = vpack.c.b16 %v4234, %v4227
    %v4641 = vpack.c.b16 %v4235, %v4228
    %v4642 = vpack.c.b16 %v4236, %v4229
    %v4643 = vpack.c.b16 %v4237, %v4230
    %v4644 = vpack.c.b16 %v4238, %v4231
    %v4645 = vpack.c.b16 %v4239, %v4232
    %v4646 = vpack.c.b16 %v4247, %v4240
    %v4647 = vpack.c.b16 %v4248, %v4241
    %v4648 = vpack.c.b16 %v4249, %v4242
    %v4649 = vpack.c.b16 %v4250, %v4243
    %v4650 = vpack.c.b16 %v4251, %v4244
    %v4651 = vpack.c.b16 %v4252, %v4245
    %v4652 = vpack.c.b16 %v4253, %v4246
    %v4653 = vpack.c.b16 %v4261, %v4254
    %v4654 = vpack.c.b16 %v4262, %v4255
    %v4655 = vpack.c.b16 %v4263, %v4256
    %v4656 = vpack.c.b16 %v4264, %v4257
    %v4657 = vpack.c.b16 %v4265, %v4258
    %v4658 = vpack.c.b16 %v4266, %v4259
    %v4659 = vpack.c.b16 %v4267, %v4260
    %v4660 = vpack.c.b16 %v4275, %v4268
    %v4661 = vpack.c.b16 %v4276, %v4269
    %v4662 = vpack.c.b16 %v4277, %v4270
    %v4663 = vpack.c.b16 %v4278, %v4271
    %v4664 = vpack.c.b16 %v4279, %v4272
    %v4665 = vpack.c.b16 %v4280, %v4273
    %v4666 = vpack.c.b16 %v4281, %v4274
    %v4667 = vpack.c.b16 %v4289, %v4282
    %v4668 = vpack.c.b16 %v4290, %v4283
    %v4669 = vpack.c.b16 %v4291, %v4284
    %v4670 = vpack.c.b16 %v4292, %v4285
    %v4671 = vpack.c.b16 %v4293, %v4286
    %v4672 = vpack.c.b16 %v4294, %v4287
    %v4673 = vpack.c.b16 %v4295, %v4288
    %v4674 = vpack.c.b16 %v4303, %v4296
    %v4675 = vpack.c.b16 %v4304, %v4297
    %v4676 = vpack.c.b16 %v4305, %v4298
    %v4677 = vpack.c.b16 %v4306, %v4299
    %v4678 = vpack.c.b16 %v4307, %v4300
    %v4679 = vpack.c.b16 %v4308, %v4301
    %v4680 = vpack.c.b16 %v4309, %v4302
    %v4681 = vpack.c.b16 %v4317, %v4310
    %v4682 = vpack.c.b16 %v4318, %v4311
    %v4683 = vpack.c.b16 %v4319, %v4312
    %v4684 = vpack.c.b16 %v4320, %v4313
    %v4685 = vpack.c.b16 %v4321, %v4314
    %v4686 = vpack.c.b16 %v4322, %v4315
    %v4687 = vpack.c.b16 %v4323, %v4316
    %v4688 = vpack.c.b16 %v4331, %v4324
    %v4689 = vpack.c.b16 %v4332, %v4325
    %v4690 = vpack.c.b16 %v4333, %v4326
    %v4691 = vpack.c.b16 %v4334, %v4327
    %v4692 = vpack.c.b16 %v4335, %v4328
    %v4693 = vpack.c.b16 %v4336, %v4329
    %v4694 = vpack.c.b16 %v4337, %v4330
    %v4695 = vpack.c.b16 %v4345, %v4338
    %v4696 = vpack.c.b16 %v4346, %v4339
    %v4697 = vpack.c.b16 %v4347, %v4340
    %v4698 = vpack.c.b16 %v4348, %v4341
    %v4699 = vpack.c.b16 %v4349, %v4342
    %v4700 = vpack.c.b16 %v4350, %v4343
    %v4701 = vpack.c.b16 %v4351, %v4344
    %v4702 = vpack.c.b16 %v4359, %v4352
    %v4703 = vpack.c.b16 %v4360, %v4353
    %v4704 = vpack.c.b16 %v4361, %v4354
    %v4705 = vpack.c.b16 %v4362, %v4355
    %v4706 = vpack.c.b16 %v4363, %v4356
    %v4707 = vpack.c.b16 %v4364, %v4357
    %v4708 = vpack.c.b16 %v4365, %v4358
    %v4709 = vpack.c.b16 %v4373, %v4366
    %v4710 = vpack.c.b16 %v4374, %v4367
    %v4711 = vpack.c.b16 %v4375, %v4368
    %v4712 = vpack.c.b16 %v4376, %v4369
    %v4713 = vpack.c.b16 %v4377, %v4370
    %v4714 = vpack.c.b16 %v4378, %v4371
    %v4715 = vpack.c.b16 %v4379, %v4372
    %v4716 = vpack.c.b16 %v4387, %v4380
    %v4717 = vpack.c.b16 %v4388, %v4381
    %v4718 = vpack.c.b16 %v4389, %v4382
    %v4719 = vpack.c.b16 %v4390, %v4383
    %v4720 = vpack.c.b16 %v4391, %v4384
    %v4721 = vpack.c.b16 %v4392, %v4385
    %v4722 = vpack.c.b16 %v4393, %v4386
    %v4723 = vpack.c.b16 %v4401, %v4394
    %v4724 = vpack.c.b16 %v4402, %v4395
    %v4725 = vpack.c.b16 %v4403, %v4396
    %v4726 = vpack.c.b16 %v4404, %v4397
    %v4727 = vpack.c.b16 %v4405, %v4398
    %v4728 = vpack.c.b16 %v4406, %v4399
    %v4729 = vpack.c.b16 %v4407, %v4400
    %v4730 = vpack.c.b16 %v4415, %v4408
    %v4731 = vpack.c.b16 %v4416, %v4409
    %v4732 = vpack.c.b16 %v4417, %v4410
    %v4733 = vpack.c.b16 %v4418, %v4411
    %v4734 = vpack.c.b16 %v4419, %v4412
    %v4735 = vpack.c.b16 %v4420, %v4413
    %v4736 = vpack.c.b16 %v4421, %v4414
    %v4737 = vpack.c.b16 %v4429, %v4422
    %v4738 = vpack.c.b16 %v4430, %v4423
    %v4739 = vpack.c.b16 %v4431, %v4424
    %v4740 = vpack.c.b16 %v4432, %v4425
    %v4741 = vpack.c.b16 %v4433, %v4426
    %v4742 = vpack.c.b16 %v4434, %v4427
    %v4743 = vpack.c.b16 %v4435, %v4428
    %v4744 = vpack.c.b16 %v4443, %v4436
    %v4745 = vpack.c.b16 %v4444, %v4437
    %v4746 = vpack.c.b16 %v4445, %v4438
    %v4747 = vpack.c.b16 %v4446, %v4439
    %v4748 = vpack.c.b16 %v4447, %v4440
    %v4749 = vpack.c.b16 %v4448, %v4441
    %v4750 = vpack.c.b16 %v4449, %v4442
    %v4751 = vpack.c.b16 %v4457, %v4450
    %v4752 = vpack.c.b16 %v4458, %v4451
    %v4753 = vpack.c.b16 %v4459, %v4452
    %v4754 = vpack.c.b16 %v4460, %v4453
    %v4755 = vpack.c.b16 %v4461, %v4454
    %v4756 = vpack.c.b16 %v4462, %v4455
    %v4757 = vpack.c.b16 %v4463, %v4456
    %v4758 = vpack.c.b16 %v4471, %v4464
    %v4759 = vpack.c.b16 %v4472, %v4465
    %v4760 = vpack.c.b16 %v4473, %v4466
    %v4761 = vpack.c.b16 %v4474, %v4467
    %v4762 = vpack.c.b16 %v4475, %v4468
    %v4763 = vpack.c.b16 %v4476, %v4469
    %v4764 = vpack.c.b16 %v4477, %v4470
    %v4765 = vpack.c.b16 %v4485, %v4478
    %v4766 = vpack.c.b16 %v4486, %v4479
    %v4767 = vpack.c.b16 %v4487, %v4480
    %v4768 = vpack.c.b16 %v4488, %v4481
    %v4769 = vpack.c.b16 %v4489, %v4482
    %v4770 = vpack.c.b16 %v4490, %v4483
    %v4771 = vpack.c.b16 %v4491, %v4484
    %v4772 = vpack.c.b16 %v4499, %v4492
    %v4773 = vpack.c.b16 %v4500, %v4493
    %v4774 = vpack.c.b16 %v4501, %v4494
    %v4775 = vpack.c.b16 %v4502, %v4495
    %v4776 = vpack.c.b16 %v4503, %v4496
    %v4777 = vpack.c.b16 %v4504, %v4497
    %v4778 = vpack.c.b16 %v4505, %v4498
    %v4779 = vpack.c.b16 %v4513, %v4506
    %v4780 = vpack.c.b16 %v4514, %v4507
    %v4781 = vpack.c.b16 %v4515, %v4508
    %v4782 = vpack.c.b16 %v4516, %v4509
    %v4783 = vpack.c.b16 %v4517, %v4510
    %v4784 = vpack.c.b16 %v4518, %v4511
    %v4785 = vpack.c.b16 %v4519, %v4512
    %v4786 = vpack.c.b16 %v4527, %v4520
    %v4787 = vpack.c.b16 %v4528, %v4521
    %v4788 = vpack.c.b16 %v4529, %v4522
    %v4789 = vpack.c.b16 %v4530, %v4523
    %v4790 = vpack.c.b16 %v4531, %v4524
    %v4791 = vpack.c.b16 %v4532, %v4525
    %v4792 = vpack.c.b16 %v4533, %v4526
    %v4793 = vpack.c.b16 %v4541, %v4534
    %v4794 = vpack.c.b16 %v4542, %v4535
    %v4795 = vpack.c.b16 %v4543, %v4536
    %v4796 = vpack.c.b16 %v4544, %v4537
    %v4797 = vpack.c.b16 %v4545, %v4538
    %v4798 = vpack.c.b16 %v4546, %v4539
    %v4799 = vpack.c.b16 %v4547, %v4540
    %v4800 = vpack.c.b16 %v4555, %v4548
    %v4801 = vpack.c.b16 %v4556, %v4549
    %v4802 = vpack.c.b16 %v4557, %v4550
    %v4803 = vpack.c.b16 %v4558, %v4551
    %v4804 = vpack.c.b16 %v4559, %v4552
    %v4805 = vpack.c.b16 %v4560, %v4553
    %v4806 = vpack.c.b16 %v4561, %v4554
    %v4807 = vpack.c.b16 %v4569, %v4562
    %v4808 = vpack.c.b16 %v4570, %v4563
    %v4809 = vpack.c.b16 %v4571, %v4564
    %v4810 = vpack.c.b16 %v4572, %v4565
    %v4811 = vpack.c.b16 %v4573, %v4566
    %v4812 = vpack.c.b16 %v4574, %v4567
    %v4813 = vpack.c.b16 %v4575, %v4568
    %v4814 = vpack.c.b16 %v4583, %v4576
    %v4815 = vpack.c.b16 %v4584, %v4577
    %v4816 = vpack.c.b16 %v4585, %v4578
    %v4817 = vpack.c.b16 %v4586, %v4579
    %v4818 = vpack.c.b16 %v4587, %v4580
    %v4819 = vpack.c.b16 %v4588, %v4581
    %v4820 = vpack.c.b16 %v4589, %v4582
    %v4821 = vpack.c.b16 %v4597, %v4590
    %v4822 = vpack.c.b16 %v4598, %v4591
    %v4823 = vpack.c.b16 %v4599, %v4592
    %v4824 = vpack.c.b16 %v4600, %v4593
    %v4825 = vpack.c.b16 %v4601, %v4594
    %v4826 = vpack.c.b16 %v4602, %v4595
    %v4827 = vpack.c.b16 %v4603, %v4596
    %5052 = vmatprep.subr.bf16.mxu0 %v4605
    %5053 = vmatpush1.bf16.msra.mxu0 %v4604
    %5054 = vmatprep.subr.bf16.mxu0 %v4612
    %5055 = vmatpush1.bf16.msra.mxu0 %v4611
    %5056 = vmatprep.subr.bf16.mxu0 %v4619
    %5057 = vmatpush1.bf16.msra.mxu0 %v4618
    %5058 = vmatprep.subr.bf16.mxu0 %v4626
    %5059 = vmatpush1.bf16.msra.mxu0 %v4625
    %5060 = vmatprep.subr.bf16.mxu0 %v4633
    %5061 = vmatpush1.bf16.msra.mxu0 %v4632
    %5062 = vmatprep.subr.bf16.mxu0 %v4640
    %5063 = vmatpush1.bf16.msra.mxu0 %v4639
    %5064 = vmatprep.subr.bf16.mxu0 %v4647
    %5065 = vmatpush1.bf16.msra.mxu0 %v4646
    %5066 = vmatprep.subr.bf16.mxu0 %v4654
    %5067 = vmatpush1.bf16.msra.mxu0 %v4653
    %5068 = vmatprep.subr.bf16.mxu0 %v4661
    %5069 = vmatpush1.bf16.msra.mxu0 %v4660
    %5070 = vmatprep.subr.bf16.mxu0 %v4668
    %5071 = vmatpush1.bf16.msra.mxu0 %v4667
    %5072 = vmatprep.subr.bf16.mxu0 %v4675
    %5073 = vmatpush1.bf16.msra.mxu0 %v4674
    %5074 = vmatprep.subr.bf16.mxu0 %v4682
    %5075 = vmatpush1.bf16.msra.mxu0 %v4681
    %5076 = vmatprep.subr.bf16.mxu0 %v4689
    %5077 = vmatpush1.bf16.msra.mxu0 %v4688
    %5078 = vmatprep.subr.bf16.mxu0 %v4696
    %5079 = vmatpush1.bf16.msra.mxu0 %v4695
    %5080 = vmatprep.subr.bf16.mxu0 %v4703
    %5081 = vmatpush1.bf16.msra.mxu0 %v4702
    %5082 = vmatprep.subr.bf16.mxu0 %v4710
    %5083 = vmatpush1.bf16.msra.mxu0 %v4709
    %5084 = vmatprep.mubr.bf16.mxu0 %v3605
    %5085 = vmatmul.mubr.bf16.gmra.mrb[0].mxu0 %v3604
    %v5086 = vpop.f32.mrb[0].mxu0
    %v5087 = vadd.f32 %v3868, %v5086
    %v5088 = vpop.f32.mrb[0].mxu0
    %v5089 = vadd.f32 %v3872, %v5088
    %v5090 = vpop.f32.mrb[0].mxu0
    %v5091 = vpop.f32.mrb[0].mxu0
    %5092 = vdwg.mxu0
    %5093 = vmatprep.subr.bf16.mxu0 %v4717
    %5094 = vmatpush1.bf16.msra.mxu0 %v4716
    %5095 = vmatprep.subr.bf16.mxu0 %v4724
    %5096 = vmatpush1.bf16.msra.mxu0 %v4723
    %5097 = vmatprep.subr.bf16.mxu0 %v4731
    %5098 = vmatpush1.bf16.msra.mxu0 %v4730
    %5099 = vmatprep.subr.bf16.mxu0 %v4738
    %5100 = vmatpush1.bf16.msra.mxu0 %v4737
    %5101 = vmatprep.subr.bf16.mxu0 %v4745
    %5102 = vmatpush1.bf16.msra.mxu0 %v4744
    %5103 = vmatprep.subr.bf16.mxu0 %v4752
    %5104 = vmatpush1.bf16.msra.mxu0 %v4751
    %5105 = vmatprep.subr.bf16.mxu0 %v4759
    %5106 = vmatpush1.bf16.msra.mxu0 %v4758
    %5107 = vmatprep.subr.bf16.mxu0 %v4766
    %5108 = vmatpush1.bf16.msra.mxu0 %v4765
    %5109 = vmatprep.subr.bf16.mxu0 %v4773
    %5110 = vmatpush1.bf16.msra.mxu0 %v4772
    %5111 = vmatprep.subr.bf16.mxu0 %v4780
    %5112 = vmatpush1.bf16.msra.mxu0 %v4779
    %5113 = vmatprep.subr.bf16.mxu0 %v4787
    %5114 = vmatpush1.bf16.msra.mxu0 %v4786
    %5115 = vmatprep.subr.bf16.mxu0 %v4794
    %5116 = vmatpush1.bf16.msra.mxu0 %v4793
    %5117 = vmatprep.subr.bf16.mxu0 %v4801
    %5118 = vmatpush1.bf16.msra.mxu0 %v4800
    %5119 = vmatprep.subr.bf16.mxu0 %v4808
    %5120 = vmatpush1.bf16.msra.mxu0 %v4807
    %5121 = vmatprep.subr.bf16.mxu0 %v4815
    %5122 = vmatpush1.bf16.msra.mxu0 %v4814
    %5123 = vmatprep.subr.bf16.mxu0 %v4822
    %5124 = vmatpush1.bf16.msra.mxu0 %v4821
    %5125 = vmatprep.mubr.bf16.mxu0 %v3607
    %5126 = vmatmul.mubr.bf16.gmra.mrb[0].mxu0 %v3606
    %v5127 = vpop.f32.mrb[0].mxu0
    %v5128 = vadd.f32 %v5087, %v5127
    %v5129 = vpop.f32.mrb[0].mxu0
    %v5130 = vadd.f32 %v5089, %v5129
    %v5131 = vpop.f32.mrb[0].mxu0
    %v5132 = vpop.f32.mrb[0].mxu0
    %5133 = vdwg.mxu0
    %5134 = vmatprep.subr.bf16.mxu0 %v4607
    %5135 = vmatpush1.bf16.msra.mxu0 %v4606
    %5136 = vmatprep.subr.bf16.mxu0 %v4614
    %5137 = vmatpush1.bf16.msra.mxu0 %v4613
    %5138 = vmatprep.subr.bf16.mxu0 %v4621
    %5139 = vmatpush1.bf16.msra.mxu0 %v4620
    %5140 = vmatprep.subr.bf16.mxu0 %v4628
    %5141 = vmatpush1.bf16.msra.mxu0 %v4627
    %5142 = vmatprep.subr.bf16.mxu0 %v4635
    %5143 = vmatpush1.bf16.msra.mxu0 %v4634
    %5144 = vmatprep.subr.bf16.mxu0 %v4642
    %5145 = vmatpush1.bf16.msra.mxu0 %v4641
    %5146 = vmatprep.subr.bf16.mxu0 %v4649
    %5147 = vmatpush1.bf16.msra.mxu0 %v4648
    %5148 = vmatprep.subr.bf16.mxu0 %v4656
    %5149 = vmatpush1.bf16.msra.mxu0 %v4655
    %5150 = vmatprep.subr.bf16.mxu0 %v4663
    %5151 = vmatpush1.bf16.msra.mxu0 %v4662
    %5152 = vmatprep.subr.bf16.mxu0 %v4670
    %5153 = vmatpush1.bf16.msra.mxu0 %v4669
    %5154 = vmatprep.subr.bf16.mxu0 %v4677
    %5155 = vmatpush1.bf16.msra.mxu0 %v4676
    %5156 = vmatprep.subr.bf16.mxu0 %v4684
    %5157 = vmatpush1.bf16.msra.mxu0 %v4683
    %5158 = vmatprep.subr.bf16.mxu0 %v4691
    %5159 = vmatpush1.bf16.msra.mxu0 %v4690
    %5160 = vmatprep.subr.bf16.mxu0 %v4698
    %5161 = vmatpush1.bf16.msra.mxu0 %v4697
    %5162 = vmatprep.subr.bf16.mxu0 %v4705
    %5163 = vmatpush1.bf16.msra.mxu0 %v4704
    %5164 = vmatprep.subr.bf16.mxu0 %v4712
    %5165 = vmatpush1.bf16.msra.mxu0 %v4711
    %5166 = vmatprep.mubr.bf16.mxu0 %v3605
    %5167 = vmatmul.mubr.bf16.gmra.mrb[0].mxu0 %v3604
    %v5168 = vpop.f32.mrb[0].mxu0
    %v5169 = vadd.f32 %v3876, %v5168
    %v5170 = vpop.f32.mrb[0].mxu0
    %v5171 = vadd.f32 %v3880, %v5170
    %v5172 = vpop.f32.mrb[0].mxu0
    %v5173 = vpop.f32.mrb[0].mxu0
    %5174 = vdwg.mxu0
    %5175 = vmatprep.subr.bf16.mxu0 %v4719
    %5176 = vmatpush1.bf16.msra.mxu0 %v4718
    %5177 = vmatprep.subr.bf16.mxu0 %v4726
    %5178 = vmatpush1.bf16.msra.mxu0 %v4725
    %5179 = vmatprep.subr.bf16.mxu0 %v4733
    %5180 = vmatpush1.bf16.msra.mxu0 %v4732
    %5181 = vmatprep.subr.bf16.mxu0 %v4740
    %5182 = vmatpush1.bf16.msra.mxu0 %v4739
    %5183 = vmatprep.subr.bf16.mxu0 %v4747
    %5184 = vmatpush1.bf16.msra.mxu0 %v4746
    %5185 = vmatprep.subr.bf16.mxu0 %v4754
    %5186 = vmatpush1.bf16.msra.mxu0 %v4753
    %5187 = vmatprep.subr.bf16.mxu0 %v4761
    %5188 = vmatpush1.bf16.msra.mxu0 %v4760
    %5189 = vmatprep.subr.bf16.mxu0 %v4768
    %5190 = vmatpush1.bf16.msra.mxu0 %v4767
    %5191 = vmatprep.subr.bf16.mxu0 %v4775
    %5192 = vmatpush1.bf16.msra.mxu0 %v4774
    %5193 = vmatprep.subr.bf16.mxu0 %v4782
    %5194 = vmatpush1.bf16.msra.mxu0 %v4781
    %5195 = vmatprep.subr.bf16.mxu0 %v4789
    %5196 = vmatpush1.bf16.msra.mxu0 %v4788
    %5197 = vmatprep.subr.bf16.mxu0 %v4796
    %5198 = vmatpush1.bf16.msra.mxu0 %v4795
    %5199 = vmatprep.subr.bf16.mxu0 %v4803
    %5200 = vmatpush1.bf16.msra.mxu0 %v4802
    %5201 = vmatprep.subr.bf16.mxu0 %v4810
    %5202 = vmatpush1.bf16.msra.mxu0 %v4809
    %5203 = vmatprep.subr.bf16.mxu0 %v4817
    %5204 = vmatpush1.bf16.msra.mxu0 %v4816
    %5205 = vmatprep.subr.bf16.mxu0 %v4824
    %5206 = vmatpush1.bf16.msra.mxu0 %v4823
    %5207 = vmatprep.mubr.bf16.mxu0 %v3607
    %5208 = vmatmul.mubr.bf16.gmra.mrb[0].mxu0 %v3606
    %v5209 = vpop.f32.mrb[0].mxu0
    %v5210 = vadd.f32 %v5169, %v5209
    %v5211 = vpop.f32.mrb[0].mxu0
    %v5212 = vadd.f32 %v5171, %v5211
    %v5213 = vpop.f32.mrb[0].mxu0
    %v5214 = vpop.f32.mrb[0].mxu0
    %5215 = vdwg.mxu0
    %5216 = vmatprep.subr.bf16.mxu0 %v4609
    %5217 = vmatpush1.bf16.msra.mxu0 %v4608
    %5218 = vmatprep.subr.bf16.mxu0 %v4616
    %5219 = vmatpush1.bf16.msra.mxu0 %v4615
    %5220 = vmatprep.subr.bf16.mxu0 %v4623
    %5221 = vmatpush1.bf16.msra.mxu0 %v4622
    %5222 = vmatprep.subr.bf16.mxu0 %v4630
    %5223 = vmatpush1.bf16.msra.mxu0 %v4629
    %5224 = vmatprep.subr.bf16.mxu0 %v4637
    %5225 = vmatpush1.bf16.msra.mxu0 %v4636
    %5226 = vmatprep.subr.bf16.mxu0 %v4644
    %5227 = vmatpush1.bf16.msra.mxu0 %v4643
    %5228 = vmatprep.subr.bf16.mxu0 %v4651
    %5229 = vmatpush1.bf16.msra.mxu0 %v4650
    %5230 = vmatprep.subr.bf16.mxu0 %v4658
    %5231 = vmatpush1.bf16.msra.mxu0 %v4657
    %5232 = vmatprep.subr.bf16.mxu0 %v4665
    %5233 = vmatpush1.bf16.msra.mxu0 %v4664
    %5234 = vmatprep.subr.bf16.mxu0 %v4672
    %5235 = vmatpush1.bf16.msra.mxu0 %v4671
    %5236 = vmatprep.subr.bf16.mxu0 %v4679
    %5237 = vmatpush1.bf16.msra.mxu0 %v4678
    %5238 = vmatprep.subr.bf16.mxu0 %v4686
    %5239 = vmatpush1.bf16.msra.mxu0 %v4685
    %5240 = vmatprep.subr.bf16.mxu0 %v4693
    %5241 = vmatpush1.bf16.msra.mxu0 %v4692
    %5242 = vmatprep.subr.bf16.mxu0 %v4700
    %5243 = vmatpush1.bf16.msra.mxu0 %v4699
    %5244 = vmatprep.subr.bf16.mxu0 %v4707
    %5245 = vmatpush1.bf16.msra.mxu0 %v4706
    %5246 = vmatprep.subr.bf16.mxu0 %v4714
    %5247 = vmatpush1.bf16.msra.mxu0 %v4713
    %5248 = vmatprep.mubr.bf16.mxu0 %v3605
    %5249 = vmatmul.mubr.bf16.gmra.mrb[0].mxu0 %v3604
    %v5250 = vpop.f32.mrb[0].mxu0
    %v5251 = vadd.f32 %v3884, %v5250
    %v5252 = vpop.f32.mrb[0].mxu0
    %v5253 = vadd.f32 %v3888, %v5252
    %v5254 = vpop.f32.mrb[0].mxu0
    %v5255 = vpop.f32.mrb[0].mxu0
    %5256 = vdwg.mxu0
    %5257 = vmatprep.subr.bf16.mxu0 %v4721
    %5258 = vmatpush1.bf16.msra.mxu0 %v4720
    %5259 = vmatprep.subr.bf16.mxu0 %v4728
    %5260 = vmatpush1.bf16.msra.mxu0 %v4727
    %5261 = vmatprep.subr.bf16.mxu0 %v4735
    %5262 = vmatpush1.bf16.msra.mxu0 %v4734
    %5263 = vmatprep.subr.bf16.mxu0 %v4742
    %5264 = vmatpush1.bf16.msra.mxu0 %v4741
    %5265 = vmatprep.subr.bf16.mxu0 %v4749
    %5266 = vmatpush1.bf16.msra.mxu0 %v4748
    %5267 = vmatprep.subr.bf16.mxu0 %v4756
    %5268 = vmatpush1.bf16.msra.mxu0 %v4755
    %5269 = vmatprep.subr.bf16.mxu0 %v4763
    %5270 = vmatpush1.bf16.msra.mxu0 %v4762
    %5271 = vmatprep.subr.bf16.mxu0 %v4770
    %5272 = vmatpush1.bf16.msra.mxu0 %v4769
    %5273 = vmatprep.subr.bf16.mxu0 %v4777
    %5274 = vmatpush1.bf16.msra.mxu0 %v4776
    %5275 = vmatprep.subr.bf16.mxu0 %v4784
    %5276 = vmatpush1.bf16.msra.mxu0 %v4783
    %5277 = vmatprep.subr.bf16.mxu0 %v4791
    %5278 = vmatpush1.bf16.msra.mxu0 %v4790
    %5279 = vmatprep.subr.bf16.mxu0 %v4798
    %5280 = vmatpush1.bf16.msra.mxu0 %v4797
    %5281 = vmatprep.subr.bf16.mxu0 %v4805
    %5282 = vmatpush1.bf16.msra.mxu0 %v4804
    %5283 = vmatprep.subr.bf16.mxu0 %v4812
    %5284 = vmatpush1.bf16.msra.mxu0 %v4811
    %5285 = vmatprep.subr.bf16.mxu0 %v4819
    %5286 = vmatpush1.bf16.msra.mxu0 %v4818
    %5287 = vmatprep.subr.bf16.mxu0 %v4826
    %5288 = vmatpush1.bf16.msra.mxu0 %v4825
    %5289 = vmatprep.mubr.bf16.mxu0 %v3607
    %5290 = vmatmul.mubr.bf16.gmra.mrb[0].mxu0 %v3606
    %v5291 = vpop.f32.mrb[0].mxu0
    %v5292 = vadd.f32 %v5251, %v5291
    %v5293 = vpop.f32.mrb[0].mxu0
    %v5294 = vadd.f32 %v5253, %v5293
    %v5295 = vpop.f32.mrb[0].mxu0
    %v5296 = vpop.f32.mrb[0].mxu0
    %5297 = vdwg.mxu0
    %5298 = vmatprep.subr.bf16.mxu0 0
    %5299 = vmatpush1.bf16.msra.mxu0 %v4610
    %5300 = vmatprep.subr.bf16.mxu0 0
    %5301 = vmatpush1.bf16.msra.mxu0 %v4617
    %5302 = vmatprep.subr.bf16.mxu0 0
    %5303 = vmatpush1.bf16.msra.mxu0 %v4624
    %5304 = vmatprep.subr.bf16.mxu0 0
    %5305 = vmatpush1.bf16.msra.mxu0 %v4631
    %5306 = vmatprep.subr.bf16.mxu0 0
    %5307 = vmatpush1.bf16.msra.mxu0 %v4638
    %5308 = vmatprep.subr.bf16.mxu0 0
    %5309 = vmatpush1.bf16.msra.mxu0 %v4645
    %5310 = vmatprep.subr.bf16.mxu0 0
    %5311 = vmatpush1.bf16.msra.mxu0 %v4652
    %5312 = vmatprep.subr.bf16.mxu0 0
    %5313 = vmatpush1.bf16.msra.mxu0 %v4659
    %5314 = vmatprep.subr.bf16.mxu0 0
    %5315 = vmatpush1.bf16.msra.mxu0 %v4666
    %5316 = vmatprep.subr.bf16.mxu0 0
    %5317 = vmatpush1.bf16.msra.mxu0 %v4673
    %5318 = vmatprep.subr.bf16.mxu0 0
    %5319 = vmatpush1.bf16.msra.mxu0 %v4680
    %5320 = vmatprep.subr.bf16.mxu0 0
    %5321 = vmatpush1.bf16.msra.mxu0 %v4687
    %5322 = vmatprep.subr.bf16.mxu0 0
    %5323 = vmatpush1.bf16.msra.mxu0 %v4694
    %5324 = vmatprep.subr.bf16.mxu0 0
    %5325 = vmatpush1.bf16.msra.mxu0 %v4701
    %5326 = vmatprep.subr.bf16.mxu0 0
    %5327 = vmatpush1.bf16.msra.mxu0 %v4708
    %5328 = vmatprep.subr.bf16.mxu0 0
    %5329 = vmatpush1.bf16.msra.mxu0 %v4715
    %5330 = vmatprep.mubr.bf16.mxu0 %v3605
    %5331 = vmatmul.mubr.bf16.gmra.mrb[0].mxu0 %v3604
    %v5332 = vpop.f32.mrb[0].mxu0
    %v5333 = vadd.f32 %v3892, %v5332
    %v5334 = vpop.f32.mrb[0].mxu0
    %v5335 = vpop.f32.mrb[0].mxu0
    %v5336 = vpop.f32.mrb[0].mxu0
    %5337 = vdwg.mxu0
    %5338 = vmatprep.subr.bf16.mxu0 0
    %5339 = vmatpush1.bf16.msra.mxu0 %v4722
    %5340 = vmatprep.subr.bf16.mxu0 0
    %5341 = vmatpush1.bf16.msra.mxu0 %v4729
    %5342 = vmatprep.subr.bf16.mxu0 0
    %5343 = vmatpush1.bf16.msra.mxu0 %v4736
    %5344 = vmatprep.subr.bf16.mxu0 0
    %5345 = vmatpush1.bf16.msra.mxu0 %v4743
    %5346 = vmatprep.subr.bf16.mxu0 0
    %5347 = vmatpush1.bf16.msra.mxu0 %v4750
    %5348 = vmatprep.subr.bf16.mxu0 0
    %5349 = vmatpush1.bf16.msra.mxu0 %v4757
    %5350 = vmatprep.subr.bf16.mxu0 0
    %5351 = vmatpush1.bf16.msra.mxu0 %v4764
    %5352 = vmatprep.subr.bf16.mxu0 0
    %5353 = vmatpush1.bf16.msra.mxu0 %v4771
    %5354 = vmatprep.subr.bf16.mxu0 0
    %5355 = vmatpush1.bf16.msra.mxu0 %v4778
    %5356 = vmatprep.subr.bf16.mxu0 0
    %5357 = vmatpush1.bf16.msra.mxu0 %v4785
    %5358 = vmatprep.subr.bf16.mxu0 0
    %5359 = vmatpush1.bf16.msra.mxu0 %v4792
    %5360 = vmatprep.subr.bf16.mxu0 0
    %5361 = vmatpush1.bf16.msra.mxu0 %v4799
    %5362 = vmatprep.subr.bf16.mxu0 0
    %5363 = vmatpush1.bf16.msra.mxu0 %v4806
    %5364 = vmatprep.subr.bf16.mxu0 0
    %5365 = vmatpush1.bf16.msra.mxu0 %v4813
    %5366 = vmatprep.subr.bf16.mxu0 0
    %5367 = vmatpush1.bf16.msra.mxu0 %v4820
    %5368 = vmatprep.subr.bf16.mxu0 0
    %5369 = vmatpush1.bf16.msra.mxu0 %v4827
    %5370 = vmatprep.mubr.bf16.mxu0 %v3607
    %5371 = vmatmul.mubr.bf16.gmra.mrb[0].mxu0 %v3606
    %v5372 = vpop.f32.mrb[0].mxu0
    %v5373 = vadd.f32 %v5333, %v5372
    %v5374 = vpop.f32.mrb[0].mxu0
    %v5375 = vpop.f32.mrb[0].mxu0
    %v5376 = vpop.f32.mrb[0].mxu0
    %5377 = vdwg.mxu0
    %v5378 = vxor.u32 %v5128, 2147483648
    %v5379 = vxor.u32 %v5130, 2147483648
    %v5380 = vxor.u32 %v5210, 2147483648
    %v5381 = vxor.u32 %v5212, 2147483648
    %v5382 = vxor.u32 %v5292, 2147483648
    %v5383 = vxor.u32 %v5294, 2147483648
    %v5384 = vxor.u32 %v5373, 2147483648
    %v5385 = vmul.f32 %v5378, 1.442695
    %v5386 = vpow.pop %v5385
    %v5387 = vmul.f32 %v5379, 1.442695
    %v5388 = vpow.pop %v5387
    %v5389 = vmul.f32 %v5380, 1.442695
    %v5390 = vpow.pop %v5389
    %v5391 = vmul.f32 %v5381, 1.442695
    %v5392 = vpow.pop %v5391
    %v5393 = vmul.f32 %v5382, 1.442695
    %v5394 = vpow.pop %v5393
    %v5395 = vmul.f32 %v5383, 1.442695
    %v5396 = vpow.pop %v5395
    %v5397 = vmul.f32 %v5384, 1.442695
    %v5398 = vpow.pop %v5397
    %v5399 = vadd.f32 %v5386, 1.0
    %v5400 = vadd.f32 %v5388, 1.0
    %v5401 = vadd.f32 %v5390, 1.0
    %v5402 = vadd.f32 %v5392, 1.0
    %v5403 = vadd.f32 %v5394, 1.0
    %v5404 = vadd.f32 %v5396, 1.0
    %v5405 = vadd.f32 %v5398, 1.0
    %v5406 = vrcp.pop %v5399
    %v5407 = vmul.f32 1.0, %v5406
    %v5408 = vrcp.pop %v5400
    %v5409 = vmul.f32 1.0, %v5408
    %v5410 = vrcp.pop %v5401
    %v5411 = vmul.f32 1.0, %v5410
    %v5412 = vrcp.pop %v5402
    %v5413 = vmul.f32 1.0, %v5412
    %v5414 = vrcp.pop %v5403
    %v5415 = vmul.f32 1.0, %v5414
    %v5416 = vrcp.pop %v5404
    %v5417 = vmul.f32 1.0, %v5416
    %v5418 = vrcp.pop %v5405
    %v5419 = vmul.f32 1.0, %v5418
    %5420 = vst [vmem:[#allocation16] sm:$0xff] %v3294
    %5421 = vst [vmem:[#allocation17] sm:$0xff] %v3292
    %5422 = vst [vmem:[#allocation19] sm:$0xff] %v5407
    %5423 = vst [vmem:[#allocation19 + $0x8] sm:$0xff] %v5409
    %5424 = vst [vmem:[#allocation19 + $0x10] sm:$0xff] %v5411
    %5425 = vst [vmem:[#allocation19 + $0x18] sm:$0xff] %v5413
    %5426 = vst [vmem:[#allocation19 + $0x20] sm:$0xff] %v5415
    %5427 = vst [vmem:[#allocation19 + $0x28] sm:$0xff] %v5417
    %5428 = vst [vmem:[#allocation19 + $0x30] sm:$0xff] %v5419
    // Predicated region
    $region66: #{tpu_custom_call.1} parent=1 // pred_check
      _
    $region67: #{tpu_custom_call.1} parent=1 // pred_check_branch
      %5430 = sbr.rel (0) target = $region69
    $region68: #{tpu_custom_call.1} parent=1 // pred_region
      %s5432 = ssub.s32 128, 128
      %5433 = vsyncadd [#allocation4], %s5432
      %s5435 = sshll.u32 [#allocation16], 4
      %s5436 = int_to_ptr.vmem [resolvable:$true] %s5435
      %5438 = dma.vmem_to_hbm [thread:$0]  %s5436, 128, %s8, [#allocation4]
    $region69: #{tpu_custom_call.1} parent=1 // pred_fallthru
      _
    // Predicated region
    $region70: #{tpu_custom_call.1} parent=1 // pred_check
      _
    $region71: #{tpu_custom_call.1} parent=1 // pred_check_branch
      %5440 = sbr.rel (0) target = $region73
    $region72: #{tpu_custom_call.1} parent=1 // pred_region
      %s5442 = ssub.s32 128, 128
      %5443 = vsyncadd [#allocation18], %s5442
      %s5445 = sshll.u32 [#allocation17], 4
      %s5446 = int_to_ptr.vmem [resolvable:$true] %s5445
      %5448 = dma.vmem_to_hbm [thread:$0]  %s5446, 128, %s9, [#allocation18]
    $region73: #{tpu_custom_call.1} parent=1 // pred_fallthru
      _
    // Predicated region
    $region74: #{tpu_custom_call.1} parent=1 // pred_check
      _
    $region75: #{tpu_custom_call.1} parent=1 // pred_check_branch
      %5450 = sbr.rel (0) target = $region77
    $region76: #{tpu_custom_call.1} parent=1 // pred_region
      %s5452 = ssub.s32 896, 896
      %5453 = vsyncadd [#allocation18], %s5452
      %s5455 = sshll.u32 [#allocation19], 4
      %s5456 = int_to_ptr.vmem [resolvable:$true] %s5455
      %5458 = dma.vmem_to_hbm [thread:$0]  %s5456, 896, %s10, [#allocation18]
    $region77: #{tpu_custom_call.1} parent=1 // pred_fallthru
      _
    // Predicated region
    $region78: #{tpu_custom_call.1} parent=1 // pred_check
      _
    $region79: #{tpu_custom_call.1} parent=1 // pred_check_branch
      %5460 = sbr.rel (0) target = $region81
    $region80: #{tpu_custom_call.1} parent=1 // pred_region
      %5461 = dma.done [#allocation4], 128
    $region81: #{tpu_custom_call.1} parent=1 // pred_fallthru
      _
    // Predicated region
    $region82: #{tpu_custom_call.1} parent=1 // pred_check
      _
    $region83: #{tpu_custom_call.1} parent=1 // pred_check_branch
      %5463 = sbr.rel (0) target = $region85
    $region84: #{tpu_custom_call.1} parent=1 // pred_region
      %5464 = dma.done [#allocation18], 128
    $region85: #{tpu_custom_call.1} parent=1 // pred_fallthru
      _
    // Predicated region
    $region86: #{tpu_custom_call.1} parent=1 // pred_check
      _
    $region87: #{tpu_custom_call.1} parent=1 // pred_check_branch
      %5466 = sbr.rel (0) target = $region89
    $region88: #{tpu_custom_call.1} parent=1 // pred_region
      %5467 = dma.done [#allocation18], 896
    $region89: #{tpu_custom_call.1} parent=1 // pred_fallthru
      _
    %5468 = vsyncpa [#allocation3], 1
    %5469 = vsyncpa [#allocation6], 1
    %5470 = vsyncpa [#allocation9], 1
    %5471 = vsyncpa [#allocation12], 1
    %5472 = vsyncpa [#allocation15], 1
    %5473 = vsyncpa [#allocation4], 1
    %5474 = vsyncpa [#allocation18], 1

</llo_original>
